<compile_context>
chip_gen: v7x
topology: tpu7x:2x2x1
jax: 0.10.0
libtpu: 0.0.40
codegen_flags: <defaults>
</compile_context>

<pallas_src>
import jax
import jax.numpy as jnp
import numpy as np
from jax import lax
from jax.experimental import pallas as pl
from jax.experimental.pallas import tpu as pltpu

# ----------------------------- configuration -------------------------------
B = 8              # batch (multiple of 8 -> sublane aligned stores)
E = 32             # lstm_encoder_size
N_HEAD = 4
ATT_OUT = 8
H = N_HEAD * ATT_OUT   # 32  (n_head * att_out)
LAT = 3            # lat_length
LON = 2            # lon_length
C = LAT + LON      # 5
T_IN = 8           # in_length_stu
T_OUT = 5          # out_length
G = 3 * E          # GRU gate width (96)
RELU_PARAM = 0.1   # LeakyReLU negative slope
LN_EPS = 1e-5

# --------- packed parameter slab: (208, 128) f32, every block lane-0 / 8-row aligned ---------
PACK_ROWS = 208
PACK_COLS = 128
R_W1 = 0       # rows   0: 32, cols 0:32   mu_fc1                     (E, H)
R_W2 = 32      # rows  32: 64, cols 0:32   mu_fc                      (H, E)
R_WOP = 64     # rows  64: 96, cols 0:5    [op_lat | op_lon]          (E, C)
R_WGIX = 96    # rows  96:128, cols 0:96   w_dl_x @ w_ih              (E, G)
R_WHH = 128    # rows 128:160, cols 0:96   GRU W_hh^T                 (E, G)
R_WGIE = 160   # rows 160:165, cols 0:96   [w_dl_lat; w_dl_lon] @ w_ih (C, G)
R_WL1 = 168    # rows 168:200, cols 0:128  linear1 padded to 128 lanes (E, 128)
RB_MU1 = 200   # b_mu_fc1 (H)
RB_MU2 = 201   # b_mu_fc (E)
RB_GAMMA = 202 # LayerNorm gamma (E)
RB_BETA = 203  # LayerNorm beta (E)
RB_GI = 204    # b_dl @ w_ih + b_ih (G)
RB_HH = 205    # GRU b_hh (G)
RB_OP = 206    # [b_op_lat | b_op_lon] (C)
RB_L1 = 207    # b_linear1 padded to 128 lanes


def _leaky(x):
    # LeakyReLU(0.1) == max(x, 0.1*x) for slope in (0, 1)
    return jnp.maximum(x, RELU_PARAM * x)


# ---------------------------- in-kernel helpers ------------------------------
def _softmax_last(x):
    m = jnp.max(x, axis=-1, keepdims=True)
    e = jnp.exp(x - m)
    return e / jnp.sum(e, axis=-1, keepdims=True)


def _onehot_argmax(x, n):
    # one-hot of the first max index (matches jnp/torch argmax tie-breaking)
    col = lax.broadcasted_iota(jnp.int32, x.shape, 1)
    mx = jnp.max(x, axis=-1, keepdims=True)
    first = jnp.min(jnp.where(x == mx, col, n), axis=-1, keepdims=True)
    return (col == first).astype(jnp.float32)


# ----------------------------- fused kernel ----------------------------------
def _generator_kernel(values_ref, enc_ref, wpack_ref, map_ref, out_ref, h_scr):
    f32 = jnp.float32

    # ---- unpack the parameter slab (all blocks start at lane 0, 8-row aligned) ----
    w1 = wpack_ref[R_W1:R_W1 + E, 0:H]
    w2 = wpack_ref[R_W2:R_W2 + H, 0:E]
    wop = wpack_ref[R_WOP:R_WOP + E, 0:C]
    wgix = wpack_ref[R_WGIX:R_WGIX + E, 0:G]
    whh = wpack_ref[R_WHH:R_WHH + E, 0:G]
    wgie = wpack_ref[R_WGIE:R_WGIE + C, 0:G]
    wl1f = wpack_ref[R_WL1:R_WL1 + E, :]            # (E, 128) zero-padded lanes
    b1 = wpack_ref[RB_MU1:RB_MU1 + 1, 0:H]
    b2 = wpack_ref[RB_MU2:RB_MU2 + 1, 0:E]
    gamma = wpack_ref[RB_GAMMA:RB_GAMMA + 1, 0:E]
    beta = wpack_ref[RB_BETA:RB_BETA + 1, 0:E]
    bgi = wpack_ref[RB_GI:RB_GI + 1, 0:G]
    bhh = wpack_ref[RB_HH:RB_HH + 1, 0:G]
    bop = wpack_ref[RB_OP:RB_OP + 1, 0:C]
    bl1f = wpack_ref[RB_L1:RB_L1 + 1, :]            # (1, 128) zero-padded lanes

    values = values_ref[...]                        # (B, T_IN, E)
    enc = enc_ref[...]                              # (B, C) = [lat | lon]

    # ---- maneuver head: mu_fc1 -> LReLU -> mu_fc -> LN -> LReLU -> op heads ----
    x = values[:, T_IN - 1, :]                      # values[:, -1, :]
    h1 = _leaky(jnp.dot(x, w1, preferred_element_type=f32) + b1)
    h2 = jnp.dot(h1, w2, preferred_element_type=f32) + b2
    mean = jnp.mean(h2, axis=-1, keepdims=True)
    var = jnp.mean((h2 - mean) ** 2, axis=-1, keepdims=True)
    ln = (h2 - mean) * lax.rsqrt(var + LN_EPS) * gamma + beta
    m = _leaky(ln)
    logits = jnp.dot(m, wop, preferred_element_type=f32) + bop   # (B, C) merged heads
    lat_logits = logits[:, 0:LAT]
    lon_logits = logits[:, LAT:C]

    # user-visible probabilities: exact softmax (no approx reciprocal)
    lat_pred = _softmax_last(lat_logits)
    lon_pred = _softmax_last(lon_logits)

    # ---- one-hot(argmax) maneuver selection taken directly from the logits ----
    # (argmax(softmax(x)) == argmax(x) -> the mixing path doesn't wait on softmax)
    index = jnp.concatenate(
        [_onehot_argmax(lat_logits, LAT), _onehot_argmax(lon_logits, LON)], axis=-1)  # (B, C)

    # ---- maneuver-conditioned mixing of encoder values ----
    mp = map_ref[...]                                            # (T_OUT, T_IN, C)
    mix_logits = lax.dot_general(index, mp, (((1,), (2,)), ((), ())),
                                 preferred_element_type=f32)     # (B, T_OUT, T_IN)
    mix_w = _softmax_last(mix_logits)

    # ---- GRU input path: dec_linear folded into W_ih at init, fully hoisted ----
    # gi = (dec @ w_dl_x + enc @ w_dl_enc + b_dl) @ w_ih + b_ih
    #    = mix_w @ (values @ W_gi_x) + enc @ W_gi_enc + b_gi       (exact reassociation)
    values_gi = lax.dot_general(values, wgix, (((2,), (0,)), ((), ())),
                                preferred_element_type=f32)      # (B, T_IN, G) -- off crit path
    gi_mix = lax.dot_general(mix_w, values_gi, (((2,), (1,)), ((0,), (0,))),
                             preferred_element_type=f32)         # (B, T_OUT, G)
    gi_base = jnp.dot(enc, wgie, preferred_element_type=f32) + bgi   # (B, G)
    # hoist per-timestep slices out of the recurrence (precomputed vreg values)
    gi_list = [gi_mix[:, t, :] + gi_base for t in range(T_OUT)]

    # ---- single-layer GRU (gate order [r, z, n]); only h @ W_hh stays serial ----
    bhh_b = jnp.broadcast_to(bhh, (B, G))            # hoist broadcast out of the loop
    h = jnp.zeros((B, E), f32)
    for t in range(T_OUT):
        gi = gi_list[t]
        gh = jnp.dot(h, whh, preferred_element_type=f32) + bhh_b
        r = jax.nn.sigmoid(gi[:, 0:E] + gh[:, 0:E])
        z = jax.nn.sigmoid(gi[:, E:2 * E] + gh[:, E:2 * E])
        n = jnp.tanh(gi[:, 2 * E:G] + r * gh[:, 2 * E:G])
        h = (1.0 - z) * n + z * h
        h_scr[t * B:(t + 1) * B, :] = h              # t*B multiple of 8 -> plain vst

    # ---- linear1 + outputActivation over all timesteps at once (lane-dense) ----
    fut = jnp.dot(h_scr[...], wl1f, preferred_element_type=f32) + bl1f   # (T_OUT*B, 128)
    col = lax.broadcasted_iota(jnp.int32, fut.shape, 1)
    # cols 0,1: identity; 2,3: exp; 4+: tanh (padded cols are exactly 0 -> tanh(0)=0)
    fut = jnp.where(col < 2, fut, jnp.where(col < 4, jnp.exp(fut), jnp.tanh(fut)))

    # ---- packed lane-dense output: rows [0,T_OUT*B)=fut, rows [T_OUT*B,+B)=[lat|lon] ----
    out_ref[0:T_OUT * B, :] = fut
    probs_full = jnp.concatenate(
        [lat_pred, lon_pred, jnp.zeros((B, PACK_COLS - C), f32)], axis=-1)   # (B, 128)
    out_ref[T_OUT * B:T_OUT * B + B, :] = probs_full


# ------------------------------ full forward ---------------------------------
@jax.jit
def generator_stu_forward(params, values, lat_enc, lon_enc):
    enc = jnp.concatenate([lat_enc, lon_enc], axis=-1)         # (B, C)
    vmem = lambda: pl.BlockSpec(memory_space=pltpu.MemorySpace.VMEM)
    out = pl.pallas_call(
        _generator_kernel,
        out_shape=jax.ShapeDtypeStruct((T_OUT * B + B, PACK_COLS), jnp.float32),
        in_specs=[vmem(), vmem(), vmem(), vmem()],
        out_specs=vmem(),
        scratch_shapes=[pltpu.VMEM((T_OUT * B, E), jnp.float32)],
    )(values, enc, params['wpack'], params['mapping_oic'])
    fut_pred = out[:T_OUT * B, :5].reshape(T_OUT, B, 5)         # time-first like torch
    lat_pred = out[T_OUT * B:, 0:LAT]
    lon_pred = out[T_OUT * B:, LAT:C]
    return fut_pred, lat_pred, lon_pred


# --------------------------- deterministic params ----------------------------
def init_params(key):
    ks = jax.random.split(key, 10)

    def lin(k, fan_in, fan_out):
        kw, kb = jax.random.split(k)
        lim = 1.0 / float(np.sqrt(fan_in))
        w = jax.random.uniform(kw, (fan_in, fan_out), jnp.float32, -lim, lim)
        b = jax.random.uniform(kb, (fan_out,), jnp.float32, -lim, lim)
        return w, b

    p = {}
    p['w_mu_fc1'], p['b_mu_fc1'] = lin(ks[0], E, H)
    p['w_mu_fc'], p['b_mu_fc'] = lin(ks[1], H, E)
    p['ln_gamma'] = jnp.ones((E,), jnp.float32)
    p['ln_beta'] = jnp.zeros((E,), jnp.float32)
    p['w_op_lat'], p['b_op_lat'] = lin(ks[2], E, LAT)
    p['w_op_lon'], p['b_op_lon'] = lin(ks[3], E, LON)
    # mapping: xavier_uniform(gain=1.414) on (in_length_stu, out_length, lat+lon)
    lim = 1.414 * float(np.sqrt(6.0 / (T_OUT * C + T_IN * C)))
    p['mapping'] = jax.random.uniform(ks[4], (T_IN, T_OUT, C), jnp.float32, -lim, lim)
    # Decoder_stu
    w_dl, p['b_dl'] = lin(ks[5], E + C, E)          # dec_linear: (E+lat+lon) -> E
    p['w_dl_x'] = w_dl[:E]
    p['w_dl_lat'] = w_dl[E:E + LAT]
    p['w_dl_lon'] = w_dl[E + LAT:]
    lim_g = 1.0 / float(np.sqrt(E))
    kih, khh, kbi, kbh = jax.random.split(ks[6], 4)
    p['w_ih'] = jax.random.uniform(kih, (E, G), jnp.float32, -lim_g, lim_g)
    p['w_hh'] = jax.random.uniform(khh, (E, G), jnp.float32, -lim_g, lim_g)
    p['b_ih'] = jax.random.uniform(kbi, (G,), jnp.float32, -lim_g, lim_g)
    p['b_hh'] = jax.random.uniform(kbh, (G,), jnp.float32, -lim_g, lim_g)
    p['w_l1'], p['b_l1'] = lin(ks[7], E, 5)         # linear1 (use_mse=False -> 5)
    # TODO(synk): `manmapping` parameter is unused in the forward pass; not materialized.

    # ---- kernel-side packed/folded forms, built ONCE (not per forward call) ----
    p['mapping_oic'] = jnp.transpose(p['mapping'], (1, 0, 2))   # (T_OUT, T_IN, C)
    # exact dec_linear -> GRU-input fold (no nonlinearity between them)
    w_gi_x = p['w_dl_x'] @ p['w_ih']                                       # (E, G)
    w_gi_enc = jnp.concatenate([p['w_dl_lat'], p['w_dl_lon']], 0) @ p['w_ih']   # (C, G)
    b_gi = p['b_dl'] @ p['w_ih'] + p['b_ih']                               # (G,)

    wp = jnp.zeros((PACK_ROWS, PACK_COLS), jnp.float32)
    wp = wp.at[R_W1:R_W1 + E, 0:H].set(p['w_mu_fc1'])
    wp = wp.at[R_W2:R_W2 + H, 0:E].set(p['w_mu_fc'])
    wp = wp.at[R_WOP:R_WOP + E, 0:LAT].set(p['w_op_lat'])
    wp = wp.at[R_WOP:R_WOP + E, LAT:C].set(p['w_op_lon'])
    wp = wp.at[R_WGIX:R_WGIX + E, 0:G].set(w_gi_x)
    wp = wp.at[R_WHH:R_WHH + E, 0:G].set(p['w_hh'])
    wp = wp.at[R_WGIE:R_WGIE + C, 0:G].set(w_gi_enc)
    wp = wp.at[R_WL1:R_WL1 + E, 0:5].set(p['w_l1'])        # lanes 5:128 stay zero
    wp = wp.at[RB_MU1, 0:H].set(p['b_mu_fc1'])
    wp = wp.at[RB_MU2, 0:E].set(p['b_mu_fc'])
    wp = wp.at[RB_GAMMA, 0:E].set(p['ln_gamma'])
    wp = wp.at[RB_BETA, 0:E].set(p['ln_beta'])
    wp = wp.at[RB_GI, 0:G].set(b_gi)
    wp = wp.at[RB_HH, 0:G].set(p['b_hh'])
    wp = wp.at[RB_OP, 0:LAT].set(p['b_op_lat'])
    wp = wp.at[RB_OP, LAT:C].set(p['b_op_lon'])
    wp = wp.at[RB_L1, 0:5].set(p['b_l1'])                  # lanes 5:128 stay zero
    p['wpack'] = wp
    return p


# --------------------------- pure-JAX reference ------------------------------
def reference_forward(p, values, lat_enc, lon_enc):
    x = values[:, -1, :]
    h1 = _leaky(x @ p['w_mu_fc1'] + p['b_mu_fc1'])
    h2 = h1 @ p['w_mu_fc'] + p['b_mu_fc']
    mean = jnp.mean(h2, -1, keepdims=True)
    var = jnp.mean((h2 - mean) ** 2, -1, keepdims=True)
    ln = (h2 - mean) / jnp.sqrt(var + LN_EPS) * p['ln_gamma'] + p['ln_beta']
    m = _leaky(ln)
    lat_pred = jax.nn.softmax(m @ p['w_op_lat'] + p['b_op_lat'], axis=-1)
    lon_pred = jax.nn.softmax(m @ p['w_op_lon'] + p['b_op_lon'], axis=-1)
    lat_man = jax.nn.one_hot(jnp.argmax(lat_pred, -1), LAT, dtype=jnp.float32)
    lon_man = jax.nn.one_hot(jnp.argmax(lon_pred, -1), LON, dtype=jnp.float32)
    index = jnp.concatenate([lat_man, lon_man], -1)
    logits = jnp.einsum('ioc,bc->boi', p['mapping'], index)
    w = jax.nn.softmax(logits, axis=-1)
    dec = jnp.einsum('boi,bie->boe', w, values)
    dec = jnp.transpose(dec, (1, 0, 2))                                # (T_OUT, B, E)
    latr = jnp.broadcast_to(lat_enc[None], (T_OUT,) + lat_enc.shape)
    lonr = jnp.broadcast_to(lon_enc[None], (T_OUT,) + lon_enc.shape)
    cat = jnp.concatenate([dec, latr, lonr], -1)
    w_dl = jnp.concatenate([p['w_dl_x'], p['w_dl_lat'], p['w_dl_lon']], 0)
    x_all = cat @ w_dl + p['b_dl']
    h = jnp.zeros((values.shape[0], E), jnp.float32)
    hs = []
    for t in range(T_OUT):
        gi = x_all[t] @ p['w_ih'] + p['b_ih']
        gh = h @ p['w_hh'] + p['b_hh']
        r = jax.nn.sigmoid(gi[:, :E] + gh[:, :E])
        z = jax.nn.sigmoid(gi[:, E:2 * E] + gh[:, E:2 * E])
        n = jnp.tanh(gi[:, 2 * E:] + r * gh[:, 2 * E:])
        h = (1 - z) * n + z * h
        hs.append(h)
    h_all = jnp.stack(hs, 0)
    fut = h_all @ p['w_l1'] + p['b_l1']
    fut = jnp.concatenate([fut[..., 0:2], jnp.exp(fut[..., 2:4]), jnp.tanh(fut[..., 4:5])], -1)
    return fut, lat_pred, lon_pred


# ----------------------------------- main ------------------------------------
if __name__ == "__main__":
    key = jax.random.PRNGKey(0)
    kp, kv, kl, ko = jax.random.split(key, 4)
    params = init_params(kp)

    values = jax.random.normal(kv, (B, T_IN, E), jnp.float32)
    lat_enc = jax.nn.one_hot(jax.random.randint(kl, (B,), 0, LAT), LAT, dtype=jnp.float32)
    lon_enc = jax.nn.one_hot(jax.random.randint(ko, (B,), 0, LON), LON, dtype=jnp.float32)

    fut_pred, lat_pred, lon_pred = generator_stu_forward(params, values, lat_enc, lon_enc)
    jax.block_until_ready((fut_pred, lat_pred, lon_pred))

    ref_fut, ref_lat, ref_lon = reference_forward(params, values, lat_enc, lon_enc)
    # Exact softmax in-kernel; remaining diffs are only f32 matmul reassociation
    # from the (mathematically exact) dec_linear -> GRU-input fold.
    np.testing.assert_allclose(np.asarray(lat_pred), np.asarray(ref_lat), rtol=5e-4, atol=1e-5)
    np.testing.assert_allclose(np.asarray(lon_pred), np.asarray(ref_lon), rtol=5e-4, atol=1e-5)
    np.testing.assert_allclose(np.asarray(fut_pred), np.asarray(ref_fut), rtol=5e-4, atol=1e-5)

    print("KERNEL_OK")
</pallas_src>

<mosaic_0001>
module attributes {stable_mosaic.version = 11 : i64} {
  func.func @_generator_kernel(%arg0: memref<8x8x32xf32, #tpu.memory_space<vmem>>, %arg1: memref<8x5xf32, #tpu.memory_space<vmem>>, %arg2: memref<208x128xf32, #tpu.memory_space<vmem>>, %arg3: memref<5x8x5xf32, #tpu.memory_space<vmem>>, %arg4: memref<48x128xf32, #tpu.memory_space<vmem>>, %arg5: memref<40x32xf32, #tpu.memory_space<vmem>>) attributes {dimension_semantics = [], scalar_prefetch = 0 : i64, scratch_operands = 1 : i64, tpu.core_type = #tpu.core_type<tc>} {
    %c0 = arith.constant 0 : index
    %c0_0 = arith.constant 0 : index
    %0 = vector.load %arg2[%c0, %c0_0] : memref<208x128xf32, #tpu.memory_space<vmem>>, vector<32x32xf32>
    %c32 = arith.constant 32 : index
    %c0_1 = arith.constant 0 : index
    %1 = vector.load %arg2[%c32, %c0_1] : memref<208x128xf32, #tpu.memory_space<vmem>>, vector<32x32xf32>
    %c64 = arith.constant 64 : index
    %c0_2 = arith.constant 0 : index
    %2 = vector.load %arg2[%c64, %c0_2] : memref<208x128xf32, #tpu.memory_space<vmem>>, vector<32x5xf32>
    %c96 = arith.constant 96 : index
    %c0_3 = arith.constant 0 : index
    %3 = vector.load %arg2[%c96, %c0_3] : memref<208x128xf32, #tpu.memory_space<vmem>>, vector<32x96xf32>
    %c128 = arith.constant 128 : index
    %c0_4 = arith.constant 0 : index
    %4 = vector.load %arg2[%c128, %c0_4] : memref<208x128xf32, #tpu.memory_space<vmem>>, vector<32x96xf32>
    %c160 = arith.constant 160 : index
    %c0_5 = arith.constant 0 : index
    %5 = vector.load %arg2[%c160, %c0_5] : memref<208x128xf32, #tpu.memory_space<vmem>>, vector<5x96xf32>
    %c168 = arith.constant 168 : index
    %c0_6 = arith.constant 0 : index
    %6 = vector.load %arg2[%c168, %c0_6] : memref<208x128xf32, #tpu.memory_space<vmem>>, vector<32x128xf32>
    %c200 = arith.constant 200 : index
    %c0_7 = arith.constant 0 : index
    %7 = vector.load %arg2[%c200, %c0_7] : memref<208x128xf32, #tpu.memory_space<vmem>>, vector<1x32xf32>
    %c201 = arith.constant 201 : index
    %c0_8 = arith.constant 0 : index
    %8 = vector.load %arg2[%c201, %c0_8] : memref<208x128xf32, #tpu.memory_space<vmem>>, vector<1x32xf32>
    %c202 = arith.constant 202 : index
    %c0_9 = arith.constant 0 : index
    %9 = vector.load %arg2[%c202, %c0_9] : memref<208x128xf32, #tpu.memory_space<vmem>>, vector<1x32xf32>
    %c203 = arith.constant 203 : index
    %c0_10 = arith.constant 0 : index
    %10 = vector.load %arg2[%c203, %c0_10] : memref<208x128xf32, #tpu.memory_space<vmem>>, vector<1x32xf32>
    %c204 = arith.constant 204 : index
    %c0_11 = arith.constant 0 : index
    %11 = vector.load %arg2[%c204, %c0_11] : memref<208x128xf32, #tpu.memory_space<vmem>>, vector<1x96xf32>
    %c205 = arith.constant 205 : index
    %c0_12 = arith.constant 0 : index
    %12 = vector.load %arg2[%c205, %c0_12] : memref<208x128xf32, #tpu.memory_space<vmem>>, vector<1x96xf32>
    %c206 = arith.constant 206 : index
    %c0_13 = arith.constant 0 : index
    %13 = vector.load %arg2[%c206, %c0_13] : memref<208x128xf32, #tpu.memory_space<vmem>>, vector<1x5xf32>
    %c207 = arith.constant 207 : index
    %c0_14 = arith.constant 0 : index
    %14 = vector.load %arg2[%c207, %c0_14] : memref<208x128xf32, #tpu.memory_space<vmem>>, vector<1x128xf32>
    %c0_15 = arith.constant 0 : index
    %c0_16 = arith.constant 0 : index
    %c0_17 = arith.constant 0 : index
    %15 = vector.load %arg0[%c0_15, %c0_16, %c0_17] : memref<8x8x32xf32, #tpu.memory_space<vmem>>, vector<8x8x32xf32>
    %c0_18 = arith.constant 0 : index
    %c0_19 = arith.constant 0 : index
    %16 = vector.load %arg1[%c0_18, %c0_19] : memref<8x5xf32, #tpu.memory_space<vmem>>, vector<8x5xf32>
    %17 = vector.extract_strided_slice %15 {offsets = [0, 7, 0], sizes = [8, 1, 32], strides = [1, 1, 1]} : vector<8x8x32xf32> to vector<8x1x32xf32>
    %18 = vector.shape_cast %17 : vector<8x1x32xf32> to vector<8x32xf32>
    %cst = arith.constant dense<0.000000e+00> : vector<8x32xf32>
    %19 = tpu.matmul %18, %0, %cst {dimension_numbers = #tpu.dot_dimension_numbers<[1], [0], [0], [1], [0, 0, 1, 1], [], []>} : vector<8x32xf32>, vector<32x32xf32>, vector<8x32xf32> -> vector<8x32xf32>
    %20 = vector.broadcast %7 : vector<1x32xf32> to vector<8x32xf32>
    %21 = arith.addf %19, %20 : vector<8x32xf32>
    %cst_20 = arith.constant 1.000000e-01 : f32
    %22 = vector.broadcast %cst_20 : f32 to vector<8x32xf32>
    %23 = arith.mulf %22, %21 : vector<8x32xf32>
    %24 = arith.maximumf %21, %23 : vector<8x32xf32>
    %cst_21 = arith.constant dense<0.000000e+00> : vector<8x32xf32>
    %25 = tpu.matmul %24, %1, %cst_21 {dimension_numbers = #tpu.dot_dimension_numbers<[1], [0], [0], [1], [0, 0, 1, 1], [], []>} : vector<8x32xf32>, vector<32x32xf32>, vector<8x32xf32> -> vector<8x32xf32>
    %26 = vector.broadcast %8 : vector<1x32xf32> to vector<8x32xf32>
    %27 = arith.addf %25, %26 : vector<8x32xf32>
    %cst_22 = arith.constant dense<0.000000e+00> : vector<8xf32>
    %28 = vector.multi_reduction <add>, %27, %cst_22 [1] : vector<8x32xf32> to vector<8xf32>
    %29 = vector.shape_cast %28 : vector<8xf32> to vector<8x1xf32>
    %cst_23 = arith.constant 3.200000e+01 : f32
    %30 = vector.broadcast %cst_23 : f32 to vector<8x1xf32>
    %31 = arith.divf %29, %30 : vector<8x1xf32>
    %32 = vector.broadcast %31 : vector<8x1xf32> to vector<8x32xf32>
    %33 = arith.subf %27, %32 : vector<8x32xf32>
    %34 = arith.mulf %33, %33 : vector<8x32xf32>
    %cst_24 = arith.constant dense<0.000000e+00> : vector<8xf32>
    %35 = vector.multi_reduction <add>, %34, %cst_24 [1] : vector<8x32xf32> to vector<8xf32>
    %36 = vector.shape_cast %35 : vector<8xf32> to vector<8x1xf32>
    %cst_25 = arith.constant 3.200000e+01 : f32
    %37 = vector.broadcast %cst_25 : f32 to vector<8x1xf32>
    %38 = arith.divf %36, %37 : vector<8x1xf32>
    %39 = vector.broadcast %31 : vector<8x1xf32> to vector<8x32xf32>
    %40 = arith.subf %27, %39 : vector<8x32xf32>
    %cst_26 = arith.constant 9.99999974E-6 : f32
    %41 = vector.broadcast %cst_26 : f32 to vector<8x1xf32>
    %42 = arith.addf %38, %41 : vector<8x1xf32>
    %43 = math.rsqrt %42 : vector<8x1xf32>
    %44 = vector.broadcast %43 : vector<8x1xf32> to vector<8x32xf32>
    %45 = arith.mulf %40, %44 : vector<8x32xf32>
    %46 = vector.broadcast %9 : vector<1x32xf32> to vector<8x32xf32>
    %47 = arith.mulf %45, %46 : vector<8x32xf32>
    %48 = vector.broadcast %10 : vector<1x32xf32> to vector<8x32xf32>
    %49 = arith.addf %47, %48 : vector<8x32xf32>
    %cst_27 = arith.constant 1.000000e-01 : f32
    %50 = vector.broadcast %cst_27 : f32 to vector<8x32xf32>
    %51 = arith.mulf %50, %49 : vector<8x32xf32>
    %52 = arith.maximumf %49, %51 : vector<8x32xf32>
    %cst_28 = arith.constant dense<0.000000e+00> : vector<8x5xf32>
    %53 = tpu.matmul %52, %2, %cst_28 {dimension_numbers = #tpu.dot_dimension_numbers<[1], [0], [0], [1], [0, 0, 1, 1], [], []>} : vector<8x32xf32>, vector<32x5xf32>, vector<8x5xf32> -> vector<8x5xf32>
    %54 = vector.broadcast %13 : vector<1x5xf32> to vector<8x5xf32>
    %55 = arith.addf %53, %54 : vector<8x5xf32>
    %56 = vector.extract_strided_slice %55 {offsets = [0, 0], sizes = [8, 3], strides = [1, 1]} : vector<8x5xf32> to vector<8x3xf32>
    %57 = vector.extract_strided_slice %55 {offsets = [0, 3], sizes = [8, 2], strides = [1, 1]} : vector<8x5xf32> to vector<8x2xf32>
    %cst_29 = arith.constant dense<0xFF800000> : vector<8xf32>
    %58 = vector.multi_reduction <maximumf>, %56, %cst_29 [1] : vector<8x3xf32> to vector<8xf32>
    %59 = vector.shape_cast %58 : vector<8xf32> to vector<8x1xf32>
    %60 = vector.broadcast %59 : vector<8x1xf32> to vector<8x3xf32>
    %61 = arith.subf %56, %60 : vector<8x3xf32>
    %62 = math.exp %61 : vector<8x3xf32>
    %cst_30 = arith.constant dense<0.000000e+00> : vector<8xf32>
    %63 = vector.multi_reduction <add>, %62, %cst_30 [1] : vector<8x3xf32> to vector<8xf32>
    %64 = vector.shape_cast %63 : vector<8xf32> to vector<8x1xf32>
    %65 = vector.broadcast %64 : vector<8x1xf32> to vector<8x3xf32>
    %66 = arith.divf %62, %65 : vector<8x3xf32>
    %cst_31 = arith.constant dense<0xFF800000> : vector<8xf32>
    %67 = vector.multi_reduction <maximumf>, %57, %cst_31 [1] : vector<8x2xf32> to vector<8xf32>
    %68 = vector.shape_cast %67 : vector<8xf32> to vector<8x1xf32>
    %69 = vector.broadcast %68 : vector<8x1xf32> to vector<8x2xf32>
    %70 = arith.subf %57, %69 : vector<8x2xf32>
    %71 = math.exp %70 : vector<8x2xf32>
    %cst_32 = arith.constant dense<0.000000e+00> : vector<8xf32>
    %72 = vector.multi_reduction <add>, %71, %cst_32 [1] : vector<8x2xf32> to vector<8xf32>
    %73 = vector.shape_cast %72 : vector<8xf32> to vector<8x1xf32>
    %74 = vector.broadcast %73 : vector<8x1xf32> to vector<8x2xf32>
    %75 = arith.divf %71, %74 : vector<8x2xf32>
    %76 = tpu.iota {dimensions = array<i32: 1>} : vector<8x3xi32>
    %cst_33 = arith.constant dense<0xFF800000> : vector<8xf32>
    %77 = vector.multi_reduction <maximumf>, %56, %cst_33 [1] : vector<8x3xf32> to vector<8xf32>
    %78 = vector.shape_cast %77 : vector<8xf32> to vector<8x1xf32>
    %79 = vector.broadcast %78 : vector<8x1xf32> to vector<8x3xf32>
    %80 = arith.cmpf oeq, %56, %79 : vector<8x3xf32>
    %c3_i32 = arith.constant 3 : i32
    %81 = vector.broadcast %c3_i32 : i32 to vector<8x3xi32>
    %82 = arith.select %80, %76, %81 : vector<8x3xi1>, vector<8x3xi32>
    %cst_34 = arith.constant dense<2147483647> : vector<8xi32>
    %83 = vector.multi_reduction <minsi>, %82, %cst_34 [1] : vector<8x3xi32> to vector<8xi32>
    %84 = vector.shape_cast %83 : vector<8xi32> to vector<8x1xi32>
    %85 = vector.broadcast %84 : vector<8x1xi32> to vector<8x3xi32>
    %86 = arith.cmpi eq, %76, %85 : vector<8x3xi32>
    %87 = arith.extui %86 : vector<8x3xi1> to vector<8x3xi32>
    %88 = arith.sitofp %87 : vector<8x3xi32> to vector<8x3xf32>
    %89 = tpu.iota {dimensions = array<i32: 1>} : vector<8x2xi32>
    %cst_35 = arith.constant dense<0xFF800000> : vector<8xf32>
    %90 = vector.multi_reduction <maximumf>, %57, %cst_35 [1] : vector<8x2xf32> to vector<8xf32>
    %91 = vector.shape_cast %90 : vector<8xf32> to vector<8x1xf32>
    %92 = vector.broadcast %91 : vector<8x1xf32> to vector<8x2xf32>
    %93 = arith.cmpf oeq, %57, %92 : vector<8x2xf32>
    %c2_i32 = arith.constant 2 : i32
    %94 = vector.broadcast %c2_i32 : i32 to vector<8x2xi32>
    %95 = arith.select %93, %89, %94 : vector<8x2xi1>, vector<8x2xi32>
    %cst_36 = arith.constant dense<2147483647> : vector<8xi32>
    %96 = vector.multi_reduction <minsi>, %95, %cst_36 [1] : vector<8x2xi32> to vector<8xi32>
    %97 = vector.shape_cast %96 : vector<8xi32> to vector<8x1xi32>
    %98 = vector.broadcast %97 : vector<8x1xi32> to vector<8x2xi32>
    %99 = arith.cmpi eq, %89, %98 : vector<8x2xi32>
    %100 = arith.extui %99 : vector<8x2xi1> to vector<8x2xi32>
    %101 = arith.sitofp %100 : vector<8x2xi32> to vector<8x2xf32>
    %102 = tpu.concatenate %88, %101 in 1 : vector<8x3xf32>, vector<8x2xf32> -> vector<8x5xf32>
    %c0_37 = arith.constant 0 : index
    %c0_38 = arith.constant 0 : index
    %c0_39 = arith.constant 0 : index
    %103 = vector.load %arg3[%c0_37, %c0_38, %c0_39] : memref<5x8x5xf32, #tpu.memory_space<vmem>>, vector<5x8x5xf32>
    %cst_40 = arith.constant dense<0.000000e+00> : vector<8x5x8xf32>
    %104 = tpu.matmul %102, %103, %cst_40 {dimension_numbers = #tpu.dot_dimension_numbers<[1], [2], [0], [0, 1], [0, 0, 1, 0, 1, 1], [], []>} : vector<8x5xf32>, vector<5x8x5xf32>, vector<8x5x8xf32> -> vector<8x5x8xf32>
    %cst_41 = arith.constant dense<0xFF800000> : vector<8x5xf32>
    %105 = vector.multi_reduction <maximumf>, %104, %cst_41 [2] : vector<8x5x8xf32> to vector<8x5xf32>
    %106 = vector.shape_cast %105 : vector<8x5xf32> to vector<8x5x1xf32>
    %107 = vector.broadcast %106 : vector<8x5x1xf32> to vector<8x5x8xf32>
    %108 = arith.subf %104, %107 : vector<8x5x8xf32>
    %109 = math.exp %108 : vector<8x5x8xf32>
    %cst_42 = arith.constant dense<0.000000e+00> : vector<8x5xf32>
    %110 = vector.multi_reduction <add>, %109, %cst_42 [2] : vector<8x5x8xf32> to vector<8x5xf32>
    %111 = vector.shape_cast %110 : vector<8x5xf32> to vector<8x5x1xf32>
    %112 = vector.broadcast %111 : vector<8x5x1xf32> to vector<8x5x8xf32>
    %113 = arith.divf %109, %112 : vector<8x5x8xf32>
    %cst_43 = arith.constant dense<0.000000e+00> : vector<8x8x96xf32>
    %114 = tpu.matmul %15, %3, %cst_43 {dimension_numbers = #tpu.dot_dimension_numbers<[2], [0], [0, 1], [1], [0, 0, 0, 1, 1, 1], [], []>} : vector<8x8x32xf32>, vector<32x96xf32>, vector<8x8x96xf32> -> vector<8x8x96xf32>
    %cst_44 = arith.constant dense<0.000000e+00> : vector<8x5x96xf32>
    %115 = tpu.matmul %113, %114, %cst_44 {dimension_numbers = #tpu.dot_dimension_numbers<[2], [1], [1], [2], [0, 0, 0, 1, 1, 2], [0], [0]>} : vector<8x5x8xf32>, vector<8x8x96xf32>, vector<8x5x96xf32> -> vector<8x5x96xf32>
    %cst_45 = arith.constant dense<0.000000e+00> : vector<8x96xf32>
    %116 = tpu.matmul %16, %5, %cst_45 {dimension_numbers = #tpu.dot_dimension_numbers<[1], [0], [0], [1], [0, 0, 1, 1], [], []>} : vector<8x5xf32>, vector<5x96xf32>, vector<8x96xf32> -> vector<8x96xf32>
    %117 = vector.broadcast %11 : vector<1x96xf32> to vector<8x96xf32>
    %118 = arith.addf %116, %117 : vector<8x96xf32>
    %119 = vector.extract_strided_slice %115 {offsets = [0, 0, 0], sizes = [8, 1, 96], strides = [1, 1, 1]} : vector<8x5x96xf32> to vector<8x1x96xf32>
    %120 = vector.shape_cast %119 : vector<8x1x96xf32> to vector<8x96xf32>
    %121 = arith.addf %120, %118 : vector<8x96xf32>
    %122 = vector.extract_strided_slice %115 {offsets = [0, 1, 0], sizes = [8, 1, 96], strides = [1, 1, 1]} : vector<8x5x96xf32> to vector<8x1x96xf32>
    %123 = vector.shape_cast %122 : vector<8x1x96xf32> to vector<8x96xf32>
    %124 = arith.addf %123, %118 : vector<8x96xf32>
    %125 = vector.extract_strided_slice %115 {offsets = [0, 2, 0], sizes = [8, 1, 96], strides = [1, 1, 1]} : vector<8x5x96xf32> to vector<8x1x96xf32>
    %126 = vector.shape_cast %125 : vector<8x1x96xf32> to vector<8x96xf32>
    %127 = arith.addf %126, %118 : vector<8x96xf32>
    %128 = vector.extract_strided_slice %115 {offsets = [0, 3, 0], sizes = [8, 1, 96], strides = [1, 1, 1]} : vector<8x5x96xf32> to vector<8x1x96xf32>
    %129 = vector.shape_cast %128 : vector<8x1x96xf32> to vector<8x96xf32>
    %130 = arith.addf %129, %118 : vector<8x96xf32>
    %131 = vector.extract_strided_slice %115 {offsets = [0, 4, 0], sizes = [8, 1, 96], strides = [1, 1, 1]} : vector<8x5x96xf32> to vector<8x1x96xf32>
    %132 = vector.shape_cast %131 : vector<8x1x96xf32> to vector<8x96xf32>
    %133 = arith.addf %132, %118 : vector<8x96xf32>
    %134 = vector.shape_cast %12 : vector<1x96xf32> to vector<1x96xf32>
    %135 = vector.broadcast %134 : vector<1x96xf32> to vector<8x96xf32>
    %cst_46 = arith.constant 0.000000e+00 : f32
    %136 = vector.broadcast %cst_46 : f32 to vector<8x32xf32>
    %cst_47 = arith.constant dense<0.000000e+00> : vector<8x96xf32>
    %137 = tpu.matmul %136, %4, %cst_47 {dimension_numbers = #tpu.dot_dimension_numbers<[1], [0], [0], [1], [0, 0, 1, 1], [], []>} : vector<8x32xf32>, vector<32x96xf32>, vector<8x96xf32> -> vector<8x96xf32>
    %138 = arith.addf %137, %135 : vector<8x96xf32>
    %139 = vector.extract_strided_slice %121 {offsets = [0, 0], sizes = [8, 32], strides = [1, 1]} : vector<8x96xf32> to vector<8x32xf32>
    %140 = vector.extract_strided_slice %138 {offsets = [0, 0], sizes = [8, 32], strides = [1, 1]} : vector<8x96xf32> to vector<8x32xf32>
    %141 = arith.addf %139, %140 : vector<8x32xf32>
    %142 = arith.negf %141 : vector<8x32xf32>
    %143 = math.exp %142 : vector<8x32xf32>
    %cst_48 = arith.constant 1.000000e+00 : f32
    %144 = vector.broadcast %cst_48 : f32 to vector<8x32xf32>
    %145 = arith.addf %144, %143 : vector<8x32xf32>
    %146 = arith.divf %144, %145 : vector<8x32xf32>
    %147 = vector.extract_strided_slice %121 {offsets = [0, 32], sizes = [8, 32], strides = [1, 1]} : vector<8x96xf32> to vector<8x32xf32>
    %148 = vector.extract_strided_slice %138 {offsets = [0, 32], sizes = [8, 32], strides = [1, 1]} : vector<8x96xf32> to vector<8x32xf32>
    %149 = arith.addf %147, %148 : vector<8x32xf32>
    %150 = arith.negf %149 : vector<8x32xf32>
    %151 = math.exp %150 : vector<8x32xf32>
    %cst_49 = arith.constant 1.000000e+00 : f32
    %152 = vector.broadcast %cst_49 : f32 to vector<8x32xf32>
    %153 = arith.addf %152, %151 : vector<8x32xf32>
    %154 = arith.divf %152, %153 : vector<8x32xf32>
    %155 = vector.extract_strided_slice %121 {offsets = [0, 64], sizes = [8, 32], strides = [1, 1]} : vector<8x96xf32> to vector<8x32xf32>
    %156 = vector.extract_strided_slice %138 {offsets = [0, 64], sizes = [8, 32], strides = [1, 1]} : vector<8x96xf32> to vector<8x32xf32>
    %157 = arith.mulf %146, %156 : vector<8x32xf32>
    %158 = arith.addf %155, %157 : vector<8x32xf32>
    %159 = math.tanh %158 : vector<8x32xf32>
    %cst_50 = arith.constant 1.000000e+00 : f32
    %160 = vector.broadcast %cst_50 : f32 to vector<8x32xf32>
    %161 = arith.subf %160, %154 : vector<8x32xf32>
    %162 = arith.mulf %161, %159 : vector<8x32xf32>
    %163 = arith.mulf %154, %136 : vector<8x32xf32>
    %164 = arith.addf %162, %163 : vector<8x32xf32>
    %c0_51 = arith.constant 0 : index
    %c0_52 = arith.constant 0 : index
    %165 = vector.load %arg5[%c0_51, %c0_52] : memref<40x32xf32, #tpu.memory_space<vmem>>, vector<8x32xf32>
    tpu.vector_store %arg5[%c0_51, %c0_52], %164 {strides = array<i32>} : memref<40x32xf32, #tpu.memory_space<vmem>>, vector<8x32xf32>,
    %cst_53 = arith.constant dense<0.000000e+00> : vector<8x96xf32>
    %166 = tpu.matmul %164, %4, %cst_53 {dimension_numbers = #tpu.dot_dimension_numbers<[1], [0], [0], [1], [0, 0, 1, 1], [], []>} : vector<8x32xf32>, vector<32x96xf32>, vector<8x96xf32> -> vector<8x96xf32>
    %167 = arith.addf %166, %135 : vector<8x96xf32>
    %168 = vector.extract_strided_slice %124 {offsets = [0, 0], sizes = [8, 32], strides = [1, 1]} : vector<8x96xf32> to vector<8x32xf32>
    %169 = vector.extract_strided_slice %167 {offsets = [0, 0], sizes = [8, 32], strides = [1, 1]} : vector<8x96xf32> to vector<8x32xf32>
    %170 = arith.addf %168, %169 : vector<8x32xf32>
    %171 = arith.negf %170 : vector<8x32xf32>
    %172 = math.exp %171 : vector<8x32xf32>
    %cst_54 = arith.constant 1.000000e+00 : f32
    %173 = vector.broadcast %cst_54 : f32 to vector<8x32xf32>
    %174 = arith.addf %173, %172 : vector<8x32xf32>
    %175 = arith.divf %173, %174 : vector<8x32xf32>
    %176 = vector.extract_strided_slice %124 {offsets = [0, 32], sizes = [8, 32], strides = [1, 1]} : vector<8x96xf32> to vector<8x32xf32>
    %177 = vector.extract_strided_slice %167 {offsets = [0, 32], sizes = [8, 32], strides = [1, 1]} : vector<8x96xf32> to vector<8x32xf32>
    %178 = arith.addf %176, %177 : vector<8x32xf32>
    %179 = arith.negf %178 : vector<8x32xf32>
    %180 = math.exp %179 : vector<8x32xf32>
    %cst_55 = arith.constant 1.000000e+00 : f32
    %181 = vector.broadcast %cst_55 : f32 to vector<8x32xf32>
    %182 = arith.addf %181, %180 : vector<8x32xf32>
    %183 = arith.divf %181, %182 : vector<8x32xf32>
    %184 = vector.extract_strided_slice %124 {offsets = [0, 64], sizes = [8, 32], strides = [1, 1]} : vector<8x96xf32> to vector<8x32xf32>
    %185 = vector.extract_strided_slice %167 {offsets = [0, 64], sizes = [8, 32], strides = [1, 1]} : vector<8x96xf32> to vector<8x32xf32>
    %186 = arith.mulf %175, %185 : vector<8x32xf32>
    %187 = arith.addf %184, %186 : vector<8x32xf32>
    %188 = math.tanh %187 : vector<8x32xf32>
    %cst_56 = arith.constant 1.000000e+00 : f32
    %189 = vector.broadcast %cst_56 : f32 to vector<8x32xf32>
    %190 = arith.subf %189, %183 : vector<8x32xf32>
    %191 = arith.mulf %190, %188 : vector<8x32xf32>
    %192 = arith.mulf %183, %164 : vector<8x32xf32>
    %193 = arith.addf %191, %192 : vector<8x32xf32>
    %c8 = arith.constant 8 : index
    %c0_57 = arith.constant 0 : index
    %194 = vector.load %arg5[%c8, %c0_57] : memref<40x32xf32, #tpu.memory_space<vmem>>, vector<8x32xf32>
    tpu.vector_store %arg5[%c8, %c0_57], %193 {strides = array<i32>} : memref<40x32xf32, #tpu.memory_space<vmem>>, vector<8x32xf32>,
    %cst_58 = arith.constant dense<0.000000e+00> : vector<8x96xf32>
    %195 = tpu.matmul %193, %4, %cst_58 {dimension_numbers = #tpu.dot_dimension_numbers<[1], [0], [0], [1], [0, 0, 1, 1], [], []>} : vector<8x32xf32>, vector<32x96xf32>, vector<8x96xf32> -> vector<8x96xf32>
    %196 = arith.addf %195, %135 : vector<8x96xf32>
    %197 = vector.extract_strided_slice %127 {offsets = [0, 0], sizes = [8, 32], strides = [1, 1]} : vector<8x96xf32> to vector<8x32xf32>
    %198 = vector.extract_strided_slice %196 {offsets = [0, 0], sizes = [8, 32], strides = [1, 1]} : vector<8x96xf32> to vector<8x32xf32>
    %199 = arith.addf %197, %198 : vector<8x32xf32>
    %200 = arith.negf %199 : vector<8x32xf32>
    %201 = math.exp %200 : vector<8x32xf32>
    %cst_59 = arith.constant 1.000000e+00 : f32
    %202 = vector.broadcast %cst_59 : f32 to vector<8x32xf32>
    %203 = arith.addf %202, %201 : vector<8x32xf32>
    %204 = arith.divf %202, %203 : vector<8x32xf32>
    %205 = vector.extract_strided_slice %127 {offsets = [0, 32], sizes = [8, 32], strides = [1, 1]} : vector<8x96xf32> to vector<8x32xf32>
    %206 = vector.extract_strided_slice %196 {offsets = [0, 32], sizes = [8, 32], strides = [1, 1]} : vector<8x96xf32> to vector<8x32xf32>
    %207 = arith.addf %205, %206 : vector<8x32xf32>
    %208 = arith.negf %207 : vector<8x32xf32>
    %209 = math.exp %208 : vector<8x32xf32>
    %cst_60 = arith.constant 1.000000e+00 : f32
    %210 = vector.broadcast %cst_60 : f32 to vector<8x32xf32>
    %211 = arith.addf %210, %209 : vector<8x32xf32>
    %212 = arith.divf %210, %211 : vector<8x32xf32>
    %213 = vector.extract_strided_slice %127 {offsets = [0, 64], sizes = [8, 32], strides = [1, 1]} : vector<8x96xf32> to vector<8x32xf32>
    %214 = vector.extract_strided_slice %196 {offsets = [0, 64], sizes = [8, 32], strides = [1, 1]} : vector<8x96xf32> to vector<8x32xf32>
    %215 = arith.mulf %204, %214 : vector<8x32xf32>
    %216 = arith.addf %213, %215 : vector<8x32xf32>
    %217 = math.tanh %216 : vector<8x32xf32>
    %cst_61 = arith.constant 1.000000e+00 : f32
    %218 = vector.broadcast %cst_61 : f32 to vector<8x32xf32>
    %219 = arith.subf %218, %212 : vector<8x32xf32>
    %220 = arith.mulf %219, %217 : vector<8x32xf32>
    %221 = arith.mulf %212, %193 : vector<8x32xf32>
    %222 = arith.addf %220, %221 : vector<8x32xf32>
    %c16 = arith.constant 16 : index
    %c0_62 = arith.constant 0 : index
    %223 = vector.load %arg5[%c16, %c0_62] : memref<40x32xf32, #tpu.memory_space<vmem>>, vector<8x32xf32>
    tpu.vector_store %arg5[%c16, %c0_62], %222 {strides = array<i32>} : memref<40x32xf32, #tpu.memory_space<vmem>>, vector<8x32xf32>,
    %cst_63 = arith.constant dense<0.000000e+00> : vector<8x96xf32>
    %224 = tpu.matmul %222, %4, %cst_63 {dimension_numbers = #tpu.dot_dimension_numbers<[1], [0], [0], [1], [0, 0, 1, 1], [], []>} : vector<8x32xf32>, vector<32x96xf32>, vector<8x96xf32> -> vector<8x96xf32>
    %225 = arith.addf %224, %135 : vector<8x96xf32>
    %226 = vector.extract_strided_slice %130 {offsets = [0, 0], sizes = [8, 32], strides = [1, 1]} : vector<8x96xf32> to vector<8x32xf32>
    %227 = vector.extract_strided_slice %225 {offsets = [0, 0], sizes = [8, 32], strides = [1, 1]} : vector<8x96xf32> to vector<8x32xf32>
    %228 = arith.addf %226, %227 : vector<8x32xf32>
    %229 = arith.negf %228 : vector<8x32xf32>
    %230 = math.exp %229 : vector<8x32xf32>
    %cst_64 = arith.constant 1.000000e+00 : f32
    %231 = vector.broadcast %cst_64 : f32 to vector<8x32xf32>
    %232 = arith.addf %231, %230 : vector<8x32xf32>
    %233 = arith.divf %231, %232 : vector<8x32xf32>
    %234 = vector.extract_strided_slice %130 {offsets = [0, 32], sizes = [8, 32], strides = [1, 1]} : vector<8x96xf32> to vector<8x32xf32>
    %235 = vector.extract_strided_slice %225 {offsets = [0, 32], sizes = [8, 32], strides = [1, 1]} : vector<8x96xf32> to vector<8x32xf32>
    %236 = arith.addf %234, %235 : vector<8x32xf32>
    %237 = arith.negf %236 : vector<8x32xf32>
    %238 = math.exp %237 : vector<8x32xf32>
    %cst_65 = arith.constant 1.000000e+00 : f32
    %239 = vector.broadcast %cst_65 : f32 to vector<8x32xf32>
    %240 = arith.addf %239, %238 : vector<8x32xf32>
    %241 = arith.divf %239, %240 : vector<8x32xf32>
    %242 = vector.extract_strided_slice %130 {offsets = [0, 64], sizes = [8, 32], strides = [1, 1]} : vector<8x96xf32> to vector<8x32xf32>
    %243 = vector.extract_strided_slice %225 {offsets = [0, 64], sizes = [8, 32], strides = [1, 1]} : vector<8x96xf32> to vector<8x32xf32>
    %244 = arith.mulf %233, %243 : vector<8x32xf32>
    %245 = arith.addf %242, %244 : vector<8x32xf32>
    %246 = math.tanh %245 : vector<8x32xf32>
    %cst_66 = arith.constant 1.000000e+00 : f32
    %247 = vector.broadcast %cst_66 : f32 to vector<8x32xf32>
    %248 = arith.subf %247, %241 : vector<8x32xf32>
    %249 = arith.mulf %248, %246 : vector<8x32xf32>
    %250 = arith.mulf %241, %222 : vector<8x32xf32>
    %251 = arith.addf %249, %250 : vector<8x32xf32>
    %c24 = arith.constant 24 : index
    %c0_67 = arith.constant 0 : index
    %252 = vector.load %arg5[%c24, %c0_67] : memref<40x32xf32, #tpu.memory_space<vmem>>, vector<8x32xf32>
    tpu.vector_store %arg5[%c24, %c0_67], %251 {strides = array<i32>} : memref<40x32xf32, #tpu.memory_space<vmem>>, vector<8x32xf32>,
    %cst_68 = arith.constant dense<0.000000e+00> : vector<8x96xf32>
    %253 = tpu.matmul %251, %4, %cst_68 {dimension_numbers = #tpu.dot_dimension_numbers<[1], [0], [0], [1], [0, 0, 1, 1], [], []>} : vector<8x32xf32>, vector<32x96xf32>, vector<8x96xf32> -> vector<8x96xf32>
    %254 = arith.addf %253, %135 : vector<8x96xf32>
    %255 = vector.extract_strided_slice %133 {offsets = [0, 0], sizes = [8, 32], strides = [1, 1]} : vector<8x96xf32> to vector<8x32xf32>
    %256 = vector.extract_strided_slice %254 {offsets = [0, 0], sizes = [8, 32], strides = [1, 1]} : vector<8x96xf32> to vector<8x32xf32>
    %257 = arith.addf %255, %256 : vector<8x32xf32>
    %258 = arith.negf %257 : vector<8x32xf32>
    %259 = math.exp %258 : vector<8x32xf32>
    %cst_69 = arith.constant 1.000000e+00 : f32
    %260 = vector.broadcast %cst_69 : f32 to vector<8x32xf32>
    %261 = arith.addf %260, %259 : vector<8x32xf32>
    %262 = arith.divf %260, %261 : vector<8x32xf32>
    %263 = vector.extract_strided_slice %133 {offsets = [0, 32], sizes = [8, 32], strides = [1, 1]} : vector<8x96xf32> to vector<8x32xf32>
    %264 = vector.extract_strided_slice %254 {offsets = [0, 32], sizes = [8, 32], strides = [1, 1]} : vector<8x96xf32> to vector<8x32xf32>
    %265 = arith.addf %263, %264 : vector<8x32xf32>
    %266 = arith.negf %265 : vector<8x32xf32>
    %267 = math.exp %266 : vector<8x32xf32>
    %cst_70 = arith.constant 1.000000e+00 : f32
    %268 = vector.broadcast %cst_70 : f32 to vector<8x32xf32>
    %269 = arith.addf %268, %267 : vector<8x32xf32>
    %270 = arith.divf %268, %269 : vector<8x32xf32>
    %271 = vector.extract_strided_slice %133 {offsets = [0, 64], sizes = [8, 32], strides = [1, 1]} : vector<8x96xf32> to vector<8x32xf32>
    %272 = vector.extract_strided_slice %254 {offsets = [0, 64], sizes = [8, 32], strides = [1, 1]} : vector<8x96xf32> to vector<8x32xf32>
    %273 = arith.mulf %262, %272 : vector<8x32xf32>
    %274 = arith.addf %271, %273 : vector<8x32xf32>
    %275 = math.tanh %274 : vector<8x32xf32>
    %cst_71 = arith.constant 1.000000e+00 : f32
    %276 = vector.broadcast %cst_71 : f32 to vector<8x32xf32>
    %277 = arith.subf %276, %270 : vector<8x32xf32>
    %278 = arith.mulf %277, %275 : vector<8x32xf32>
    %279 = arith.mulf %270, %251 : vector<8x32xf32>
    %280 = arith.addf %278, %279 : vector<8x32xf32>
    %c32_72 = arith.constant 32 : index
    %c0_73 = arith.constant 0 : index
    %281 = vector.load %arg5[%c32_72, %c0_73] : memref<40x32xf32, #tpu.memory_space<vmem>>, vector<8x32xf32>
    tpu.vector_store %arg5[%c32_72, %c0_73], %280 {strides = array<i32>} : memref<40x32xf32, #tpu.memory_space<vmem>>, vector<8x32xf32>,
    %c0_74 = arith.constant 0 : index
    %c0_75 = arith.constant 0 : index
    %282 = vector.load %arg5[%c0_74, %c0_75] : memref<40x32xf32, #tpu.memory_space<vmem>>, vector<40x32xf32>
    %cst_76 = arith.constant dense<0.000000e+00> : vector<40x128xf32>
    %283 = tpu.matmul %282, %6, %cst_76 {dimension_numbers = #tpu.dot_dimension_numbers<[1], [0], [0], [1], [0, 0, 1, 1], [], []>} : vector<40x32xf32>, vector<32x128xf32>, vector<40x128xf32> -> vector<40x128xf32>
    %284 = vector.broadcast %14 : vector<1x128xf32> to vector<40x128xf32>
    %285 = arith.addf %283, %284 : vector<40x128xf32>
    %286 = tpu.iota {dimensions = array<i32: 1>} : vector<40x128xi32>
    %c2_i32_77 = arith.constant 2 : i32
    %287 = vector.broadcast %c2_i32_77 : i32 to vector<40x128xi32>
    %288 = arith.cmpi slt, %286, %287 : vector<40x128xi32>
    %c4_i32 = arith.constant 4 : i32
    %289 = vector.broadcast %c4_i32 : i32 to vector<40x128xi32>
    %290 = arith.cmpi slt, %286, %289 : vector<40x128xi32>
    %291 = math.exp %285 : vector<40x128xf32>
    %292 = math.tanh %285 : vector<40x128xf32>
    %293 = arith.select %290, %291, %292 : vector<40x128xi1>, vector<40x128xf32>
    %294 = arith.select %288, %285, %293 : vector<40x128xi1>, vector<40x128xf32>
    %c0_78 = arith.constant 0 : index
    %c0_79 = arith.constant 0 : index
    %295 = vector.load %arg4[%c0_78, %c0_79] : memref<48x128xf32, #tpu.memory_space<vmem>>, vector<40x128xf32>
    tpu.vector_store %arg4[%c0_78, %c0_79], %294 {strides = array<i32>} : memref<48x128xf32, #tpu.memory_space<vmem>>, vector<40x128xf32>,
    %cst_80 = arith.constant 0.000000e+00 : f32
    %296 = vector.broadcast %cst_80 : f32 to vector<8x123xf32>
    %297 = tpu.concatenate %66, %75, %296 in 1 : vector<8x3xf32>, vector<8x2xf32>, vector<8x123xf32> -> vector<8x128xf32>
    %c40 = arith.constant 40 : index
    %c0_81 = arith.constant 0 : index
    %298 = vector.load %arg4[%c40, %c0_81] : memref<48x128xf32, #tpu.memory_space<vmem>>, vector<8x128xf32>
    tpu.vector_store %arg4[%c40, %c0_81], %297 {strides = array<i32>} : memref<48x128xf32, #tpu.memory_space<vmem>>, vector<8x128xf32>,
    return
  }
}

</mosaic_0001>

<llo_original>
// kernel: generator_stu_forward.1
$region0: #{generator_stu_forward.1}
  #allocation0 [shape = 'u32[]', space=smem, size = 0x4, offset = 0x4, fixed_abs, tag = 'smem constant byte address 0x4 - core index']
  #allocation1 [shape = 'u32[144,128]{1,0:T(1,128)}', space=vmem, size = 0x12000, scoped, tag = 'internal scratch']
  #allocation2 [shape = 'f32[40,32]{1,0:T(8,128)}', space=vmem, size = 0x5000, scoped, tag = 'scratch operand']
  %s0 = inlined_call_operand.hbm [shape: f32[8,8,32], index: 0, kind: input, shape index: {}]
  %s1 = inlined_call_operand.vmem [shape: f32[8,5], index: 1, kind: input, shape index: {}]
  %s2 = inlined_call_operand.hbm [shape: f32[208,128], index: 2, kind: input, shape index: {}]
  %s3 = inlined_call_operand.vmem [shape: f32[5,8,5], index: 3, kind: input, shape index: {}]
  %s4 = inlined_call_operand.vmem [shape: f32[48,128], index: 4, kind: output, shape index: {}]
  %s5 = sld [smem:[#allocation0]]
  $region34: #{generator_stu_forward.1} parent=0
    _
  %s7 = ssub.s32 1, %s5
  %s8 = scalar_select 0, %s7, %s5
  $region1: #{generator_stu_forward.1} parent=0
    #allocation3 [shape = 'u8[32768]{0}', space=vmem, size = 0x8000, scoped, tag = 'input window, operand 0, single buffered']
    #allocation4 [shape = 's32[1]{0}', space=sflag, size = 0x4, scoped, tag = 'scoped memory for generator_stu_forward.1']
    #allocation5 [shape = 'u8[106496]{0}', space=vmem, size = 0x1a000, scoped, tag = 'input window, operand 2, single buffered']
    #allocation6 [shape = 's32[1]{0}', space=sflag, size = 0x4, scoped, tag = 'scoped memory for generator_stu_forward.1']
    %9 = vsyncpa [#allocation4], 0
    %10 = vsyncpa [#allocation6], 0
    // Predicated region
    $region2: #{generator_stu_forward.1} parent=1 // pred_check
      _
    $region3: #{generator_stu_forward.1} parent=1 // pred_check_branch
      %12 = sbr.rel (0) target = $region5
    $region4: #{generator_stu_forward.1} parent=1 // pred_region
      %s14 = ssub.s32 1024, 1024
      %15 = vsyncadd [#allocation4], %s14
      %s16 = sshll.u32 [#allocation3], 4
      %s17 = int_to_ptr.vmem [resolvable:$true] %s16
      %22 = dma.hbm_to_vmem [thread:$0]  %s0, 1024, %s17, [#allocation4], 128, 128, 8
    $region5: #{generator_stu_forward.1} parent=1 // pred_fallthru
      _
    // Predicated region
    $region6: #{generator_stu_forward.1} parent=1 // pred_check
      _
    $region7: #{generator_stu_forward.1} parent=1 // pred_check_branch
      %24 = sbr.rel (0) target = $region9
    $region8: #{generator_stu_forward.1} parent=1 // pred_region
      _
    $region9: #{generator_stu_forward.1} parent=1 // pred_fallthru
      _
    // Predicated region
    $region10: #{generator_stu_forward.1} parent=1 // pred_check
      _
    $region11: #{generator_stu_forward.1} parent=1 // pred_check_branch
      %26 = sbr.rel (0) target = $region13
    $region12: #{generator_stu_forward.1} parent=1 // pred_region
      %s28 = ssub.s32 3328, 3328
      %29 = vsyncadd [#allocation6], %s28
      %s30 = sshll.u32 [#allocation5], 4
      %s31 = int_to_ptr.vmem [resolvable:$true] %s30
      %36 = dma.hbm_to_vmem [thread:$0]  %s2, 3328, %s31, [#allocation6], 128, 128, 8
    $region13: #{generator_stu_forward.1} parent=1 // pred_fallthru
      _
    // Predicated region
    $region14: #{generator_stu_forward.1} parent=1 // pred_check
      _
    $region15: #{generator_stu_forward.1} parent=1 // pred_check_branch
      %38 = sbr.rel (0) target = $region17
    $region16: #{generator_stu_forward.1} parent=1 // pred_region
      _
    $region17: #{generator_stu_forward.1} parent=1 // pred_fallthru
      _
    // Predicated region
    $region18: #{generator_stu_forward.1} parent=1 // pred_check
      _
    $region19: #{generator_stu_forward.1} parent=1 // pred_check_branch
      %40 = sbr.rel (0) target = $region21
    $region20: #{generator_stu_forward.1} parent=1 // pred_region
      %41 = dma.done [#allocation4], 1024
    $region21: #{generator_stu_forward.1} parent=1 // pred_fallthru
      _
    // Predicated region
    $region22: #{generator_stu_forward.1} parent=1 // pred_check
      _
    $region23: #{generator_stu_forward.1} parent=1 // pred_check_branch
      %43 = sbr.rel (0) target = $region25
    $region24: #{generator_stu_forward.1} parent=1 // pred_region
      %44 = dma.done [#allocation6], 3328
    $region25: #{generator_stu_forward.1} parent=1 // pred_fallthru
      _
    %v45 = vld [vmem:[#allocation5] sm:$0xff]
    %v46 = vld [vmem:[#allocation5 + $0x8] sm:$0xff]
    %v47 = vld [vmem:[#allocation5 + $0x10] sm:$0xff]
    %v48 = vld [vmem:[#allocation5 + $0x18] sm:$0xff]
    %v49 = vld [vmem:[#allocation5 + $0x20] sm:$0xff]
    %v50 = vld [vmem:[#allocation5 + $0x28] sm:$0xff]
    %v51 = vld [vmem:[#allocation5 + $0x30] sm:$0xff]
    %v52 = vld [vmem:[#allocation5 + $0x38] sm:$0xff]
    %v53 = vld [vmem:[#allocation5 + $0x40] sm:$0xff]
    %v54 = vld [vmem:[#allocation5 + $0x48] sm:$0xff]
    %v55 = vld [vmem:[#allocation5 + $0x50] sm:$0xff]
    %v56 = vld [vmem:[#allocation5 + $0x58] sm:$0xff]
    %v57 = vld [vmem:[#allocation5 + $0x60] sm:$0xff]
    %v58 = vld [vmem:[#allocation5 + $0x68] sm:$0xff]
    %v59 = vld [vmem:[#allocation5 + $0x70] sm:$0xff]
    %v60 = vld [vmem:[#allocation5 + $0x78] sm:$0xff]
    %v61 = vld [vmem:[#allocation5 + $0x80] sm:$0xff]
    %v62 = vld [vmem:[#allocation5 + $0x88] sm:$0xff]
    %v63 = vld [vmem:[#allocation5 + $0x90] sm:$0xff]
    %v64 = vld [vmem:[#allocation5 + $0x98] sm:$0xff]
    %v65 = vld [vmem:[#allocation5 + $0xa0] sm:$0x1f]
    %v66 = vld [vmem:[#allocation5 + $0xa8] sm:$0xff]
    %v67 = vld [vmem:[#allocation5 + $0xb0] sm:$0xff]
    %v68 = vld [vmem:[#allocation5 + $0xb8] sm:$0xff]
    %v69 = vld [vmem:[#allocation5 + $0xc0] sm:$0xff]
    %v70 = vld [vmem:[#allocation5 + $0xc8] sm:$0x1]
    %v71 = vld [vmem:[#allocation5 + $0xc9] sm:$0x1]
    %v72 = vld [vmem:[#allocation5 + $0xca] sm:$0x1]
    %v73 = vld [vmem:[#allocation5 + $0xcb] sm:$0x1]
    %v74 = vld [vmem:[#allocation5 + $0xcc] sm:$0x1]
    %v75 = vld [vmem:[#allocation5 + $0xcd] sm:$0x1]
    %v76 = vld [vmem:[#allocation5 + $0xce] sm:$0x1]
    %v77 = vld [vmem:[#allocation5 + $0xcf] sm:$0x1]
    %v78 = vld [vmem:[#allocation3] sm:$0xff]
    %v79 = vld [vmem:[#allocation3 + $0x8] sm:$0xff]
    %v80 = vld [vmem:[#allocation3 + $0x10] sm:$0xff]
    %v81 = vld [vmem:[#allocation3 + $0x18] sm:$0xff]
    %v82 = vld [vmem:[#allocation3 + $0x20] sm:$0xff]
    %v83 = vld [vmem:[#allocation3 + $0x28] sm:$0xff]
    %v84 = vld [vmem:[#allocation3 + $0x30] sm:$0xff]
    %v85 = vld [vmem:[#allocation3 + $0x38] sm:$0xff]
    %v86 = vld [vmem:[%s1] sm:$0xff]
    %v87 = vlaneseq
    %v88 = vshrl.u32 %v87, 7
    %v89 = vsub.s32 0, %v88
    %v90 = vrot.slane %v70, %v89
    %v99 = vrot.slane %v78, 7
    %v100 = vrot.slane %v79, 6
    %vm101 = vcmask 1041409
    %v102 = vsel %vm101, %v100, %v99
    %v103 = vrot.slane %v80, 5
    %vm104 = vcmask 1042434
    %v105 = vsel %vm104, %v103, %v102
    %v106 = vrot.slane %v81, 4
    %vm107 = vcmask 1043459
    %v108 = vsel %vm107, %v106, %v105
    %v109 = vrot.slane %v82, 3
    %vm110 = vcmask 1044484
    %v111 = vsel %vm110, %v109, %v108
    %v112 = vrot.slane %v83, 2
    %vm113 = vcmask 1045509
    %v114 = vsel %vm113, %v112, %v111
    %v115 = vrot.slane %v84, 1
    %vm116 = vcmask 1046534
    %v117 = vsel %vm116, %v115, %v114
    %vm118 = vcmask 1047559
    %v119 = vsel %vm118, %v85, %v117
    %vm120 = vcmask 261120
    %v121 = vsel %vm120, %v119, 0
    %123 = vmatprep.subr.mxu0 0.0
    %124 = vmatpush1.msra.mxu0 %v45
    %125 = vmatprep.subr.mxu0 0.0
    %126 = vmatpush1.msra.mxu0 %v46
    %127 = vmatprep.subr.mxu0 0.0
    %128 = vmatpush1.msra.mxu0 %v47
    %129 = vmatprep.subr.mxu0 0.0
    %130 = vmatpush1.msra.mxu0 %v48
    %131 = vmatprep.subr.mxu0 0.0
    %132 = vmatpush1.msra.mxu0 0.0
    %133 = vmatprep.subr.mxu0 0.0
    %134 = vmatpush1.msra.mxu0 0.0
    %135 = vmatprep.subr.mxu0 0.0
    %136 = vmatpush1.msra.mxu0 0.0
    %137 = vmatprep.subr.mxu0 0.0
    %138 = vmatpush1.msra.mxu0 0.0
    %139 = vmatprep.subr.mxu0 0.0
    %140 = vmatpush1.msra.mxu0 0.0
    %141 = vmatprep.subr.mxu0 0.0
    %142 = vmatpush1.msra.mxu0 0.0
    %143 = vmatprep.subr.mxu0 0.0
    %144 = vmatpush1.msra.mxu0 0.0
    %145 = vmatprep.subr.mxu0 0.0
    %146 = vmatpush1.msra.mxu0 0.0
    %147 = vmatprep.subr.mxu0 0.0
    %148 = vmatpush1.msra.mxu0 0.0
    %149 = vmatprep.subr.mxu0 0.0
    %150 = vmatpush1.msra.mxu0 0.0
    %151 = vmatprep.subr.mxu0 0.0
    %152 = vmatpush1.msra.mxu0 0.0
    %153 = vmatprep.subr.mxu0 0.0
    %154 = vmatpush1.msra.mxu0 0.0
    %155 = vmatprep.subr.mxu0 0.0
    %156 = vmatpush1.msra.mxu0 0.0
    %157 = vmatprep.subr.mxu0 0.0
    %158 = vmatpush1.msra.mxu0 0.0
    %159 = vmatprep.subr.mxu0 0.0
    %160 = vmatpush1.msra.mxu0 0.0
    %161 = vmatprep.subr.mxu0 0.0
    %162 = vmatpush1.msra.mxu0 0.0
    %163 = vmatprep.subr.mxu0 0.0
    %164 = vmatpush1.msra.mxu0 0.0
    %165 = vmatprep.subr.mxu0 0.0
    %166 = vmatpush1.msra.mxu0 0.0
    %167 = vmatprep.subr.mxu0 0.0
    %168 = vmatpush1.msra.mxu0 0.0
    %169 = vmatprep.subr.mxu0 0.0
    %170 = vmatpush1.msra.mxu0 0.0
    %171 = vmatprep.subr.mxu0 0.0
    %172 = vmatpush1.msra.mxu0 0.0
    %173 = vmatprep.subr.mxu0 0.0
    %174 = vmatpush1.msra.mxu0 0.0
    %175 = vmatprep.subr.mxu0 0.0
    %176 = vmatpush1.msra.mxu0 0.0
    %177 = vmatprep.subr.mxu0 0.0
    %178 = vmatpush1.msra.mxu0 0.0
    %179 = vmatprep.subr.mxu0 0.0
    %180 = vmatpush1.msra.mxu0 0.0
    %181 = vmatprep.subr.mxu0 0.0
    %182 = vmatpush1.msra.mxu0 0.0
    %183 = vmatprep.subr.mxu0 0.0
    %184 = vmatpush1.msra.mxu0 0.0
    %185 = vmatprep.subr.mxu0 0.0
    %186 = vmatpush1.msra.mxu0 0.0
    %187 = vmatprep.mubr.f32.mxu0 0.0
    %188 = vmatmul.mubr.f32.gmra.mrb[0].mxu0 %v121
    %v189 = vpop.f32.mrb[0].mxu0
    %v190 = vadd.f32 %v90, %v189
    %v191 = vpop.f32.mrb[0].mxu0
    %192 = vdwg.mxu0
    %v193 = vmul.f32 %v190, 0.1
    %v194 = vmax.f32 %v190, %v193
    %v195 = vlaneseq
    %v196 = vshrl.u32 %v195, 7
    %v197 = vsub.s32 0, %v196
    %v198 = vrot.slane %v71, %v197
    %v200 = vsel %vm120, %v194, 0
    %202 = vmatprep.subr.mxu0 0.0
    %203 = vmatpush1.msra.mxu0 %v49
    %204 = vmatprep.subr.mxu0 0.0
    %205 = vmatpush1.msra.mxu0 %v50
    %206 = vmatprep.subr.mxu0 0.0
    %207 = vmatpush1.msra.mxu0 %v51
    %208 = vmatprep.subr.mxu0 0.0
    %209 = vmatpush1.msra.mxu0 %v52
    %210 = vmatprep.subr.mxu0 0.0
    %211 = vmatpush1.msra.mxu0 0.0
    %212 = vmatprep.subr.mxu0 0.0
    %213 = vmatpush1.msra.mxu0 0.0
    %214 = vmatprep.subr.mxu0 0.0
    %215 = vmatpush1.msra.mxu0 0.0
    %216 = vmatprep.subr.mxu0 0.0
    %217 = vmatpush1.msra.mxu0 0.0
    %218 = vmatprep.subr.mxu0 0.0
    %219 = vmatpush1.msra.mxu0 0.0
    %220 = vmatprep.subr.mxu0 0.0
    %221 = vmatpush1.msra.mxu0 0.0
    %222 = vmatprep.subr.mxu0 0.0
    %223 = vmatpush1.msra.mxu0 0.0
    %224 = vmatprep.subr.mxu0 0.0
    %225 = vmatpush1.msra.mxu0 0.0
    %226 = vmatprep.subr.mxu0 0.0
    %227 = vmatpush1.msra.mxu0 0.0
    %228 = vmatprep.subr.mxu0 0.0
    %229 = vmatpush1.msra.mxu0 0.0
    %230 = vmatprep.subr.mxu0 0.0
    %231 = vmatpush1.msra.mxu0 0.0
    %232 = vmatprep.subr.mxu0 0.0
    %233 = vmatpush1.msra.mxu0 0.0
    %234 = vmatprep.subr.mxu0 0.0
    %235 = vmatpush1.msra.mxu0 0.0
    %236 = vmatprep.subr.mxu0 0.0
    %237 = vmatpush1.msra.mxu0 0.0
    %238 = vmatprep.subr.mxu0 0.0
    %239 = vmatpush1.msra.mxu0 0.0
    %240 = vmatprep.subr.mxu0 0.0
    %241 = vmatpush1.msra.mxu0 0.0
    %242 = vmatprep.subr.mxu0 0.0
    %243 = vmatpush1.msra.mxu0 0.0
    %244 = vmatprep.subr.mxu0 0.0
    %245 = vmatpush1.msra.mxu0 0.0
    %246 = vmatprep.subr.mxu0 0.0
    %247 = vmatpush1.msra.mxu0 0.0
    %248 = vmatprep.subr.mxu0 0.0
    %249 = vmatpush1.msra.mxu0 0.0
    %250 = vmatprep.subr.mxu0 0.0
    %251 = vmatpush1.msra.mxu0 0.0
    %252 = vmatprep.subr.mxu0 0.0
    %253 = vmatpush1.msra.mxu0 0.0
    %254 = vmatprep.subr.mxu0 0.0
    %255 = vmatpush1.msra.mxu0 0.0
    %256 = vmatprep.subr.mxu0 0.0
    %257 = vmatpush1.msra.mxu0 0.0
    %258 = vmatprep.subr.mxu0 0.0
    %259 = vmatpush1.msra.mxu0 0.0
    %260 = vmatprep.subr.mxu0 0.0
    %261 = vmatpush1.msra.mxu0 0.0
    %262 = vmatprep.subr.mxu0 0.0
    %263 = vmatpush1.msra.mxu0 0.0
    %264 = vmatprep.subr.mxu0 0.0
    %265 = vmatpush1.msra.mxu0 0.0
    %266 = vmatprep.mubr.f32.mxu0 0.0
    %267 = vmatmul.mubr.f32.gmra.mrb[0].mxu0 %v200
    %v268 = vpop.f32.mrb[0].mxu0
    %v269 = vadd.f32 %v198, %v268
    %v270 = vpop.f32.mrb[0].mxu0
    %271 = vdwg.mxu0
    %v272 = vsel %vm120, %v269, 0.0
    %273 = vadd.xlane.f32.xlu0 %v272
    %v274 = vpop.xlane.xlu0 %273
    %v275 = vrcp.pop 32.0
    %v276 = vmul.f32 %v274, %v275
    %v277 = vsub.f32 %v269, %v276
    %v278 = vmul.f32 %v277, %v277
    %v279 = vsel %vm120, %v278, 0.0
    %280 = vadd.xlane.f32.xlu0 %v279
    %v281 = vpop.xlane.xlu0 %280
    %v282 = vmul.f32 %v281, %v275
    %v283 = vadd.f32 %v282, 1e-05
    %v284 = vrsqrt.pop %v283
    %v285 = vmul.f32 %v277, %v284
    %v286 = vlaneseq
    %v287 = vshrl.u32 %v286, 7
    %v288 = vsub.s32 0, %v287
    %v289 = vrot.slane %v72, %v288
    %v290 = vmul.f32 %v285, %v289
    %v291 = vlaneseq
    %v292 = vshrl.u32 %v291, 7
    %v293 = vsub.s32 0, %v292
    %v294 = vrot.slane %v73, %v293
    %v295 = vadd.f32 %v290, %v294
    %v296 = vmul.f32 %v295, 0.1
    %v297 = vmax.f32 %v295, %v296
    %v298 = vlaneseq
    %v299 = vshrl.u32 %v298, 7
    %v300 = vsub.s32 0, %v299
    %v301 = vrot.slane %v76, %v300
    %v303 = vsel %vm120, %v297, 0
    %305 = vmatprep.subr.mxu0 0.0
    %306 = vmatpush1.msra.mxu0 %v53
    %307 = vmatprep.subr.mxu0 0.0
    %308 = vmatpush1.msra.mxu0 %v54
    %309 = vmatprep.subr.mxu0 0.0
    %310 = vmatpush1.msra.mxu0 %v55
    %311 = vmatprep.subr.mxu0 0.0
    %312 = vmatpush1.msra.mxu0 %v56
    %313 = vmatprep.subr.mxu0 0.0
    %314 = vmatpush1.msra.mxu0 0.0
    %315 = vmatprep.subr.mxu0 0.0
    %316 = vmatpush1.msra.mxu0 0.0
    %317 = vmatprep.subr.mxu0 0.0
    %318 = vmatpush1.msra.mxu0 0.0
    %319 = vmatprep.subr.mxu0 0.0
    %320 = vmatpush1.msra.mxu0 0.0
    %321 = vmatprep.subr.mxu0 0.0
    %322 = vmatpush1.msra.mxu0 0.0
    %323 = vmatprep.subr.mxu0 0.0
    %324 = vmatpush1.msra.mxu0 0.0
    %325 = vmatprep.subr.mxu0 0.0
    %326 = vmatpush1.msra.mxu0 0.0
    %327 = vmatprep.subr.mxu0 0.0
    %328 = vmatpush1.msra.mxu0 0.0
    %329 = vmatprep.subr.mxu0 0.0
    %330 = vmatpush1.msra.mxu0 0.0
    %331 = vmatprep.subr.mxu0 0.0
    %332 = vmatpush1.msra.mxu0 0.0
    %333 = vmatprep.subr.mxu0 0.0
    %334 = vmatpush1.msra.mxu0 0.0
    %335 = vmatprep.subr.mxu0 0.0
    %336 = vmatpush1.msra.mxu0 0.0
    %337 = vmatprep.subr.mxu0 0.0
    %338 = vmatpush1.msra.mxu0 0.0
    %339 = vmatprep.subr.mxu0 0.0
    %340 = vmatpush1.msra.mxu0 0.0
    %341 = vmatprep.subr.mxu0 0.0
    %342 = vmatpush1.msra.mxu0 0.0
    %343 = vmatprep.subr.mxu0 0.0
    %344 = vmatpush1.msra.mxu0 0.0
    %345 = vmatprep.subr.mxu0 0.0
    %346 = vmatpush1.msra.mxu0 0.0
    %347 = vmatprep.subr.mxu0 0.0
    %348 = vmatpush1.msra.mxu0 0.0
    %349 = vmatprep.subr.mxu0 0.0
    %350 = vmatpush1.msra.mxu0 0.0
    %351 = vmatprep.subr.mxu0 0.0
    %352 = vmatpush1.msra.mxu0 0.0
    %353 = vmatprep.subr.mxu0 0.0
    %354 = vmatpush1.msra.mxu0 0.0
    %355 = vmatprep.subr.mxu0 0.0
    %356 = vmatpush1.msra.mxu0 0.0
    %357 = vmatprep.subr.mxu0 0.0
    %358 = vmatpush1.msra.mxu0 0.0
    %359 = vmatprep.subr.mxu0 0.0
    %360 = vmatpush1.msra.mxu0 0.0
    %361 = vmatprep.subr.mxu0 0.0
    %362 = vmatpush1.msra.mxu0 0.0
    %363 = vmatprep.subr.mxu0 0.0
    %364 = vmatpush1.msra.mxu0 0.0
    %365 = vmatprep.subr.mxu0 0.0
    %366 = vmatpush1.msra.mxu0 0.0
    %367 = vmatprep.subr.mxu0 0.0
    %368 = vmatpush1.msra.mxu0 0.0
    %369 = vmatprep.mubr.f32.mxu0 0.0
    %370 = vmatmul.mubr.f32.gmra.mrb[0].mxu0 %v303
    %v371 = vpop.f32.mrb[0].mxu0
    %v372 = vadd.f32 %v301, %v371
    %v373 = vpop.f32.mrb[0].mxu0
    %374 = vdwg.mxu0
    %vm375 = vcmask 23552
    %v376 = vsel %vm375, %v372, -inf
    %377 = vmax.xlane.f32.xlu0 %v376
    %v378 = vpop.xlane.xlu0 %377
    %v379 = vsub.f32 %v372, %v378
    %v380 = vmul.f32 %v379, 1.442695
    %v381 = vpow.pop %v380
    %v382 = vsel %vm375, %v381, 0.0
    %383 = vadd.xlane.f32.xlu0 %v382
    %v384 = vpop.xlane.xlu0 %383
    %v385 = vrcp.pop %v384
    %v386 = vmul.f32 %v381, %v385
    %vm387 = vcmask 39960
    %v388 = vsel %vm387, %v372, -inf
    %389 = vmax.xlane.f32.xlu0 %v388
    %v390 = vpop.xlane.xlu0 %389
    %v391 = vsub.f32 %v372, %v390
    %v392 = vmul.f32 %v391, 1.442695
    %v393 = vpow.pop %v392
    %395 = vrot.lane.b32.xlu0 %v393, 125
    %v396 = vpop.permute.xlu0 %395
    %vm398 = vcmask 15360
    %v399 = vsel %vm398, %v396, 0.0
    %400 = vadd.xlane.f32.xlu0 %v399
    %v401 = vpop.xlane.xlu0 %400
    %v402 = vrcp.pop %v401
    %v403 = vmul.f32 %v393, %v402
    %v404 = vlaneseq
    %v405 = vand.u32 %v404, 127
    %vm406 = vcmp.eq.f32.partialorder %v372, %v378
    %v407 = vsel %vm406, %v405, 3
    %v408 = vsel %vm375, %v407, 2147483647
    %v409 = vand.u32 %v408, 65535
    %v410 = vshra.s32 %v408, 16
    %v411 = vcvt.s32.f32 %v409
    %v412 = vcvt.s32.f32 %v410
    %413 = vmin.xlane.f32.xlu0 %v412
    %v414 = vpop.xlane.xlu0 %413
    %vm415 = vcmp.eq.f32.partialorder %v412, %v414
    %v416 = vsel %vm415, %v411, inf
    %417 = vmin.xlane.f32.xlu0 %v416
    %v418 = vpop.xlane.xlu0 %417
    %v419 = vcvt.f32.s32 %v418
    %v420 = vcvt.f32.s32 %v414
    %v421 = vshll.u32 %v420, 16
    %v422 = vadd.s32 %v421, %v419
    %vm423 = vcmp.eq.s32.totalorder %v405, %v422
    %v424 = vsel %vm423, 1, 0
    %v425 = vcvt.s32.f32 %v424
    %vm426 = vcmp.eq.f32.partialorder %v372, %v390
    %427 = vrot.lane.b32.xlu0 %v405, 3
    %v428 = vpop.permute.xlu0 %427
    %v429 = vsel %vm426, %v428, 2
    %v430 = vsel %vm387, %v429, 2147483647
    %v431 = vand.u32 %v430, 65535
    %v432 = vshra.s32 %v430, 16
    %v433 = vcvt.s32.f32 %v431
    %v434 = vcvt.s32.f32 %v432
    %435 = vmin.xlane.f32.xlu0 %v434
    %v436 = vpop.xlane.xlu0 %435
    %vm437 = vcmp.eq.f32.partialorder %v434, %v436
    %v438 = vsel %vm437, %v433, inf
    %439 = vmin.xlane.f32.xlu0 %v438
    %v440 = vpop.xlane.xlu0 %439
    %v441 = vcvt.f32.s32 %v440
    %v442 = vcvt.f32.s32 %v436
    %v443 = vshll.u32 %v442, 16
    %v444 = vadd.s32 %v443, %v441
    %vm445 = vcmp.eq.s32.totalorder %v405, %v444
    %v446 = vsel %vm445, 1, 0
    %v447 = vcvt.s32.f32 %v446
    %449 = vrot.lane.b32.xlu0 %v447, 3
    %v450 = vpop.permute.xlu0 %449
    %v452 = vsel %vm375, %v425, %v450
    %v453 = vld [vmem:[%s3] sm:$0xff]
    %v454 = vld [vmem:[%s3 + $0x8] sm:$0xff]
    %v455 = vld [vmem:[%s3 + $0x10] sm:$0xff]
    %v456 = vld [vmem:[%s3 + $0x18] sm:$0xff]
    %v457 = vld [vmem:[%s3 + $0x20] sm:$0xff]
    %v458 = vcombine.low 0.0, 0.0
    %v459 = vcombine.high 0.0, 0.0
    %v461 = vunpack.c.l.s4 1983009808
    %v462 = vunpack.c.0.s8 %v461
    %v463 = vlaneseq
    %v464 = vshrl.u32 %v463, 7
    %v465 = vsub.s32 %v462, %v464
    %v466 = vrot.slane %v458, %v465
    %v468 = vunpack.c.l.s4 1983009808
    %v469 = vunpack.c.0.s8 %v468
    %v470 = vlaneseq
    %v471 = vshrl.u32 %v470, 7
    %v472 = vsub.s32 %v469, %v471
    %v473 = vrot.slane %v459, %v472
    %v474 = vcombine.low %v466, %v466
    %v475 = vcombine.high %v466, %v466
    %v477 = vunpack.c.l.s4 1934713408
    %v478 = vunpack.c.0.s8 %v477
    %v479 = vlaneseq
    %v480 = vshrl.u32 %v479, 7
    %v481 = vsub.s32 %v478, %v480
    %v482 = vrot.slane %v474, %v481
    %v484 = vunpack.c.l.s4 1934713408
    %v485 = vunpack.c.0.s8 %v484
    %v486 = vlaneseq
    %v487 = vshrl.u32 %v486, 7
    %v488 = vsub.s32 %v485, %v487
    %v489 = vrot.slane %v475, %v488
    %v490 = vcombine.low %v473, %v473
    %v492 = vunpack.c.l.s4 1934713408
    %v493 = vunpack.c.0.s8 %v492
    %v494 = vlaneseq
    %v495 = vshrl.u32 %v494, 7
    %v496 = vsub.s32 %v493, %v495
    %v497 = vrot.slane %v490, %v496
    %v498 = vcombine.low %v482, %v482
    %v499 = vcombine.high %v482, %v482
    %v500 = vcombine.low %v489, %v489
    %v501 = vcombine.high %v489, %v489
    %v502 = vcombine.low %v497, %v497
    %504 = vrot.lane.b32.xlu0 %v499, 8
    %v505 = vpop.permute.xlu0 %504
    %508 = vrot.lane.b32.xlu0 %v500, 16
    %v509 = vpop.permute.xlu0 %508
    %512 = vrot.lane.b32.xlu0 %v501, 24
    %v513 = vpop.permute.xlu0 %512
    %516 = vrot.lane.b32.xlu0 %v502, 32
    %v517 = vpop.permute.xlu0 %516
    %vm519 = vcmask 64512
    %v520 = vsel %vm519, %v498, %v505
    %vm521 = vcmask 130048
    %v522 = vsel %vm521, %v520, %v509
    %vm523 = vcmask 195584
    %v524 = vsel %vm523, %v522, %v513
    %v525 = vsel %vm120, %v524, %v517
    %vm526 = vcmask 39936
    %v528 = vsel %vm526, %v452, 0
    %v531 = vsel %vm526, %v453, 0
    %v534 = vsel %vm526, %v454, 0
    %v537 = vsel %vm526, %v455, 0
    %v540 = vsel %vm526, %v456, 0
    %v543 = vsel %vm526, %v457, 0
    %545 = vmatprep.subr.mxu0 0.0
    %546 = vmatpush1.xpose.msra.mxu0 %v531
    %547 = vmatprep.subr.mxu0 0.0
    %548 = vmatpush1.xpose.msra.mxu0 %v534
    %549 = vmatprep.subr.mxu0 0.0
    %550 = vmatpush1.xpose.msra.mxu0 %v537
    %551 = vmatprep.subr.mxu0 0.0
    %552 = vmatpush1.xpose.msra.mxu0 %v540
    %553 = vmatprep.subr.mxu0 0.0
    %554 = vmatpush1.xpose.msra.mxu0 %v543
    %555 = vmatprep.subr.mxu0 0.0
    %556 = vmatpush1.xpose.msra.mxu0 0.0
    %557 = vmatprep.subr.mxu0 0.0
    %558 = vmatpush1.xpose.msra.mxu0 0.0
    %559 = vmatprep.subr.mxu0 0.0
    %560 = vmatpush1.xpose.msra.mxu0 0.0
    %561 = vmatprep.subr.mxu0 0.0
    %562 = vmatpush1.xpose.msra.mxu0 0.0
    %563 = vmatprep.subr.mxu0 0.0
    %564 = vmatpush1.xpose.msra.mxu0 0.0
    %565 = vmatprep.subr.mxu0 0.0
    %566 = vmatpush1.xpose.msra.mxu0 0.0
    %567 = vmatprep.subr.mxu0 0.0
    %568 = vmatpush1.xpose.msra.mxu0 0.0
    %569 = vmatprep.subr.mxu0 0.0
    %570 = vmatpush1.xpose.msra.mxu0 0.0
    %571 = vmatprep.subr.mxu0 0.0
    %572 = vmatpush1.xpose.msra.mxu0 0.0
    %573 = vmatprep.subr.mxu0 0.0
    %574 = vmatpush1.xpose.msra.mxu0 0.0
    %575 = vmatprep.subr.mxu0 0.0
    %576 = vmatpush1.xpose.msra.mxu0 0.0
    %577 = vmatprep.subr.mxu0 0.0
    %578 = vmatpush1.xpose.msra.mxu0 0.0
    %579 = vmatprep.subr.mxu0 0.0
    %580 = vmatpush1.xpose.msra.mxu0 0.0
    %581 = vmatprep.subr.mxu0 0.0
    %582 = vmatpush1.xpose.msra.mxu0 0.0
    %583 = vmatprep.subr.mxu0 0.0
    %584 = vmatpush1.xpose.msra.mxu0 0.0
    %585 = vmatprep.subr.mxu0 0.0
    %586 = vmatpush1.xpose.msra.mxu0 0.0
    %587 = vmatprep.subr.mxu0 0.0
    %588 = vmatpush1.xpose.msra.mxu0 0.0
    %589 = vmatprep.subr.mxu0 0.0
    %590 = vmatpush1.xpose.msra.mxu0 0.0
    %591 = vmatprep.subr.mxu0 0.0
    %592 = vmatpush1.xpose.msra.mxu0 0.0
    %593 = vmatprep.subr.mxu0 0.0
    %594 = vmatpush1.xpose.msra.mxu0 0.0
    %595 = vmatprep.subr.mxu0 0.0
    %596 = vmatpush1.xpose.msra.mxu0 0.0
    %597 = vmatprep.subr.mxu0 0.0
    %598 = vmatpush1.xpose.msra.mxu0 0.0
    %599 = vmatprep.subr.mxu0 0.0
    %600 = vmatpush1.xpose.msra.mxu0 0.0
    %601 = vmatprep.subr.mxu0 0.0
    %602 = vmatpush1.xpose.msra.mxu0 0.0
    %603 = vmatprep.subr.mxu0 0.0
    %604 = vmatpush1.xpose.msra.mxu0 0.0
    %605 = vmatprep.subr.mxu0 0.0
    %606 = vmatpush1.xpose.msra.mxu0 0.0
    %607 = vmatprep.subr.mxu0 0.0
    %608 = vmatpush1.xpose.msra.mxu0 0.0
    %609 = vmatprep.mubr.f32.mxu0 0.0
    %610 = vmatmul.mubr.f32.gmra.mrb[0].mxu0 %v528
    %v611 = vpop.f32.mrb[0].mxu0
    %v612 = vadd.f32 %v525, %v611
    %v613 = vpop.f32.mrb[0].mxu0
    %614 = vdwg.mxu0
    %616 = vrot.lane.b32.xlu0 %v612, 120
    %v617 = vpop.permute.xlu0 %616
    %619 = vrot.lane.b32.xlu0 %v612, 112
    %v620 = vpop.permute.xlu0 %619
    %622 = vrot.lane.b32.xlu0 %v612, 104
    %v623 = vpop.permute.xlu0 %622
    %625 = vrot.lane.b32.xlu0 %v612, 96
    %v626 = vpop.permute.xlu0 %625
    %v628 = vcombine.low %v612, %v620
    %v629 = vcombine.high %v612, %v620
    %v631 = vunpack.c.l.s4 1983009808
    %v632 = vunpack.c.0.s8 %v631
    %v633 = vlaneseq
    %v634 = vshrl.u32 %v633, 7
    %v635 = vsub.s32 %v632, %v634
    %v636 = vrot.slane %v628, %v635
    %v638 = vunpack.c.l.s4 1983009808
    %v639 = vunpack.c.0.s8 %v638
    %v640 = vlaneseq
    %v641 = vshrl.u32 %v640, 7
    %v642 = vsub.s32 %v639, %v641
    %v643 = vrot.slane %v629, %v642
    %v644 = vcombine.low %v617, %v623
    %v645 = vcombine.high %v617, %v623
    %v647 = vunpack.c.l.s4 1983009808
    %v648 = vunpack.c.0.s8 %v647
    %v649 = vlaneseq
    %v650 = vshrl.u32 %v649, 7
    %v651 = vsub.s32 %v648, %v650
    %v652 = vrot.slane %v644, %v651
    %v654 = vunpack.c.l.s4 1983009808
    %v655 = vunpack.c.0.s8 %v654
    %v656 = vlaneseq
    %v657 = vshrl.u32 %v656, 7
    %v658 = vsub.s32 %v655, %v657
    %v659 = vrot.slane %v645, %v658
    %v660 = vcombine.high %v626, 0.0
    %v662 = vunpack.c.l.s4 1983009808
    %v663 = vunpack.c.0.s8 %v662
    %v664 = vlaneseq
    %v665 = vshrl.u32 %v664, 7
    %v666 = vsub.s32 %v663, %v665
    %v667 = vrot.slane %v626, %v666
    %v669 = vunpack.c.l.s4 1983009808
    %v670 = vunpack.c.0.s8 %v669
    %v671 = vlaneseq
    %v672 = vshrl.u32 %v671, 7
    %v673 = vsub.s32 %v670, %v672
    %v674 = vrot.slane %v660, %v673
    %v675 = vcombine.low %v636, %v652
    %v676 = vcombine.high %v636, %v652
    %v678 = vunpack.c.l.s4 1934713408
    %v679 = vunpack.c.0.s8 %v678
    %v680 = vlaneseq
    %v681 = vshrl.u32 %v680, 7
    %v682 = vsub.s32 %v679, %v681
    %v683 = vrot.slane %v675, %v682
    %v685 = vunpack.c.l.s4 1934713408
    %v686 = vunpack.c.0.s8 %v685
    %v687 = vlaneseq
    %v688 = vshrl.u32 %v687, 7
    %v689 = vsub.s32 %v686, %v688
    %v690 = vrot.slane %v676, %v689
    %v691 = vcombine.low %v643, %v659
    %v692 = vcombine.high %v643, %v659
    %v694 = vunpack.c.l.s4 1934713408
    %v695 = vunpack.c.0.s8 %v694
    %v696 = vlaneseq
    %v697 = vshrl.u32 %v696, 7
    %v698 = vsub.s32 %v695, %v697
    %v699 = vrot.slane %v691, %v698
    %v701 = vunpack.c.l.s4 1934713408
    %v702 = vunpack.c.0.s8 %v701
    %v703 = vlaneseq
    %v704 = vshrl.u32 %v703, 7
    %v705 = vsub.s32 %v702, %v704
    %v706 = vrot.slane %v692, %v705
    %v707 = vcombine.high %v667, 0.0
    %v709 = vunpack.c.l.s4 1934713408
    %v710 = vunpack.c.0.s8 %v709
    %v711 = vlaneseq
    %v712 = vshrl.u32 %v711, 7
    %v713 = vsub.s32 %v710, %v712
    %v714 = vrot.slane %v667, %v713
    %v716 = vunpack.c.l.s4 1934713408
    %v717 = vunpack.c.0.s8 %v716
    %v718 = vlaneseq
    %v719 = vshrl.u32 %v718, 7
    %v720 = vsub.s32 %v717, %v719
    %v721 = vrot.slane %v707, %v720
    %v722 = vcombine.high %v674, 0.0
    %v724 = vunpack.c.l.s4 1934713408
    %v725 = vunpack.c.0.s8 %v724
    %v726 = vlaneseq
    %v727 = vshrl.u32 %v726, 7
    %v728 = vsub.s32 %v725, %v727
    %v729 = vrot.slane %v674, %v728
    %v731 = vunpack.c.l.s4 1934713408
    %v732 = vunpack.c.0.s8 %v731
    %v733 = vlaneseq
    %v734 = vshrl.u32 %v733, 7
    %v735 = vsub.s32 %v732, %v734
    %v736 = vrot.slane %v722, %v735
    %v737 = vcombine.low %v683, %v714
    %v738 = vcombine.high %v683, %v714
    %v739 = vcombine.low %v690, %v721
    %v740 = vcombine.high %v690, %v721
    %v741 = vcombine.low %v699, %v729
    %v742 = vcombine.high %v699, %v729
    %v743 = vcombine.low %v706, %v736
    %v744 = vcombine.high %v706, %v736
    %vm745 = vcmask 61440
    %v746 = vsel %vm745, %v737, -inf
    %747 = vmax.xlane.f32.xlu0 %v746
    %v748 = vpop.xlane.xlu0 %747
    %v749 = vsel %vm745, %v738, -inf
    %750 = vmax.xlane.f32.xlu0 %v749
    %v751 = vpop.xlane.xlu0 %750
    %v752 = vsel %vm745, %v739, -inf
    %753 = vmax.xlane.f32.xlu0 %v752
    %v754 = vpop.xlane.xlu0 %753
    %v755 = vsel %vm745, %v740, -inf
    %756 = vmax.xlane.f32.xlu0 %v755
    %v757 = vpop.xlane.xlu0 %756
    %v758 = vsel %vm745, %v741, -inf
    %759 = vmax.xlane.f32.xlu0 %v758
    %v760 = vpop.xlane.xlu0 %759
    %v761 = vsel %vm745, %v742, -inf
    %762 = vmax.xlane.f32.xlu0 %v761
    %v763 = vpop.xlane.xlu0 %762
    %v764 = vsel %vm745, %v743, -inf
    %765 = vmax.xlane.f32.xlu0 %v764
    %v766 = vpop.xlane.xlu0 %765
    %v767 = vsel %vm745, %v744, -inf
    %768 = vmax.xlane.f32.xlu0 %v767
    %v769 = vpop.xlane.xlu0 %768
    %v770 = vsub.f32 %v737, %v748
    %v771 = vsub.f32 %v738, %v751
    %v772 = vsub.f32 %v739, %v754
    %v773 = vsub.f32 %v740, %v757
    %v774 = vsub.f32 %v741, %v760
    %v775 = vsub.f32 %v742, %v763
    %v776 = vsub.f32 %v743, %v766
    %v777 = vsub.f32 %v744, %v769
    %v778 = vmul.f32 %v770, 1.442695
    %v779 = vpow.pop %v778
    %v780 = vmul.f32 %v771, 1.442695
    %v781 = vpow.pop %v780
    %v782 = vmul.f32 %v772, 1.442695
    %v783 = vpow.pop %v782
    %v784 = vmul.f32 %v773, 1.442695
    %v785 = vpow.pop %v784
    %v786 = vmul.f32 %v774, 1.442695
    %v787 = vpow.pop %v786
    %v788 = vmul.f32 %v775, 1.442695
    %v789 = vpow.pop %v788
    %v790 = vmul.f32 %v776, 1.442695
    %v791 = vpow.pop %v790
    %v792 = vmul.f32 %v777, 1.442695
    %v793 = vpow.pop %v792
    %v794 = vsel %vm745, %v779, 0.0
    %795 = vadd.xlane.f32.xlu0 %v794
    %v796 = vpop.xlane.xlu0 %795
    %v797 = vsel %vm745, %v781, 0.0
    %798 = vadd.xlane.f32.xlu0 %v797
    %v799 = vpop.xlane.xlu0 %798
    %v800 = vsel %vm745, %v783, 0.0
    %801 = vadd.xlane.f32.xlu0 %v800
    %v802 = vpop.xlane.xlu0 %801
    %v803 = vsel %vm745, %v785, 0.0
    %804 = vadd.xlane.f32.xlu0 %v803
    %v805 = vpop.xlane.xlu0 %804
    %v806 = vsel %vm745, %v787, 0.0
    %807 = vadd.xlane.f32.xlu0 %v806
    %v808 = vpop.xlane.xlu0 %807
    %v809 = vsel %vm745, %v789, 0.0
    %810 = vadd.xlane.f32.xlu0 %v809
    %v811 = vpop.xlane.xlu0 %810
    %v812 = vsel %vm745, %v791, 0.0
    %813 = vadd.xlane.f32.xlu0 %v812
    %v814 = vpop.xlane.xlu0 %813
    %v815 = vsel %vm745, %v793, 0.0
    %816 = vadd.xlane.f32.xlu0 %v815
    %v817 = vpop.xlane.xlu0 %816
    %v818 = vrcp.pop %v796
    %v819 = vmul.f32 %v779, %v818
    %v820 = vrcp.pop %v799
    %v821 = vmul.f32 %v781, %v820
    %v822 = vrcp.pop %v802
    %v823 = vmul.f32 %v783, %v822
    %v824 = vrcp.pop %v805
    %v825 = vmul.f32 %v785, %v824
    %v826 = vrcp.pop %v808
    %v827 = vmul.f32 %v787, %v826
    %v828 = vrcp.pop %v811
    %v829 = vmul.f32 %v789, %v828
    %v830 = vrcp.pop %v814
    %v831 = vmul.f32 %v791, %v830
    %v832 = vrcp.pop %v817
    %v833 = vmul.f32 %v793, %v832
    %v834 = vsel %vm120, %v78, 0
    %v836 = vsel %vm120, %v79, 0
    %v838 = vsel %vm120, %v80, 0
    %v840 = vsel %vm120, %v81, 0
    %v842 = vsel %vm120, %v82, 0
    %v844 = vsel %vm120, %v83, 0
    %v846 = vsel %vm120, %v84, 0
    %v848 = vsel %vm120, %v85, 0
    %850 = vmatprep.subr.mxu0 0.0
    %851 = vmatpush1.msra.mxu0 %v57
    %852 = vmatprep.subr.mxu0 0.0
    %853 = vmatpush1.msra.mxu0 %v58
    %854 = vmatprep.subr.mxu0 0.0
    %855 = vmatpush1.msra.mxu0 %v59
    %856 = vmatprep.subr.mxu0 0.0
    %857 = vmatpush1.msra.mxu0 %v60
    %858 = vmatprep.subr.mxu0 0.0
    %859 = vmatpush1.msra.mxu0 0.0
    %860 = vmatprep.subr.mxu0 0.0
    %861 = vmatpush1.msra.mxu0 0.0
    %862 = vmatprep.subr.mxu0 0.0
    %863 = vmatpush1.msra.mxu0 0.0
    %864 = vmatprep.subr.mxu0 0.0
    %865 = vmatpush1.msra.mxu0 0.0
    %866 = vmatprep.subr.mxu0 0.0
    %867 = vmatpush1.msra.mxu0 0.0
    %868 = vmatprep.subr.mxu0 0.0
    %869 = vmatpush1.msra.mxu0 0.0
    %870 = vmatprep.subr.mxu0 0.0
    %871 = vmatpush1.msra.mxu0 0.0
    %872 = vmatprep.subr.mxu0 0.0
    %873 = vmatpush1.msra.mxu0 0.0
    %874 = vmatprep.subr.mxu0 0.0
    %875 = vmatpush1.msra.mxu0 0.0
    %876 = vmatprep.subr.mxu0 0.0
    %877 = vmatpush1.msra.mxu0 0.0
    %878 = vmatprep.subr.mxu0 0.0
    %879 = vmatpush1.msra.mxu0 0.0
    %880 = vmatprep.subr.mxu0 0.0
    %881 = vmatpush1.msra.mxu0 0.0
    %882 = vmatprep.subr.mxu0 0.0
    %883 = vmatpush1.msra.mxu0 0.0
    %884 = vmatprep.subr.mxu0 0.0
    %885 = vmatpush1.msra.mxu0 0.0
    %886 = vmatprep.subr.mxu0 0.0
    %887 = vmatpush1.msra.mxu0 0.0
    %888 = vmatprep.subr.mxu0 0.0
    %889 = vmatpush1.msra.mxu0 0.0
    %890 = vmatprep.subr.mxu0 0.0
    %891 = vmatpush1.msra.mxu0 0.0
    %892 = vmatprep.subr.mxu0 0.0
    %893 = vmatpush1.msra.mxu0 0.0
    %894 = vmatprep.subr.mxu0 0.0
    %895 = vmatpush1.msra.mxu0 0.0
    %896 = vmatprep.subr.mxu0 0.0
    %897 = vmatpush1.msra.mxu0 0.0
    %898 = vmatprep.subr.mxu0 0.0
    %899 = vmatpush1.msra.mxu0 0.0
    %900 = vmatprep.subr.mxu0 0.0
    %901 = vmatpush1.msra.mxu0 0.0
    %902 = vmatprep.subr.mxu0 0.0
    %903 = vmatpush1.msra.mxu0 0.0
    %904 = vmatprep.subr.mxu0 0.0
    %905 = vmatpush1.msra.mxu0 0.0
    %906 = vmatprep.subr.mxu0 0.0
    %907 = vmatpush1.msra.mxu0 0.0
    %908 = vmatprep.subr.mxu0 0.0
    %909 = vmatpush1.msra.mxu0 0.0
    %910 = vmatprep.subr.mxu0 0.0
    %911 = vmatpush1.msra.mxu0 0.0
    %912 = vmatprep.subr.mxu0 0.0
    %913 = vmatpush1.msra.mxu0 0.0
    %914 = vmatprep.mubr.f32.mxu0 0.0
    %915 = vmatmul.mubr.f32.gmra.mrb[0].mxu0 %v834
    %v916 = vpop.f32.mrb[0].mxu0
    %v917 = vadd.f32 0.0, %v916
    %v918 = vpop.f32.mrb[0].mxu0
    %919 = vmatprep.mubr.f32.mxu0 0.0
    %920 = vmatmul.mubr.f32.gmra.mrb[0].mxu0 %v836
    %v921 = vpop.f32.mrb[0].mxu0
    %v922 = vadd.f32 0.0, %v921
    %v923 = vpop.f32.mrb[0].mxu0
    %924 = vmatprep.mubr.f32.mxu0 0.0
    %925 = vmatmul.mubr.f32.gmra.mrb[0].mxu0 %v838
    %v926 = vpop.f32.mrb[0].mxu0
    %v927 = vadd.f32 0.0, %v926
    %v928 = vpop.f32.mrb[0].mxu0
    %929 = vmatprep.mubr.f32.mxu0 0.0
    %930 = vmatmul.mubr.f32.gmra.mrb[0].mxu0 %v840
    %v931 = vpop.f32.mrb[0].mxu0
    %v932 = vadd.f32 0.0, %v931
    %v933 = vpop.f32.mrb[0].mxu0
    %934 = vmatprep.mubr.f32.mxu0 0.0
    %935 = vmatmul.mubr.f32.gmra.mrb[0].mxu0 %v842
    %v936 = vpop.f32.mrb[0].mxu0
    %v937 = vadd.f32 0.0, %v936
    %v938 = vpop.f32.mrb[0].mxu0
    %939 = vmatprep.mubr.f32.mxu0 0.0
    %940 = vmatmul.mubr.f32.gmra.mrb[0].mxu0 %v844
    %v941 = vpop.f32.mrb[0].mxu0
    %v942 = vadd.f32 0.0, %v941
    %v943 = vpop.f32.mrb[0].mxu0
    %944 = vmatprep.mubr.f32.mxu0 0.0
    %945 = vmatmul.mubr.f32.gmra.mrb[0].mxu0 %v846
    %v946 = vpop.f32.mrb[0].mxu0
    %v947 = vadd.f32 0.0, %v946
    %v948 = vpop.f32.mrb[0].mxu0
    %949 = vmatprep.mubr.f32.mxu0 0.0
    %950 = vmatmul.mubr.f32.gmra.mrb[0].mxu0 %v848
    %v951 = vpop.f32.mrb[0].mxu0
    %v952 = vadd.f32 0.0, %v951
    %v953 = vpop.f32.mrb[0].mxu0
    %954 = vdwg.mxu0
    %v956 = vsel %vm519, %v819, 0
    %958 = vmatprep.subr.mxu0 0.0
    %959 = vmatpush1.msra.mxu0 %v917
    %960 = vmatprep.subr.mxu0 0.0
    %961 = vmatpush1.msra.mxu0 0.0
    %962 = vmatprep.subr.mxu0 0.0
    %963 = vmatpush1.msra.mxu0 0.0
    %964 = vmatprep.subr.mxu0 0.0
    %965 = vmatpush1.msra.mxu0 0.0
    %966 = vmatprep.subr.mxu0 0.0
    %967 = vmatpush1.msra.mxu0 0.0
    %968 = vmatprep.subr.mxu0 0.0
    %969 = vmatpush1.msra.mxu0 0.0
    %970 = vmatprep.subr.mxu0 0.0
    %971 = vmatpush1.msra.mxu0 0.0
    %972 = vmatprep.subr.mxu0 0.0
    %973 = vmatpush1.msra.mxu0 0.0
    %974 = vmatprep.subr.mxu0 0.0
    %975 = vmatpush1.msra.mxu0 0.0
    %976 = vmatprep.subr.mxu0 0.0
    %977 = vmatpush1.msra.mxu0 0.0
    %978 = vmatprep.subr.mxu0 0.0
    %979 = vmatpush1.msra.mxu0 0.0
    %980 = vmatprep.subr.mxu0 0.0
    %981 = vmatpush1.msra.mxu0 0.0
    %982 = vmatprep.subr.mxu0 0.0
    %983 = vmatpush1.msra.mxu0 0.0
    %984 = vmatprep.subr.mxu0 0.0
    %985 = vmatpush1.msra.mxu0 0.0
    %986 = vmatprep.subr.mxu0 0.0
    %987 = vmatpush1.msra.mxu0 0.0
    %988 = vmatprep.subr.mxu0 0.0
    %989 = vmatpush1.msra.mxu0 0.0
    %990 = vmatprep.subr.mxu0 0.0
    %991 = vmatpush1.msra.mxu0 0.0
    %992 = vmatprep.subr.mxu0 0.0
    %993 = vmatpush1.msra.mxu0 0.0
    %994 = vmatprep.subr.mxu0 0.0
    %995 = vmatpush1.msra.mxu0 0.0
    %996 = vmatprep.subr.mxu0 0.0
    %997 = vmatpush1.msra.mxu0 0.0
    %998 = vmatprep.subr.mxu0 0.0
    %999 = vmatpush1.msra.mxu0 0.0
    %1000 = vmatprep.subr.mxu0 0.0
    %1001 = vmatpush1.msra.mxu0 0.0
    %1002 = vmatprep.subr.mxu0 0.0
    %1003 = vmatpush1.msra.mxu0 0.0
    %1004 = vmatprep.subr.mxu0 0.0
    %1005 = vmatpush1.msra.mxu0 0.0
    %1006 = vmatprep.subr.mxu0 0.0
    %1007 = vmatpush1.msra.mxu0 0.0
    %1008 = vmatprep.subr.mxu0 0.0
    %1009 = vmatpush1.msra.mxu0 0.0
    %1010 = vmatprep.subr.mxu0 0.0
    %1011 = vmatpush1.msra.mxu0 0.0
    %1012 = vmatprep.subr.mxu0 0.0
    %1013 = vmatpush1.msra.mxu0 0.0
    %1014 = vmatprep.subr.mxu0 0.0
    %1015 = vmatpush1.msra.mxu0 0.0
    %1016 = vmatprep.subr.mxu0 0.0
    %1017 = vmatpush1.msra.mxu0 0.0
    %1018 = vmatprep.subr.mxu0 0.0
    %1019 = vmatpush1.msra.mxu0 0.0
    %1020 = vmatprep.subr.mxu0 0.0
    %1021 = vmatpush1.msra.mxu0 0.0
    %1022 = vmatprep.mubr.f32.mxu0 0.0
    %1023 = vmatmul.mubr.f32.gmra.mrb[0].mxu0 %v956
    %v1024 = vpop.f32.mrb[0].mxu0
    %v1025 = vadd.f32 0.0, %v1024
    %v1026 = vpop.f32.mrb[0].mxu0
    %1027 = vdwg.mxu0
    %v1029 = vsel %vm519, %v821, 0
    %1031 = vmatprep.subr.mxu0 0.0
    %1032 = vmatpush1.msra.mxu0 %v922
    %1033 = vmatprep.subr.mxu0 0.0
    %1034 = vmatpush1.msra.mxu0 0.0
    %1035 = vmatprep.subr.mxu0 0.0
    %1036 = vmatpush1.msra.mxu0 0.0
    %1037 = vmatprep.subr.mxu0 0.0
    %1038 = vmatpush1.msra.mxu0 0.0
    %1039 = vmatprep.subr.mxu0 0.0
    %1040 = vmatpush1.msra.mxu0 0.0
    %1041 = vmatprep.subr.mxu0 0.0
    %1042 = vmatpush1.msra.mxu0 0.0
    %1043 = vmatprep.subr.mxu0 0.0
    %1044 = vmatpush1.msra.mxu0 0.0
    %1045 = vmatprep.subr.mxu0 0.0
    %1046 = vmatpush1.msra.mxu0 0.0
    %1047 = vmatprep.subr.mxu0 0.0
    %1048 = vmatpush1.msra.mxu0 0.0
    %1049 = vmatprep.subr.mxu0 0.0
    %1050 = vmatpush1.msra.mxu0 0.0
    %1051 = vmatprep.subr.mxu0 0.0
    %1052 = vmatpush1.msra.mxu0 0.0
    %1053 = vmatprep.subr.mxu0 0.0
    %1054 = vmatpush1.msra.mxu0 0.0
    %1055 = vmatprep.subr.mxu0 0.0
    %1056 = vmatpush1.msra.mxu0 0.0
    %1057 = vmatprep.subr.mxu0 0.0
    %1058 = vmatpush1.msra.mxu0 0.0
    %1059 = vmatprep.subr.mxu0 0.0
    %1060 = vmatpush1.msra.mxu0 0.0
    %1061 = vmatprep.subr.mxu0 0.0
    %1062 = vmatpush1.msra.mxu0 0.0
    %1063 = vmatprep.subr.mxu0 0.0
    %1064 = vmatpush1.msra.mxu0 0.0
    %1065 = vmatprep.subr.mxu0 0.0
    %1066 = vmatpush1.msra.mxu0 0.0
    %1067 = vmatprep.subr.mxu0 0.0
    %1068 = vmatpush1.msra.mxu0 0.0
    %1069 = vmatprep.subr.mxu0 0.0
    %1070 = vmatpush1.msra.mxu0 0.0
    %1071 = vmatprep.subr.mxu0 0.0
    %1072 = vmatpush1.msra.mxu0 0.0
    %1073 = vmatprep.subr.mxu0 0.0
    %1074 = vmatpush1.msra.mxu0 0.0
    %1075 = vmatprep.subr.mxu0 0.0
    %1076 = vmatpush1.msra.mxu0 0.0
    %1077 = vmatprep.subr.mxu0 0.0
    %1078 = vmatpush1.msra.mxu0 0.0
    %1079 = vmatprep.subr.mxu0 0.0
    %1080 = vmatpush1.msra.mxu0 0.0
    %1081 = vmatprep.subr.mxu0 0.0
    %1082 = vmatpush1.msra.mxu0 0.0
    %1083 = vmatprep.subr.mxu0 0.0
    %1084 = vmatpush1.msra.mxu0 0.0
    %1085 = vmatprep.subr.mxu0 0.0
    %1086 = vmatpush1.msra.mxu0 0.0
    %1087 = vmatprep.subr.mxu0 0.0
    %1088 = vmatpush1.msra.mxu0 0.0
    %1089 = vmatprep.subr.mxu0 0.0
    %1090 = vmatpush1.msra.mxu0 0.0
    %1091 = vmatprep.subr.mxu0 0.0
    %1092 = vmatpush1.msra.mxu0 0.0
    %1093 = vmatprep.subr.mxu0 0.0
    %1094 = vmatpush1.msra.mxu0 0.0
    %1095 = vmatprep.mubr.f32.mxu0 0.0
    %1096 = vmatmul.mubr.f32.gmra.mrb[0].mxu0 %v1029
    %v1097 = vpop.f32.mrb[0].mxu0
    %v1098 = vadd.f32 0.0, %v1097
    %v1099 = vpop.f32.mrb[0].mxu0
    %1100 = vdwg.mxu0
    %v1102 = vsel %vm519, %v823, 0
    %1104 = vmatprep.subr.mxu0 0.0
    %1105 = vmatpush1.msra.mxu0 %v927
    %1106 = vmatprep.subr.mxu0 0.0
    %1107 = vmatpush1.msra.mxu0 0.0
    %1108 = vmatprep.subr.mxu0 0.0
    %1109 = vmatpush1.msra.mxu0 0.0
    %1110 = vmatprep.subr.mxu0 0.0
    %1111 = vmatpush1.msra.mxu0 0.0
    %1112 = vmatprep.subr.mxu0 0.0
    %1113 = vmatpush1.msra.mxu0 0.0
    %1114 = vmatprep.subr.mxu0 0.0
    %1115 = vmatpush1.msra.mxu0 0.0
    %1116 = vmatprep.subr.mxu0 0.0
    %1117 = vmatpush1.msra.mxu0 0.0
    %1118 = vmatprep.subr.mxu0 0.0
    %1119 = vmatpush1.msra.mxu0 0.0
    %1120 = vmatprep.subr.mxu0 0.0
    %1121 = vmatpush1.msra.mxu0 0.0
    %1122 = vmatprep.subr.mxu0 0.0
    %1123 = vmatpush1.msra.mxu0 0.0
    %1124 = vmatprep.subr.mxu0 0.0
    %1125 = vmatpush1.msra.mxu0 0.0
    %1126 = vmatprep.subr.mxu0 0.0
    %1127 = vmatpush1.msra.mxu0 0.0
    %1128 = vmatprep.subr.mxu0 0.0
    %1129 = vmatpush1.msra.mxu0 0.0
    %1130 = vmatprep.subr.mxu0 0.0
    %1131 = vmatpush1.msra.mxu0 0.0
    %1132 = vmatprep.subr.mxu0 0.0
    %1133 = vmatpush1.msra.mxu0 0.0
    %1134 = vmatprep.subr.mxu0 0.0
    %1135 = vmatpush1.msra.mxu0 0.0
    %1136 = vmatprep.subr.mxu0 0.0
    %1137 = vmatpush1.msra.mxu0 0.0
    %1138 = vmatprep.subr.mxu0 0.0
    %1139 = vmatpush1.msra.mxu0 0.0
    %1140 = vmatprep.subr.mxu0 0.0
    %1141 = vmatpush1.msra.mxu0 0.0
    %1142 = vmatprep.subr.mxu0 0.0
    %1143 = vmatpush1.msra.mxu0 0.0
    %1144 = vmatprep.subr.mxu0 0.0
    %1145 = vmatpush1.msra.mxu0 0.0
    %1146 = vmatprep.subr.mxu0 0.0
    %1147 = vmatpush1.msra.mxu0 0.0
    %1148 = vmatprep.subr.mxu0 0.0
    %1149 = vmatpush1.msra.mxu0 0.0
    %1150 = vmatprep.subr.mxu0 0.0
    %1151 = vmatpush1.msra.mxu0 0.0
    %1152 = vmatprep.subr.mxu0 0.0
    %1153 = vmatpush1.msra.mxu0 0.0
    %1154 = vmatprep.subr.mxu0 0.0
    %1155 = vmatpush1.msra.mxu0 0.0
    %1156 = vmatprep.subr.mxu0 0.0
    %1157 = vmatpush1.msra.mxu0 0.0
    %1158 = vmatprep.subr.mxu0 0.0
    %1159 = vmatpush1.msra.mxu0 0.0
    %1160 = vmatprep.subr.mxu0 0.0
    %1161 = vmatpush1.msra.mxu0 0.0
    %1162 = vmatprep.subr.mxu0 0.0
    %1163 = vmatpush1.msra.mxu0 0.0
    %1164 = vmatprep.subr.mxu0 0.0
    %1165 = vmatpush1.msra.mxu0 0.0
    %1166 = vmatprep.subr.mxu0 0.0
    %1167 = vmatpush1.msra.mxu0 0.0
    %1168 = vmatprep.mubr.f32.mxu0 0.0
    %1169 = vmatmul.mubr.f32.gmra.mrb[0].mxu0 %v1102
    %v1170 = vpop.f32.mrb[0].mxu0
    %v1171 = vadd.f32 0.0, %v1170
    %v1172 = vpop.f32.mrb[0].mxu0
    %1173 = vdwg.mxu0
    %v1175 = vsel %vm519, %v825, 0
    %1177 = vmatprep.subr.mxu0 0.0
    %1178 = vmatpush1.msra.mxu0 %v932
    %1179 = vmatprep.subr.mxu0 0.0
    %1180 = vmatpush1.msra.mxu0 0.0
    %1181 = vmatprep.subr.mxu0 0.0
    %1182 = vmatpush1.msra.mxu0 0.0
    %1183 = vmatprep.subr.mxu0 0.0
    %1184 = vmatpush1.msra.mxu0 0.0
    %1185 = vmatprep.subr.mxu0 0.0
    %1186 = vmatpush1.msra.mxu0 0.0
    %1187 = vmatprep.subr.mxu0 0.0
    %1188 = vmatpush1.msra.mxu0 0.0
    %1189 = vmatprep.subr.mxu0 0.0
    %1190 = vmatpush1.msra.mxu0 0.0
    %1191 = vmatprep.subr.mxu0 0.0
    %1192 = vmatpush1.msra.mxu0 0.0
    %1193 = vmatprep.subr.mxu0 0.0
    %1194 = vmatpush1.msra.mxu0 0.0
    %1195 = vmatprep.subr.mxu0 0.0
    %1196 = vmatpush1.msra.mxu0 0.0
    %1197 = vmatprep.subr.mxu0 0.0
    %1198 = vmatpush1.msra.mxu0 0.0
    %1199 = vmatprep.subr.mxu0 0.0
    %1200 = vmatpush1.msra.mxu0 0.0
    %1201 = vmatprep.subr.mxu0 0.0
    %1202 = vmatpush1.msra.mxu0 0.0
    %1203 = vmatprep.subr.mxu0 0.0
    %1204 = vmatpush1.msra.mxu0 0.0
    %1205 = vmatprep.subr.mxu0 0.0
    %1206 = vmatpush1.msra.mxu0 0.0
    %1207 = vmatprep.subr.mxu0 0.0
    %1208 = vmatpush1.msra.mxu0 0.0
    %1209 = vmatprep.subr.mxu0 0.0
    %1210 = vmatpush1.msra.mxu0 0.0
    %1211 = vmatprep.subr.mxu0 0.0
    %1212 = vmatpush1.msra.mxu0 0.0
    %1213 = vmatprep.subr.mxu0 0.0
    %1214 = vmatpush1.msra.mxu0 0.0
    %1215 = vmatprep.subr.mxu0 0.0
    %1216 = vmatpush1.msra.mxu0 0.0
    %1217 = vmatprep.subr.mxu0 0.0
    %1218 = vmatpush1.msra.mxu0 0.0
    %1219 = vmatprep.subr.mxu0 0.0
    %1220 = vmatpush1.msra.mxu0 0.0
    %1221 = vmatprep.subr.mxu0 0.0
    %1222 = vmatpush1.msra.mxu0 0.0
    %1223 = vmatprep.subr.mxu0 0.0
    %1224 = vmatpush1.msra.mxu0 0.0
    %1225 = vmatprep.subr.mxu0 0.0
    %1226 = vmatpush1.msra.mxu0 0.0
    %1227 = vmatprep.subr.mxu0 0.0
    %1228 = vmatpush1.msra.mxu0 0.0
    %1229 = vmatprep.subr.mxu0 0.0
    %1230 = vmatpush1.msra.mxu0 0.0
    %1231 = vmatprep.subr.mxu0 0.0
    %1232 = vmatpush1.msra.mxu0 0.0
    %1233 = vmatprep.subr.mxu0 0.0
    %1234 = vmatpush1.msra.mxu0 0.0
    %1235 = vmatprep.subr.mxu0 0.0
    %1236 = vmatpush1.msra.mxu0 0.0
    %1237 = vmatprep.subr.mxu0 0.0
    %1238 = vmatpush1.msra.mxu0 0.0
    %1239 = vmatprep.subr.mxu0 0.0
    %1240 = vmatpush1.msra.mxu0 0.0
    %1241 = vmatprep.mubr.f32.mxu0 0.0
    %1242 = vmatmul.mubr.f32.gmra.mrb[0].mxu0 %v1175
    %v1243 = vpop.f32.mrb[0].mxu0
    %v1244 = vadd.f32 0.0, %v1243
    %v1245 = vpop.f32.mrb[0].mxu0
    %1246 = vdwg.mxu0
    %v1248 = vsel %vm519, %v827, 0
    %1250 = vmatprep.subr.mxu0 0.0
    %1251 = vmatpush1.msra.mxu0 %v937
    %1252 = vmatprep.subr.mxu0 0.0
    %1253 = vmatpush1.msra.mxu0 0.0
    %1254 = vmatprep.subr.mxu0 0.0
    %1255 = vmatpush1.msra.mxu0 0.0
    %1256 = vmatprep.subr.mxu0 0.0
    %1257 = vmatpush1.msra.mxu0 0.0
    %1258 = vmatprep.subr.mxu0 0.0
    %1259 = vmatpush1.msra.mxu0 0.0
    %1260 = vmatprep.subr.mxu0 0.0
    %1261 = vmatpush1.msra.mxu0 0.0
    %1262 = vmatprep.subr.mxu0 0.0
    %1263 = vmatpush1.msra.mxu0 0.0
    %1264 = vmatprep.subr.mxu0 0.0
    %1265 = vmatpush1.msra.mxu0 0.0
    %1266 = vmatprep.subr.mxu0 0.0
    %1267 = vmatpush1.msra.mxu0 0.0
    %1268 = vmatprep.subr.mxu0 0.0
    %1269 = vmatpush1.msra.mxu0 0.0
    %1270 = vmatprep.subr.mxu0 0.0
    %1271 = vmatpush1.msra.mxu0 0.0
    %1272 = vmatprep.subr.mxu0 0.0
    %1273 = vmatpush1.msra.mxu0 0.0
    %1274 = vmatprep.subr.mxu0 0.0
    %1275 = vmatpush1.msra.mxu0 0.0
    %1276 = vmatprep.subr.mxu0 0.0
    %1277 = vmatpush1.msra.mxu0 0.0
    %1278 = vmatprep.subr.mxu0 0.0
    %1279 = vmatpush1.msra.mxu0 0.0
    %1280 = vmatprep.subr.mxu0 0.0
    %1281 = vmatpush1.msra.mxu0 0.0
    %1282 = vmatprep.subr.mxu0 0.0
    %1283 = vmatpush1.msra.mxu0 0.0
    %1284 = vmatprep.subr.mxu0 0.0
    %1285 = vmatpush1.msra.mxu0 0.0
    %1286 = vmatprep.subr.mxu0 0.0
    %1287 = vmatpush1.msra.mxu0 0.0
    %1288 = vmatprep.subr.mxu0 0.0
    %1289 = vmatpush1.msra.mxu0 0.0
    %1290 = vmatprep.subr.mxu0 0.0
    %1291 = vmatpush1.msra.mxu0 0.0
    %1292 = vmatprep.subr.mxu0 0.0
    %1293 = vmatpush1.msra.mxu0 0.0
    %1294 = vmatprep.subr.mxu0 0.0
    %1295 = vmatpush1.msra.mxu0 0.0
    %1296 = vmatprep.subr.mxu0 0.0
    %1297 = vmatpush1.msra.mxu0 0.0
    %1298 = vmatprep.subr.mxu0 0.0
    %1299 = vmatpush1.msra.mxu0 0.0
    %1300 = vmatprep.subr.mxu0 0.0
    %1301 = vmatpush1.msra.mxu0 0.0
    %1302 = vmatprep.subr.mxu0 0.0
    %1303 = vmatpush1.msra.mxu0 0.0
    %1304 = vmatprep.subr.mxu0 0.0
    %1305 = vmatpush1.msra.mxu0 0.0
    %1306 = vmatprep.subr.mxu0 0.0
    %1307 = vmatpush1.msra.mxu0 0.0
    %1308 = vmatprep.subr.mxu0 0.0
    %1309 = vmatpush1.msra.mxu0 0.0
    %1310 = vmatprep.subr.mxu0 0.0
    %1311 = vmatpush1.msra.mxu0 0.0
    %1312 = vmatprep.subr.mxu0 0.0
    %1313 = vmatpush1.msra.mxu0 0.0
    %1314 = vmatprep.mubr.f32.mxu0 0.0
    %1315 = vmatmul.mubr.f32.gmra.mrb[0].mxu0 %v1248
    %v1316 = vpop.f32.mrb[0].mxu0
    %v1317 = vadd.f32 0.0, %v1316
    %v1318 = vpop.f32.mrb[0].mxu0
    %1319 = vdwg.mxu0
    %v1321 = vsel %vm519, %v829, 0
    %1323 = vmatprep.subr.mxu0 0.0
    %1324 = vmatpush1.msra.mxu0 %v942
    %1325 = vmatprep.subr.mxu0 0.0
    %1326 = vmatpush1.msra.mxu0 0.0
    %1327 = vmatprep.subr.mxu0 0.0
    %1328 = vmatpush1.msra.mxu0 0.0
    %1329 = vmatprep.subr.mxu0 0.0
    %1330 = vmatpush1.msra.mxu0 0.0
    %1331 = vmatprep.subr.mxu0 0.0
    %1332 = vmatpush1.msra.mxu0 0.0
    %1333 = vmatprep.subr.mxu0 0.0
    %1334 = vmatpush1.msra.mxu0 0.0
    %1335 = vmatprep.subr.mxu0 0.0
    %1336 = vmatpush1.msra.mxu0 0.0
    %1337 = vmatprep.subr.mxu0 0.0
    %1338 = vmatpush1.msra.mxu0 0.0
    %1339 = vmatprep.subr.mxu0 0.0
    %1340 = vmatpush1.msra.mxu0 0.0
    %1341 = vmatprep.subr.mxu0 0.0
    %1342 = vmatpush1.msra.mxu0 0.0
    %1343 = vmatprep.subr.mxu0 0.0
    %1344 = vmatpush1.msra.mxu0 0.0
    %1345 = vmatprep.subr.mxu0 0.0
    %1346 = vmatpush1.msra.mxu0 0.0
    %1347 = vmatprep.subr.mxu0 0.0
    %1348 = vmatpush1.msra.mxu0 0.0
    %1349 = vmatprep.subr.mxu0 0.0
    %1350 = vmatpush1.msra.mxu0 0.0
    %1351 = vmatprep.subr.mxu0 0.0
    %1352 = vmatpush1.msra.mxu0 0.0
    %1353 = vmatprep.subr.mxu0 0.0
    %1354 = vmatpush1.msra.mxu0 0.0
    %1355 = vmatprep.subr.mxu0 0.0
    %1356 = vmatpush1.msra.mxu0 0.0
    %1357 = vmatprep.subr.mxu0 0.0
    %1358 = vmatpush1.msra.mxu0 0.0
    %1359 = vmatprep.subr.mxu0 0.0
    %1360 = vmatpush1.msra.mxu0 0.0
    %1361 = vmatprep.subr.mxu0 0.0
    %1362 = vmatpush1.msra.mxu0 0.0
    %1363 = vmatprep.subr.mxu0 0.0
    %1364 = vmatpush1.msra.mxu0 0.0
    %1365 = vmatprep.subr.mxu0 0.0
    %1366 = vmatpush1.msra.mxu0 0.0
    %1367 = vmatprep.subr.mxu0 0.0
    %1368 = vmatpush1.msra.mxu0 0.0
    %1369 = vmatprep.subr.mxu0 0.0
    %1370 = vmatpush1.msra.mxu0 0.0
    %1371 = vmatprep.subr.mxu0 0.0
    %1372 = vmatpush1.msra.mxu0 0.0
    %1373 = vmatprep.subr.mxu0 0.0
    %1374 = vmatpush1.msra.mxu0 0.0
    %1375 = vmatprep.subr.mxu0 0.0
    %1376 = vmatpush1.msra.mxu0 0.0
    %1377 = vmatprep.subr.mxu0 0.0
    %1378 = vmatpush1.msra.mxu0 0.0
    %1379 = vmatprep.subr.mxu0 0.0
    %1380 = vmatpush1.msra.mxu0 0.0
    %1381 = vmatprep.subr.mxu0 0.0
    %1382 = vmatpush1.msra.mxu0 0.0
    %1383 = vmatprep.subr.mxu0 0.0
    %1384 = vmatpush1.msra.mxu0 0.0
    %1385 = vmatprep.subr.mxu0 0.0
    %1386 = vmatpush1.msra.mxu0 0.0
    %1387 = vmatprep.mubr.f32.mxu0 0.0
    %1388 = vmatmul.mubr.f32.gmra.mrb[0].mxu0 %v1321
    %v1389 = vpop.f32.mrb[0].mxu0
    %v1390 = vadd.f32 0.0, %v1389
    %v1391 = vpop.f32.mrb[0].mxu0
    %1392 = vdwg.mxu0
    %v1394 = vsel %vm519, %v831, 0
    %1396 = vmatprep.subr.mxu0 0.0
    %1397 = vmatpush1.msra.mxu0 %v947
    %1398 = vmatprep.subr.mxu0 0.0
    %1399 = vmatpush1.msra.mxu0 0.0
    %1400 = vmatprep.subr.mxu0 0.0
    %1401 = vmatpush1.msra.mxu0 0.0
    %1402 = vmatprep.subr.mxu0 0.0
    %1403 = vmatpush1.msra.mxu0 0.0
    %1404 = vmatprep.subr.mxu0 0.0
    %1405 = vmatpush1.msra.mxu0 0.0
    %1406 = vmatprep.subr.mxu0 0.0
    %1407 = vmatpush1.msra.mxu0 0.0
    %1408 = vmatprep.subr.mxu0 0.0
    %1409 = vmatpush1.msra.mxu0 0.0
    %1410 = vmatprep.subr.mxu0 0.0
    %1411 = vmatpush1.msra.mxu0 0.0
    %1412 = vmatprep.subr.mxu0 0.0
    %1413 = vmatpush1.msra.mxu0 0.0
    %1414 = vmatprep.subr.mxu0 0.0
    %1415 = vmatpush1.msra.mxu0 0.0
    %1416 = vmatprep.subr.mxu0 0.0
    %1417 = vmatpush1.msra.mxu0 0.0
    %1418 = vmatprep.subr.mxu0 0.0
    %1419 = vmatpush1.msra.mxu0 0.0
    %1420 = vmatprep.subr.mxu0 0.0
    %1421 = vmatpush1.msra.mxu0 0.0
    %1422 = vmatprep.subr.mxu0 0.0
    %1423 = vmatpush1.msra.mxu0 0.0
    %1424 = vmatprep.subr.mxu0 0.0
    %1425 = vmatpush1.msra.mxu0 0.0
    %1426 = vmatprep.subr.mxu0 0.0
    %1427 = vmatpush1.msra.mxu0 0.0
    %1428 = vmatprep.subr.mxu0 0.0
    %1429 = vmatpush1.msra.mxu0 0.0
    %1430 = vmatprep.subr.mxu0 0.0
    %1431 = vmatpush1.msra.mxu0 0.0
    %1432 = vmatprep.subr.mxu0 0.0
    %1433 = vmatpush1.msra.mxu0 0.0
    %1434 = vmatprep.subr.mxu0 0.0
    %1435 = vmatpush1.msra.mxu0 0.0
    %1436 = vmatprep.subr.mxu0 0.0
    %1437 = vmatpush1.msra.mxu0 0.0
    %1438 = vmatprep.subr.mxu0 0.0
    %1439 = vmatpush1.msra.mxu0 0.0
    %1440 = vmatprep.subr.mxu0 0.0
    %1441 = vmatpush1.msra.mxu0 0.0
    %1442 = vmatprep.subr.mxu0 0.0
    %1443 = vmatpush1.msra.mxu0 0.0
    %1444 = vmatprep.subr.mxu0 0.0
    %1445 = vmatpush1.msra.mxu0 0.0
    %1446 = vmatprep.subr.mxu0 0.0
    %1447 = vmatpush1.msra.mxu0 0.0
    %1448 = vmatprep.subr.mxu0 0.0
    %1449 = vmatpush1.msra.mxu0 0.0
    %1450 = vmatprep.subr.mxu0 0.0
    %1451 = vmatpush1.msra.mxu0 0.0
    %1452 = vmatprep.subr.mxu0 0.0
    %1453 = vmatpush1.msra.mxu0 0.0
    %1454 = vmatprep.subr.mxu0 0.0
    %1455 = vmatpush1.msra.mxu0 0.0
    %1456 = vmatprep.subr.mxu0 0.0
    %1457 = vmatpush1.msra.mxu0 0.0
    %1458 = vmatprep.subr.mxu0 0.0
    %1459 = vmatpush1.msra.mxu0 0.0
    %1460 = vmatprep.mubr.f32.mxu0 0.0
    %1461 = vmatmul.mubr.f32.gmra.mrb[0].mxu0 %v1394
    %v1462 = vpop.f32.mrb[0].mxu0
    %v1463 = vadd.f32 0.0, %v1462
    %v1464 = vpop.f32.mrb[0].mxu0
    %1465 = vdwg.mxu0
    %v1467 = vsel %vm519, %v833, 0
    %1469 = vmatprep.subr.mxu0 0.0
    %1470 = vmatpush1.msra.mxu0 %v952
    %1471 = vmatprep.subr.mxu0 0.0
    %1472 = vmatpush1.msra.mxu0 0.0
    %1473 = vmatprep.subr.mxu0 0.0
    %1474 = vmatpush1.msra.mxu0 0.0
    %1475 = vmatprep.subr.mxu0 0.0
    %1476 = vmatpush1.msra.mxu0 0.0
    %1477 = vmatprep.subr.mxu0 0.0
    %1478 = vmatpush1.msra.mxu0 0.0
    %1479 = vmatprep.subr.mxu0 0.0
    %1480 = vmatpush1.msra.mxu0 0.0
    %1481 = vmatprep.subr.mxu0 0.0
    %1482 = vmatpush1.msra.mxu0 0.0
    %1483 = vmatprep.subr.mxu0 0.0
    %1484 = vmatpush1.msra.mxu0 0.0
    %1485 = vmatprep.subr.mxu0 0.0
    %1486 = vmatpush1.msra.mxu0 0.0
    %1487 = vmatprep.subr.mxu0 0.0
    %1488 = vmatpush1.msra.mxu0 0.0
    %1489 = vmatprep.subr.mxu0 0.0
    %1490 = vmatpush1.msra.mxu0 0.0
    %1491 = vmatprep.subr.mxu0 0.0
    %1492 = vmatpush1.msra.mxu0 0.0
    %1493 = vmatprep.subr.mxu0 0.0
    %1494 = vmatpush1.msra.mxu0 0.0
    %1495 = vmatprep.subr.mxu0 0.0
    %1496 = vmatpush1.msra.mxu0 0.0
    %1497 = vmatprep.subr.mxu0 0.0
    %1498 = vmatpush1.msra.mxu0 0.0
    %1499 = vmatprep.subr.mxu0 0.0
    %1500 = vmatpush1.msra.mxu0 0.0
    %1501 = vmatprep.subr.mxu0 0.0
    %1502 = vmatpush1.msra.mxu0 0.0
    %1503 = vmatprep.subr.mxu0 0.0
    %1504 = vmatpush1.msra.mxu0 0.0
    %1505 = vmatprep.subr.mxu0 0.0
    %1506 = vmatpush1.msra.mxu0 0.0
    %1507 = vmatprep.subr.mxu0 0.0
    %1508 = vmatpush1.msra.mxu0 0.0
    %1509 = vmatprep.subr.mxu0 0.0
    %1510 = vmatpush1.msra.mxu0 0.0
    %1511 = vmatprep.subr.mxu0 0.0
    %1512 = vmatpush1.msra.mxu0 0.0
    %1513 = vmatprep.subr.mxu0 0.0
    %1514 = vmatpush1.msra.mxu0 0.0
    %1515 = vmatprep.subr.mxu0 0.0
    %1516 = vmatpush1.msra.mxu0 0.0
    %1517 = vmatprep.subr.mxu0 0.0
    %1518 = vmatpush1.msra.mxu0 0.0
    %1519 = vmatprep.subr.mxu0 0.0
    %1520 = vmatpush1.msra.mxu0 0.0
    %1521 = vmatprep.subr.mxu0 0.0
    %1522 = vmatpush1.msra.mxu0 0.0
    %1523 = vmatprep.subr.mxu0 0.0
    %1524 = vmatpush1.msra.mxu0 0.0
    %1525 = vmatprep.subr.mxu0 0.0
    %1526 = vmatpush1.msra.mxu0 0.0
    %1527 = vmatprep.subr.mxu0 0.0
    %1528 = vmatpush1.msra.mxu0 0.0
    %1529 = vmatprep.subr.mxu0 0.0
    %1530 = vmatpush1.msra.mxu0 0.0
    %1531 = vmatprep.subr.mxu0 0.0
    %1532 = vmatpush1.msra.mxu0 0.0
    %1533 = vmatprep.mubr.f32.mxu0 0.0
    %1534 = vmatmul.mubr.f32.gmra.mrb[0].mxu0 %v1467
    %v1535 = vpop.f32.mrb[0].mxu0
    %v1536 = vadd.f32 0.0, %v1535
    %v1537 = vpop.f32.mrb[0].mxu0
    %1538 = vdwg.mxu0
    %v1539 = vlaneseq
    %v1540 = vshrl.u32 %v1539, 7
    %v1541 = vsub.s32 0, %v1540
    %v1542 = vrot.slane %v74, %v1541
    %v1544 = vsel %vm526, %v86, 0
    %vm1546 = vcmask 1044480
    %v1548 = vsel %vm1546, %v65, 0
    %1550 = vmatprep.subr.mxu0 0.0
    %1551 = vmatpush1.msra.mxu0 %v1548
    %1552 = vmatprep.subr.mxu0 0.0
    %1553 = vmatpush1.msra.mxu0 0.0
    %1554 = vmatprep.subr.mxu0 0.0
    %1555 = vmatpush1.msra.mxu0 0.0
    %1556 = vmatprep.subr.mxu0 0.0
    %1557 = vmatpush1.msra.mxu0 0.0
    %1558 = vmatprep.subr.mxu0 0.0
    %1559 = vmatpush1.msra.mxu0 0.0
    %1560 = vmatprep.subr.mxu0 0.0
    %1561 = vmatpush1.msra.mxu0 0.0
    %1562 = vmatprep.subr.mxu0 0.0
    %1563 = vmatpush1.msra.mxu0 0.0
    %1564 = vmatprep.subr.mxu0 0.0
    %1565 = vmatpush1.msra.mxu0 0.0
    %1566 = vmatprep.subr.mxu0 0.0
    %1567 = vmatpush1.msra.mxu0 0.0
    %1568 = vmatprep.subr.mxu0 0.0
    %1569 = vmatpush1.msra.mxu0 0.0
    %1570 = vmatprep.subr.mxu0 0.0
    %1571 = vmatpush1.msra.mxu0 0.0
    %1572 = vmatprep.subr.mxu0 0.0
    %1573 = vmatpush1.msra.mxu0 0.0
    %1574 = vmatprep.subr.mxu0 0.0
    %1575 = vmatpush1.msra.mxu0 0.0
    %1576 = vmatprep.subr.mxu0 0.0
    %1577 = vmatpush1.msra.mxu0 0.0
    %1578 = vmatprep.subr.mxu0 0.0
    %1579 = vmatpush1.msra.mxu0 0.0
    %1580 = vmatprep.subr.mxu0 0.0
    %1581 = vmatpush1.msra.mxu0 0.0
    %1582 = vmatprep.subr.mxu0 0.0
    %1583 = vmatpush1.msra.mxu0 0.0
    %1584 = vmatprep.subr.mxu0 0.0
    %1585 = vmatpush1.msra.mxu0 0.0
    %1586 = vmatprep.subr.mxu0 0.0
    %1587 = vmatpush1.msra.mxu0 0.0
    %1588 = vmatprep.subr.mxu0 0.0
    %1589 = vmatpush1.msra.mxu0 0.0
    %1590 = vmatprep.subr.mxu0 0.0
    %1591 = vmatpush1.msra.mxu0 0.0
    %1592 = vmatprep.subr.mxu0 0.0
    %1593 = vmatpush1.msra.mxu0 0.0
    %1594 = vmatprep.subr.mxu0 0.0
    %1595 = vmatpush1.msra.mxu0 0.0
    %1596 = vmatprep.subr.mxu0 0.0
    %1597 = vmatpush1.msra.mxu0 0.0
    %1598 = vmatprep.subr.mxu0 0.0
    %1599 = vmatpush1.msra.mxu0 0.0
    %1600 = vmatprep.subr.mxu0 0.0
    %1601 = vmatpush1.msra.mxu0 0.0
    %1602 = vmatprep.subr.mxu0 0.0
    %1603 = vmatpush1.msra.mxu0 0.0
    %1604 = vmatprep.subr.mxu0 0.0
    %1605 = vmatpush1.msra.mxu0 0.0
    %1606 = vmatprep.subr.mxu0 0.0
    %1607 = vmatpush1.msra.mxu0 0.0
    %1608 = vmatprep.subr.mxu0 0.0
    %1609 = vmatpush1.msra.mxu0 0.0
    %1610 = vmatprep.subr.mxu0 0.0
    %1611 = vmatpush1.msra.mxu0 0.0
    %1612 = vmatprep.subr.mxu0 0.0
    %1613 = vmatpush1.msra.mxu0 0.0
    %1614 = vmatprep.mubr.f32.mxu0 0.0
    %1615 = vmatmul.mubr.f32.gmra.mrb[0].mxu0 %v1544
    %v1616 = vpop.f32.mrb[0].mxu0
    %v1617 = vadd.f32 %v1542, %v1616
    %v1618 = vpop.f32.mrb[0].mxu0
    %1619 = vdwg.mxu0
    %v1621 = vrot.slane %v1617, 1
    %v1622 = vrot.slane %v1617, 2
    %v1623 = vrot.slane %v1617, 3
    %v1624 = vrot.slane %v1617, 4
    %v1625 = vrot.slane %v1617, 5
    %v1626 = vrot.slane %v1617, 6
    %v1627 = vrot.slane %v1617, 7
    %v1636 = vadd.f32 %v1025, %v1617
    %v1637 = vadd.f32 %v1098, %v1621
    %v1638 = vadd.f32 %v1171, %v1622
    %v1639 = vadd.f32 %v1244, %v1623
    %v1640 = vadd.f32 %v1317, %v1624
    %v1641 = vadd.f32 %v1390, %v1625
    %v1642 = vadd.f32 %v1463, %v1626
    %v1643 = vadd.f32 %v1536, %v1627
    %v1644 = vadd.f32 %v1025, %v1627
    %v1645 = vadd.f32 %v1098, %v1617
    %v1646 = vadd.f32 %v1171, %v1621
    %v1647 = vadd.f32 %v1244, %v1622
    %v1648 = vadd.f32 %v1317, %v1623
    %v1649 = vadd.f32 %v1390, %v1624
    %v1650 = vadd.f32 %v1463, %v1625
    %v1651 = vadd.f32 %v1536, %v1626
    %v1652 = vadd.f32 %v1025, %v1626
    %v1653 = vadd.f32 %v1098, %v1627
    %v1654 = vadd.f32 %v1171, %v1617
    %v1655 = vadd.f32 %v1244, %v1621
    %v1656 = vadd.f32 %v1317, %v1622
    %v1657 = vadd.f32 %v1390, %v1623
    %v1658 = vadd.f32 %v1463, %v1624
    %v1659 = vadd.f32 %v1536, %v1625
    %v1660 = vadd.f32 %v1025, %v1625
    %v1661 = vadd.f32 %v1098, %v1626
    %v1662 = vadd.f32 %v1171, %v1627
    %v1663 = vadd.f32 %v1244, %v1617
    %v1664 = vadd.f32 %v1317, %v1621
    %v1665 = vadd.f32 %v1390, %v1622
    %v1666 = vadd.f32 %v1463, %v1623
    %v1667 = vadd.f32 %v1536, %v1624
    %v1668 = vadd.f32 %v1025, %v1624
    %v1669 = vadd.f32 %v1098, %v1625
    %v1670 = vadd.f32 %v1171, %v1626
    %v1671 = vadd.f32 %v1244, %v1627
    %v1672 = vadd.f32 %v1317, %v1617
    %v1673 = vadd.f32 %v1390, %v1621
    %v1674 = vadd.f32 %v1463, %v1622
    %v1675 = vadd.f32 %v1536, %v1623
    %v1676 = vlaneseq
    %v1677 = vshrl.u32 %v1676, 7
    %v1678 = vsub.s32 0, %v1677
    %v1679 = vrot.slane %v75, %v1678
    %v1681 = vsel %vm120, 0.0, 0
    %1683 = vmatprep.subr.mxu0 0.0
    %1684 = vmatpush1.msra.mxu0 %v61
    %1685 = vmatprep.subr.mxu0 0.0
    %1686 = vmatpush1.msra.mxu0 %v62
    %1687 = vmatprep.subr.mxu0 0.0
    %1688 = vmatpush1.msra.mxu0 %v63
    %1689 = vmatprep.subr.mxu0 0.0
    %1690 = vmatpush1.msra.mxu0 %v64
    %1691 = vmatprep.subr.mxu0 0.0
    %1692 = vmatpush1.msra.mxu0 0.0
    %1693 = vmatprep.subr.mxu0 0.0
    %1694 = vmatpush1.msra.mxu0 0.0
    %1695 = vmatprep.subr.mxu0 0.0
    %1696 = vmatpush1.msra.mxu0 0.0
    %1697 = vmatprep.subr.mxu0 0.0
    %1698 = vmatpush1.msra.mxu0 0.0
    %1699 = vmatprep.subr.mxu0 0.0
    %1700 = vmatpush1.msra.mxu0 0.0
    %1701 = vmatprep.subr.mxu0 0.0
    %1702 = vmatpush1.msra.mxu0 0.0
    %1703 = vmatprep.subr.mxu0 0.0
    %1704 = vmatpush1.msra.mxu0 0.0
    %1705 = vmatprep.subr.mxu0 0.0
    %1706 = vmatpush1.msra.mxu0 0.0
    %1707 = vmatprep.subr.mxu0 0.0
    %1708 = vmatpush1.msra.mxu0 0.0
    %1709 = vmatprep.subr.mxu0 0.0
    %1710 = vmatpush1.msra.mxu0 0.0
    %1711 = vmatprep.subr.mxu0 0.0
    %1712 = vmatpush1.msra.mxu0 0.0
    %1713 = vmatprep.subr.mxu0 0.0
    %1714 = vmatpush1.msra.mxu0 0.0
    %1715 = vmatprep.subr.mxu0 0.0
    %1716 = vmatpush1.msra.mxu0 0.0
    %1717 = vmatprep.subr.mxu0 0.0
    %1718 = vmatpush1.msra.mxu0 0.0
    %1719 = vmatprep.subr.mxu0 0.0
    %1720 = vmatpush1.msra.mxu0 0.0
    %1721 = vmatprep.subr.mxu0 0.0
    %1722 = vmatpush1.msra.mxu0 0.0
    %1723 = vmatprep.subr.mxu0 0.0
    %1724 = vmatpush1.msra.mxu0 0.0
    %1725 = vmatprep.subr.mxu0 0.0
    %1726 = vmatpush1.msra.mxu0 0.0
    %1727 = vmatprep.subr.mxu0 0.0
    %1728 = vmatpush1.msra.mxu0 0.0
    %1729 = vmatprep.subr.mxu0 0.0
    %1730 = vmatpush1.msra.mxu0 0.0
    %1731 = vmatprep.subr.mxu0 0.0
    %1732 = vmatpush1.msra.mxu0 0.0
    %1733 = vmatprep.subr.mxu0 0.0
    %1734 = vmatpush1.msra.mxu0 0.0
    %1735 = vmatprep.subr.mxu0 0.0
    %1736 = vmatpush1.msra.mxu0 0.0
    %1737 = vmatprep.subr.mxu0 0.0
    %1738 = vmatpush1.msra.mxu0 0.0
    %1739 = vmatprep.subr.mxu0 0.0
    %1740 = vmatpush1.msra.mxu0 0.0
    %1741 = vmatprep.subr.mxu0 0.0
    %1742 = vmatpush1.msra.mxu0 0.0
    %1743 = vmatprep.subr.mxu0 0.0
    %1744 = vmatpush1.msra.mxu0 0.0
    %1745 = vmatprep.subr.mxu0 0.0
    %1746 = vmatpush1.msra.mxu0 0.0
    %1747 = vmatprep.mubr.f32.mxu0 0.0
    %1748 = vmatmul.mubr.f32.gmra.mrb[0].mxu0 %v1681
    %v1749 = vpop.f32.mrb[0].mxu0
    %v1750 = vadd.f32 %v1679, %v1749
    %v1751 = vpop.f32.mrb[0].mxu0
    %1752 = vdwg.mxu0
    %v1754 = vrot.slane %v1750, 1
    %v1755 = vrot.slane %v1750, 2
    %v1756 = vrot.slane %v1750, 3
    %v1757 = vrot.slane %v1750, 4
    %v1758 = vrot.slane %v1750, 5
    %v1759 = vrot.slane %v1750, 6
    %v1760 = vrot.slane %v1750, 7
    %v1769 = vadd.f32 %v1636, %v1750
    %v1770 = vadd.f32 %v1637, %v1754
    %v1771 = vadd.f32 %v1638, %v1755
    %v1772 = vadd.f32 %v1639, %v1756
    %v1773 = vadd.f32 %v1640, %v1757
    %v1774 = vadd.f32 %v1641, %v1758
    %v1775 = vadd.f32 %v1642, %v1759
    %v1776 = vadd.f32 %v1643, %v1760
    %v1777 = vxor.u32 %v1769, 2147483648
    %v1778 = vxor.u32 %v1770, 2147483648
    %v1779 = vxor.u32 %v1771, 2147483648
    %v1780 = vxor.u32 %v1772, 2147483648
    %v1781 = vxor.u32 %v1773, 2147483648
    %v1782 = vxor.u32 %v1774, 2147483648
    %v1783 = vxor.u32 %v1775, 2147483648
    %v1784 = vxor.u32 %v1776, 2147483648
    %v1785 = vmul.f32 %v1777, 1.442695
    %v1786 = vpow.pop %v1785
    %v1787 = vmul.f32 %v1778, 1.442695
    %v1788 = vpow.pop %v1787
    %v1789 = vmul.f32 %v1779, 1.442695
    %v1790 = vpow.pop %v1789
    %v1791 = vmul.f32 %v1780, 1.442695
    %v1792 = vpow.pop %v1791
    %v1793 = vmul.f32 %v1781, 1.442695
    %v1794 = vpow.pop %v1793
    %v1795 = vmul.f32 %v1782, 1.442695
    %v1796 = vpow.pop %v1795
    %v1797 = vmul.f32 %v1783, 1.442695
    %v1798 = vpow.pop %v1797
    %v1799 = vmul.f32 %v1784, 1.442695
    %v1800 = vpow.pop %v1799
    %v1801 = vadd.f32 %v1786, 1.0
    %v1802 = vadd.f32 %v1788, 1.0
    %v1803 = vadd.f32 %v1790, 1.0
    %v1804 = vadd.f32 %v1792, 1.0
    %v1805 = vadd.f32 %v1794, 1.0
    %v1806 = vadd.f32 %v1796, 1.0
    %v1807 = vadd.f32 %v1798, 1.0
    %v1808 = vadd.f32 %v1800, 1.0
    %v1809 = vrcp.pop %v1801
    %v1810 = vmul.f32 1.0, %v1809
    %v1811 = vrcp.pop %v1802
    %v1812 = vmul.f32 1.0, %v1811
    %v1813 = vrcp.pop %v1803
    %v1814 = vmul.f32 1.0, %v1813
    %v1815 = vrcp.pop %v1804
    %v1816 = vmul.f32 1.0, %v1815
    %v1817 = vrcp.pop %v1805
    %v1818 = vmul.f32 1.0, %v1817
    %v1819 = vrcp.pop %v1806
    %v1820 = vmul.f32 1.0, %v1819
    %v1821 = vrcp.pop %v1807
    %v1822 = vmul.f32 1.0, %v1821
    %v1823 = vrcp.pop %v1808
    %v1824 = vmul.f32 1.0, %v1823
    %1825 = vrot.lane.b32.xlu0 %v1750, 64
    %v1826 = vpop.permute.xlu0 %1825
    %1827 = vrot.lane.b32.xlu0 %v1754, 64
    %v1828 = vpop.permute.xlu0 %1827
    %1829 = vrot.lane.b32.xlu0 %v1755, 64
    %v1830 = vpop.permute.xlu0 %1829
    %1831 = vrot.lane.b32.xlu0 %v1756, 64
    %v1832 = vpop.permute.xlu0 %1831
    %1833 = vrot.lane.b32.xlu0 %v1757, 64
    %v1834 = vpop.permute.xlu0 %1833
    %1835 = vrot.lane.b32.xlu0 %v1758, 64
    %v1836 = vpop.permute.xlu0 %1835
    %1837 = vrot.lane.b32.xlu0 %v1759, 64
    %v1838 = vpop.permute.xlu0 %1837
    %1839 = vrot.lane.b32.xlu0 %v1760, 64
    %v1840 = vpop.permute.xlu0 %1839
    %v1849 = vmul.f32 %v1810, %v1826
    %v1850 = vmul.f32 %v1812, %v1828
    %v1851 = vmul.f32 %v1814, %v1830
    %v1852 = vmul.f32 %v1816, %v1832
    %v1853 = vmul.f32 %v1818, %v1834
    %v1854 = vmul.f32 %v1820, %v1836
    %v1855 = vmul.f32 %v1822, %v1838
    %v1856 = vmul.f32 %v1824, %v1840
    %1865 = vrot.lane.b32.xlu0 %v1849, 64
    %v1866 = vpop.permute.xlu0 %1865
    %1867 = vrot.lane.b32.xlu0 %v1850, 64
    %v1868 = vpop.permute.xlu0 %1867
    %1869 = vrot.lane.b32.xlu0 %v1851, 64
    %v1870 = vpop.permute.xlu0 %1869
    %1871 = vrot.lane.b32.xlu0 %v1852, 64
    %v1872 = vpop.permute.xlu0 %1871
    %1873 = vrot.lane.b32.xlu0 %v1853, 64
    %v1874 = vpop.permute.xlu0 %1873
    %1875 = vrot.lane.b32.xlu0 %v1854, 64
    %v1876 = vpop.permute.xlu0 %1875
    %1877 = vrot.lane.b32.xlu0 %v1855, 64
    %v1878 = vpop.permute.xlu0 %1877
    %1879 = vrot.lane.b32.xlu0 %v1856, 64
    %v1880 = vpop.permute.xlu0 %1879
    %v1889 = vadd.f32 %v1636, %v1866
    %v1890 = vadd.f32 %v1637, %v1868
    %v1891 = vadd.f32 %v1638, %v1870
    %v1892 = vadd.f32 %v1639, %v1872
    %v1893 = vadd.f32 %v1640, %v1874
    %v1894 = vadd.f32 %v1641, %v1876
    %v1895 = vadd.f32 %v1642, %v1878
    %v1896 = vadd.f32 %v1643, %v1880
    %v1897 = vtanh.pop %v1889
    %v1898 = vtanh.pop %v1890
    %v1899 = vtanh.pop %v1891
    %v1900 = vtanh.pop %v1892
    %v1901 = vtanh.pop %v1893
    %v1902 = vtanh.pop %v1894
    %v1903 = vtanh.pop %v1895
    %v1904 = vtanh.pop %v1896
    %v1905 = vsub.f32 1.0, %v1810
    %v1906 = vsub.f32 1.0, %v1812
    %v1907 = vsub.f32 1.0, %v1814
    %v1908 = vsub.f32 1.0, %v1816
    %v1909 = vsub.f32 1.0, %v1818
    %v1910 = vsub.f32 1.0, %v1820
    %v1911 = vsub.f32 1.0, %v1822
    %v1912 = vsub.f32 1.0, %v1824
    %1921 = vrot.lane.b32.xlu0 %v1897, 96
    %v1922 = vpop.permute.xlu0 %1921
    %1923 = vrot.lane.b32.xlu0 %v1898, 96
    %v1924 = vpop.permute.xlu0 %1923
    %1925 = vrot.lane.b32.xlu0 %v1899, 96
    %v1926 = vpop.permute.xlu0 %1925
    %1927 = vrot.lane.b32.xlu0 %v1900, 96
    %v1928 = vpop.permute.xlu0 %1927
    %1929 = vrot.lane.b32.xlu0 %v1901, 96
    %v1930 = vpop.permute.xlu0 %1929
    %1931 = vrot.lane.b32.xlu0 %v1902, 96
    %v1932 = vpop.permute.xlu0 %1931
    %1933 = vrot.lane.b32.xlu0 %v1903, 96
    %v1934 = vpop.permute.xlu0 %1933
    %1935 = vrot.lane.b32.xlu0 %v1904, 96
    %v1936 = vpop.permute.xlu0 %1935
    %v1945 = vmul.f32 %v1905, %v1922
    %v1946 = vmul.f32 %v1906, %v1924
    %v1947 = vmul.f32 %v1907, %v1926
    %v1948 = vmul.f32 %v1908, %v1928
    %v1949 = vmul.f32 %v1909, %v1930
    %v1950 = vmul.f32 %v1910, %v1932
    %v1951 = vmul.f32 %v1911, %v1934
    %v1952 = vmul.f32 %v1912, %v1936
    %v1953 = vmul.f32 %v1810, 0.0
    %v1954 = vmul.f32 %v1812, 0.0
    %v1955 = vmul.f32 %v1814, 0.0
    %v1956 = vmul.f32 %v1816, 0.0
    %v1957 = vmul.f32 %v1818, 0.0
    %v1958 = vmul.f32 %v1820, 0.0
    %v1959 = vmul.f32 %v1822, 0.0
    %v1960 = vmul.f32 %v1824, 0.0
    %v1961 = vadd.f32 %v1945, %v1953
    %v1962 = vadd.f32 %v1946, %v1954
    %v1963 = vadd.f32 %v1947, %v1955
    %v1964 = vadd.f32 %v1948, %v1956
    %v1965 = vadd.f32 %v1949, %v1957
    %v1966 = vadd.f32 %v1950, %v1958
    %v1967 = vadd.f32 %v1951, %v1959
    %v1968 = vadd.f32 %v1952, %v1960
    %v1977 = vrot.slane %v1962, 7
    %v1978 = vsel %vm101, %v1977, %v1961
    %v1979 = vrot.slane %v1963, 6
    %v1980 = vsel %vm104, %v1979, %v1978
    %v1981 = vrot.slane %v1964, 5
    %v1982 = vsel %vm107, %v1981, %v1980
    %v1983 = vrot.slane %v1965, 4
    %v1984 = vsel %vm110, %v1983, %v1982
    %v1985 = vrot.slane %v1966, 3
    %v1986 = vsel %vm113, %v1985, %v1984
    %v1987 = vrot.slane %v1967, 2
    %v1988 = vsel %vm116, %v1987, %v1986
    %v1989 = vrot.slane %v1968, 1
    %v1990 = vsel %vm118, %v1989, %v1988
    %1991 = vrot.lane.b32.xlu0 %v1990, 96
    %v1992 = vpop.permute.xlu0 %1991
    %1994 = vst.msk [vmem:[#allocation2] sm:$0xff] %vm120, %v1992
    %v1995 = vsel %vm120, %v1992, 0
    %1997 = vmatprep.subr.mxu0 0.0
    %1998 = vmatpush1.msra.mxu0 %v61
    %1999 = vmatprep.subr.mxu0 0.0
    %2000 = vmatpush1.msra.mxu0 %v62
    %2001 = vmatprep.subr.mxu0 0.0
    %2002 = vmatpush1.msra.mxu0 %v63
    %2003 = vmatprep.subr.mxu0 0.0
    %2004 = vmatpush1.msra.mxu0 %v64
    %2005 = vmatprep.subr.mxu0 0.0
    %2006 = vmatpush1.msra.mxu0 0.0
    %2007 = vmatprep.subr.mxu0 0.0
    %2008 = vmatpush1.msra.mxu0 0.0
    %2009 = vmatprep.subr.mxu0 0.0
    %2010 = vmatpush1.msra.mxu0 0.0
    %2011 = vmatprep.subr.mxu0 0.0
    %2012 = vmatpush1.msra.mxu0 0.0
    %2013 = vmatprep.subr.mxu0 0.0
    %2014 = vmatpush1.msra.mxu0 0.0
    %2015 = vmatprep.subr.mxu0 0.0
    %2016 = vmatpush1.msra.mxu0 0.0
    %2017 = vmatprep.subr.mxu0 0.0
    %2018 = vmatpush1.msra.mxu0 0.0
    %2019 = vmatprep.subr.mxu0 0.0
    %2020 = vmatpush1.msra.mxu0 0.0
    %2021 = vmatprep.subr.mxu0 0.0
    %2022 = vmatpush1.msra.mxu0 0.0
    %2023 = vmatprep.subr.mxu0 0.0
    %2024 = vmatpush1.msra.mxu0 0.0
    %2025 = vmatprep.subr.mxu0 0.0
    %2026 = vmatpush1.msra.mxu0 0.0
    %2027 = vmatprep.subr.mxu0 0.0
    %2028 = vmatpush1.msra.mxu0 0.0
    %2029 = vmatprep.subr.mxu0 0.0
    %2030 = vmatpush1.msra.mxu0 0.0
    %2031 = vmatprep.subr.mxu0 0.0
    %2032 = vmatpush1.msra.mxu0 0.0
    %2033 = vmatprep.subr.mxu0 0.0
    %2034 = vmatpush1.msra.mxu0 0.0
    %2035 = vmatprep.subr.mxu0 0.0
    %2036 = vmatpush1.msra.mxu0 0.0
    %2037 = vmatprep.subr.mxu0 0.0
    %2038 = vmatpush1.msra.mxu0 0.0
    %2039 = vmatprep.subr.mxu0 0.0
    %2040 = vmatpush1.msra.mxu0 0.0
    %2041 = vmatprep.subr.mxu0 0.0
    %2042 = vmatpush1.msra.mxu0 0.0
    %2043 = vmatprep.subr.mxu0 0.0
    %2044 = vmatpush1.msra.mxu0 0.0
    %2045 = vmatprep.subr.mxu0 0.0
    %2046 = vmatpush1.msra.mxu0 0.0
    %2047 = vmatprep.subr.mxu0 0.0
    %2048 = vmatpush1.msra.mxu0 0.0
    %2049 = vmatprep.subr.mxu0 0.0
    %2050 = vmatpush1.msra.mxu0 0.0
    %2051 = vmatprep.subr.mxu0 0.0
    %2052 = vmatpush1.msra.mxu0 0.0
    %2053 = vmatprep.subr.mxu0 0.0
    %2054 = vmatpush1.msra.mxu0 0.0
    %2055 = vmatprep.subr.mxu0 0.0
    %2056 = vmatpush1.msra.mxu0 0.0
    %2057 = vmatprep.subr.mxu0 0.0
    %2058 = vmatpush1.msra.mxu0 0.0
    %2059 = vmatprep.subr.mxu0 0.0
    %2060 = vmatpush1.msra.mxu0 0.0
    %2061 = vmatprep.mubr.f32.mxu0 0.0
    %2062 = vmatmul.mubr.f32.gmra.mrb[0].mxu0 %v1995
    %v2063 = vpop.f32.mrb[0].mxu0
    %v2064 = vadd.f32 %v1679, %v2063
    %v2065 = vpop.f32.mrb[0].mxu0
    %2066 = vdwg.mxu0
    %v2068 = vrot.slane %v2064, 7
    %v2069 = vrot.slane %v2064, 1
    %v2070 = vrot.slane %v2064, 2
    %v2071 = vrot.slane %v2064, 3
    %v2072 = vrot.slane %v2064, 4
    %v2073 = vrot.slane %v2064, 5
    %v2074 = vrot.slane %v2064, 6
    %v2083 = vadd.f32 %v1644, %v2068
    %v2084 = vadd.f32 %v1645, %v2064
    %v2085 = vadd.f32 %v1646, %v2069
    %v2086 = vadd.f32 %v1647, %v2070
    %v2087 = vadd.f32 %v1648, %v2071
    %v2088 = vadd.f32 %v1649, %v2072
    %v2089 = vadd.f32 %v1650, %v2073
    %v2090 = vadd.f32 %v1651, %v2074
    %v2091 = vxor.u32 %v2083, 2147483648
    %v2092 = vxor.u32 %v2084, 2147483648
    %v2093 = vxor.u32 %v2085, 2147483648
    %v2094 = vxor.u32 %v2086, 2147483648
    %v2095 = vxor.u32 %v2087, 2147483648
    %v2096 = vxor.u32 %v2088, 2147483648
    %v2097 = vxor.u32 %v2089, 2147483648
    %v2098 = vxor.u32 %v2090, 2147483648
    %v2099 = vmul.f32 %v2091, 1.442695
    %v2100 = vpow.pop %v2099
    %v2101 = vmul.f32 %v2092, 1.442695
    %v2102 = vpow.pop %v2101
    %v2103 = vmul.f32 %v2093, 1.442695
    %v2104 = vpow.pop %v2103
    %v2105 = vmul.f32 %v2094, 1.442695
    %v2106 = vpow.pop %v2105
    %v2107 = vmul.f32 %v2095, 1.442695
    %v2108 = vpow.pop %v2107
    %v2109 = vmul.f32 %v2096, 1.442695
    %v2110 = vpow.pop %v2109
    %v2111 = vmul.f32 %v2097, 1.442695
    %v2112 = vpow.pop %v2111
    %v2113 = vmul.f32 %v2098, 1.442695
    %v2114 = vpow.pop %v2113
    %v2115 = vadd.f32 %v2100, 1.0
    %v2116 = vadd.f32 %v2102, 1.0
    %v2117 = vadd.f32 %v2104, 1.0
    %v2118 = vadd.f32 %v2106, 1.0
    %v2119 = vadd.f32 %v2108, 1.0
    %v2120 = vadd.f32 %v2110, 1.0
    %v2121 = vadd.f32 %v2112, 1.0
    %v2122 = vadd.f32 %v2114, 1.0
    %v2123 = vrcp.pop %v2115
    %v2124 = vmul.f32 1.0, %v2123
    %v2125 = vrcp.pop %v2116
    %v2126 = vmul.f32 1.0, %v2125
    %v2127 = vrcp.pop %v2117
    %v2128 = vmul.f32 1.0, %v2127
    %v2129 = vrcp.pop %v2118
    %v2130 = vmul.f32 1.0, %v2129
    %v2131 = vrcp.pop %v2119
    %v2132 = vmul.f32 1.0, %v2131
    %v2133 = vrcp.pop %v2120
    %v2134 = vmul.f32 1.0, %v2133
    %v2135 = vrcp.pop %v2121
    %v2136 = vmul.f32 1.0, %v2135
    %v2137 = vrcp.pop %v2122
    %v2138 = vmul.f32 1.0, %v2137
    %2139 = vrot.lane.b32.xlu0 %v2068, 64
    %v2140 = vpop.permute.xlu0 %2139
    %2141 = vrot.lane.b32.xlu0 %v2064, 64
    %v2142 = vpop.permute.xlu0 %2141
    %2143 = vrot.lane.b32.xlu0 %v2069, 64
    %v2144 = vpop.permute.xlu0 %2143
    %2145 = vrot.lane.b32.xlu0 %v2070, 64
    %v2146 = vpop.permute.xlu0 %2145
    %2147 = vrot.lane.b32.xlu0 %v2071, 64
    %v2148 = vpop.permute.xlu0 %2147
    %2149 = vrot.lane.b32.xlu0 %v2072, 64
    %v2150 = vpop.permute.xlu0 %2149
    %2151 = vrot.lane.b32.xlu0 %v2073, 64
    %v2152 = vpop.permute.xlu0 %2151
    %2153 = vrot.lane.b32.xlu0 %v2074, 64
    %v2154 = vpop.permute.xlu0 %2153
    %v2163 = vmul.f32 %v2124, %v2140
    %v2164 = vmul.f32 %v2126, %v2142
    %v2165 = vmul.f32 %v2128, %v2144
    %v2166 = vmul.f32 %v2130, %v2146
    %v2167 = vmul.f32 %v2132, %v2148
    %v2168 = vmul.f32 %v2134, %v2150
    %v2169 = vmul.f32 %v2136, %v2152
    %v2170 = vmul.f32 %v2138, %v2154
    %2179 = vrot.lane.b32.xlu0 %v2163, 64
    %v2180 = vpop.permute.xlu0 %2179
    %2181 = vrot.lane.b32.xlu0 %v2164, 64
    %v2182 = vpop.permute.xlu0 %2181
    %2183 = vrot.lane.b32.xlu0 %v2165, 64
    %v2184 = vpop.permute.xlu0 %2183
    %2185 = vrot.lane.b32.xlu0 %v2166, 64
    %v2186 = vpop.permute.xlu0 %2185
    %2187 = vrot.lane.b32.xlu0 %v2167, 64
    %v2188 = vpop.permute.xlu0 %2187
    %2189 = vrot.lane.b32.xlu0 %v2168, 64
    %v2190 = vpop.permute.xlu0 %2189
    %2191 = vrot.lane.b32.xlu0 %v2169, 64
    %v2192 = vpop.permute.xlu0 %2191
    %2193 = vrot.lane.b32.xlu0 %v2170, 64
    %v2194 = vpop.permute.xlu0 %2193
    %v2203 = vadd.f32 %v1644, %v2180
    %v2204 = vadd.f32 %v1645, %v2182
    %v2205 = vadd.f32 %v1646, %v2184
    %v2206 = vadd.f32 %v1647, %v2186
    %v2207 = vadd.f32 %v1648, %v2188
    %v2208 = vadd.f32 %v1649, %v2190
    %v2209 = vadd.f32 %v1650, %v2192
    %v2210 = vadd.f32 %v1651, %v2194
    %v2211 = vtanh.pop %v2203
    %v2212 = vtanh.pop %v2204
    %v2213 = vtanh.pop %v2205
    %v2214 = vtanh.pop %v2206
    %v2215 = vtanh.pop %v2207
    %v2216 = vtanh.pop %v2208
    %v2217 = vtanh.pop %v2209
    %v2218 = vtanh.pop %v2210
    %v2219 = vsub.f32 1.0, %v2124
    %v2220 = vsub.f32 1.0, %v2126
    %v2221 = vsub.f32 1.0, %v2128
    %v2222 = vsub.f32 1.0, %v2130
    %v2223 = vsub.f32 1.0, %v2132
    %v2224 = vsub.f32 1.0, %v2134
    %v2225 = vsub.f32 1.0, %v2136
    %v2226 = vsub.f32 1.0, %v2138
    %2235 = vrot.lane.b32.xlu0 %v2211, 96
    %v2236 = vpop.permute.xlu0 %2235
    %2237 = vrot.lane.b32.xlu0 %v2212, 96
    %v2238 = vpop.permute.xlu0 %2237
    %2239 = vrot.lane.b32.xlu0 %v2213, 96
    %v2240 = vpop.permute.xlu0 %2239
    %2241 = vrot.lane.b32.xlu0 %v2214, 96
    %v2242 = vpop.permute.xlu0 %2241
    %2243 = vrot.lane.b32.xlu0 %v2215, 96
    %v2244 = vpop.permute.xlu0 %2243
    %2245 = vrot.lane.b32.xlu0 %v2216, 96
    %v2246 = vpop.permute.xlu0 %2245
    %2247 = vrot.lane.b32.xlu0 %v2217, 96
    %v2248 = vpop.permute.xlu0 %2247
    %2249 = vrot.lane.b32.xlu0 %v2218, 96
    %v2250 = vpop.permute.xlu0 %2249
    %v2259 = vmul.f32 %v2219, %v2236
    %v2260 = vmul.f32 %v2220, %v2238
    %v2261 = vmul.f32 %v2221, %v2240
    %v2262 = vmul.f32 %v2222, %v2242
    %v2263 = vmul.f32 %v2223, %v2244
    %v2264 = vmul.f32 %v2224, %v2246
    %v2265 = vmul.f32 %v2225, %v2248
    %v2266 = vmul.f32 %v2226, %v2250
    %v2267 = vrot.slane %v1961, 7
    %v2268 = vrot.slane %v1963, 7
    %v2269 = vrot.slane %v1964, 7
    %v2270 = vrot.slane %v1965, 7
    %v2271 = vrot.slane %v1966, 7
    %v2272 = vrot.slane %v1967, 7
    %v2273 = vrot.slane %v1968, 7
    %v2282 = vmul.f32 %v2124, %v2267
    %v2283 = vmul.f32 %v2126, %v1977
    %v2284 = vmul.f32 %v2128, %v2268
    %v2285 = vmul.f32 %v2130, %v2269
    %v2286 = vmul.f32 %v2132, %v2270
    %v2287 = vmul.f32 %v2134, %v2271
    %v2288 = vmul.f32 %v2136, %v2272
    %v2289 = vmul.f32 %v2138, %v2273
    %v2290 = vadd.f32 %v2259, %v2282
    %v2291 = vadd.f32 %v2260, %v2283
    %v2292 = vadd.f32 %v2261, %v2284
    %v2293 = vadd.f32 %v2262, %v2285
    %v2294 = vadd.f32 %v2263, %v2286
    %v2295 = vadd.f32 %v2264, %v2287
    %v2296 = vadd.f32 %v2265, %v2288
    %v2297 = vadd.f32 %v2266, %v2289
    %v2306 = vrot.slane %v2291, 7
    %v2307 = vsel %vm104, %v2306, %v2290
    %v2308 = vrot.slane %v2292, 6
    %v2309 = vsel %vm107, %v2308, %v2307
    %v2310 = vrot.slane %v2293, 5
    %v2311 = vsel %vm110, %v2310, %v2309
    %v2312 = vrot.slane %v2294, 4
    %v2313 = vsel %vm113, %v2312, %v2311
    %v2314 = vrot.slane %v2295, 3
    %v2315 = vsel %vm116, %v2314, %v2313
    %v2316 = vrot.slane %v2296, 2
    %v2317 = vsel %vm118, %v2316, %v2315
    %v2318 = vrot.slane %v2297, 1
    %2319 = vrot.lane.b32.xlu0 %v2317, 96
    %v2320 = vpop.permute.xlu0 %2319
    %2321 = vrot.lane.b32.xlu0 %v2318, 96
    %v2322 = vpop.permute.xlu0 %2321
    %vm2325 = vcmask 261121
    %2326 = vst.msk [vmem:[#allocation2 + $0x7] sm:$0xfe] %vm2325, %v2320
    %vm2327 = vcmask 253952
    %2328 = vst.msk [vmem:[#allocation2 + $0xf] sm:$0x1] %vm2327, %v2322
    %v2329 = vrot.slane %v2290, 1
    %v2330 = vsel %vm101, %v2291, %v2329
    %v2331 = vrot.slane %v2292, 7
    %v2332 = vsel %vm104, %v2331, %v2330
    %v2333 = vrot.slane %v2293, 6
    %v2334 = vsel %vm107, %v2333, %v2332
    %v2335 = vrot.slane %v2294, 5
    %v2336 = vsel %vm110, %v2335, %v2334
    %v2337 = vrot.slane %v2295, 4
    %v2338 = vsel %vm113, %v2337, %v2336
    %v2339 = vrot.slane %v2296, 3
    %v2340 = vsel %vm116, %v2339, %v2338
    %v2341 = vrot.slane %v2297, 2
    %v2342 = vsel %vm118, %v2341, %v2340
    %2343 = vrot.lane.b32.xlu0 %v2342, 96
    %v2344 = vpop.permute.xlu0 %2343
    %v2345 = vsel %vm120, %v2344, 0
    %2347 = vmatprep.subr.mxu0 0.0
    %2348 = vmatpush1.msra.mxu0 %v61
    %2349 = vmatprep.subr.mxu0 0.0
    %2350 = vmatpush1.msra.mxu0 %v62
    %2351 = vmatprep.subr.mxu0 0.0
    %2352 = vmatpush1.msra.mxu0 %v63
    %2353 = vmatprep.subr.mxu0 0.0
    %2354 = vmatpush1.msra.mxu0 %v64
    %2355 = vmatprep.subr.mxu0 0.0
    %2356 = vmatpush1.msra.mxu0 0.0
    %2357 = vmatprep.subr.mxu0 0.0
    %2358 = vmatpush1.msra.mxu0 0.0
    %2359 = vmatprep.subr.mxu0 0.0
    %2360 = vmatpush1.msra.mxu0 0.0
    %2361 = vmatprep.subr.mxu0 0.0
    %2362 = vmatpush1.msra.mxu0 0.0
    %2363 = vmatprep.subr.mxu0 0.0
    %2364 = vmatpush1.msra.mxu0 0.0
    %2365 = vmatprep.subr.mxu0 0.0
    %2366 = vmatpush1.msra.mxu0 0.0
    %2367 = vmatprep.subr.mxu0 0.0
    %2368 = vmatpush1.msra.mxu0 0.0
    %2369 = vmatprep.subr.mxu0 0.0
    %2370 = vmatpush1.msra.mxu0 0.0
    %2371 = vmatprep.subr.mxu0 0.0
    %2372 = vmatpush1.msra.mxu0 0.0
    %2373 = vmatprep.subr.mxu0 0.0
    %2374 = vmatpush1.msra.mxu0 0.0
    %2375 = vmatprep.subr.mxu0 0.0
    %2376 = vmatpush1.msra.mxu0 0.0
    %2377 = vmatprep.subr.mxu0 0.0
    %2378 = vmatpush1.msra.mxu0 0.0
    %2379 = vmatprep.subr.mxu0 0.0
    %2380 = vmatpush1.msra.mxu0 0.0
    %2381 = vmatprep.subr.mxu0 0.0
    %2382 = vmatpush1.msra.mxu0 0.0
    %2383 = vmatprep.subr.mxu0 0.0
    %2384 = vmatpush1.msra.mxu0 0.0
    %2385 = vmatprep.subr.mxu0 0.0
    %2386 = vmatpush1.msra.mxu0 0.0
    %2387 = vmatprep.subr.mxu0 0.0
    %2388 = vmatpush1.msra.mxu0 0.0
    %2389 = vmatprep.subr.mxu0 0.0
    %2390 = vmatpush1.msra.mxu0 0.0
    %2391 = vmatprep.subr.mxu0 0.0
    %2392 = vmatpush1.msra.mxu0 0.0
    %2393 = vmatprep.subr.mxu0 0.0
    %2394 = vmatpush1.msra.mxu0 0.0
    %2395 = vmatprep.subr.mxu0 0.0
    %2396 = vmatpush1.msra.mxu0 0.0
    %2397 = vmatprep.subr.mxu0 0.0
    %2398 = vmatpush1.msra.mxu0 0.0
    %2399 = vmatprep.subr.mxu0 0.0
    %2400 = vmatpush1.msra.mxu0 0.0
    %2401 = vmatprep.subr.mxu0 0.0
    %2402 = vmatpush1.msra.mxu0 0.0
    %2403 = vmatprep.subr.mxu0 0.0
    %2404 = vmatpush1.msra.mxu0 0.0
    %2405 = vmatprep.subr.mxu0 0.0
    %2406 = vmatpush1.msra.mxu0 0.0
    %2407 = vmatprep.subr.mxu0 0.0
    %2408 = vmatpush1.msra.mxu0 0.0
    %2409 = vmatprep.subr.mxu0 0.0
    %2410 = vmatpush1.msra.mxu0 0.0
    %2411 = vmatprep.mubr.f32.mxu0 0.0
    %2412 = vmatmul.mubr.f32.gmra.mrb[0].mxu0 %v2345
    %v2413 = vpop.f32.mrb[0].mxu0
    %v2414 = vadd.f32 %v1679, %v2413
    %v2415 = vpop.f32.mrb[0].mxu0
    %2416 = vdwg.mxu0
    %v2418 = vrot.slane %v2414, 6
    %v2419 = vrot.slane %v2414, 7
    %v2420 = vrot.slane %v2414, 1
    %v2421 = vrot.slane %v2414, 2
    %v2422 = vrot.slane %v2414, 3
    %v2423 = vrot.slane %v2414, 4
    %v2424 = vrot.slane %v2414, 5
    %v2433 = vadd.f32 %v1652, %v2418
    %v2434 = vadd.f32 %v1653, %v2419
    %v2435 = vadd.f32 %v1654, %v2414
    %v2436 = vadd.f32 %v1655, %v2420
    %v2437 = vadd.f32 %v1656, %v2421
    %v2438 = vadd.f32 %v1657, %v2422
    %v2439 = vadd.f32 %v1658, %v2423
    %v2440 = vadd.f32 %v1659, %v2424
    %v2441 = vxor.u32 %v2433, 2147483648
    %v2442 = vxor.u32 %v2434, 2147483648
    %v2443 = vxor.u32 %v2435, 2147483648
    %v2444 = vxor.u32 %v2436, 2147483648
    %v2445 = vxor.u32 %v2437, 2147483648
    %v2446 = vxor.u32 %v2438, 2147483648
    %v2447 = vxor.u32 %v2439, 2147483648
    %v2448 = vxor.u32 %v2440, 2147483648
    %v2449 = vmul.f32 %v2441, 1.442695
    %v2450 = vpow.pop %v2449
    %v2451 = vmul.f32 %v2442, 1.442695
    %v2452 = vpow.pop %v2451
    %v2453 = vmul.f32 %v2443, 1.442695
    %v2454 = vpow.pop %v2453
    %v2455 = vmul.f32 %v2444, 1.442695
    %v2456 = vpow.pop %v2455
    %v2457 = vmul.f32 %v2445, 1.442695
    %v2458 = vpow.pop %v2457
    %v2459 = vmul.f32 %v2446, 1.442695
    %v2460 = vpow.pop %v2459
    %v2461 = vmul.f32 %v2447, 1.442695
    %v2462 = vpow.pop %v2461
    %v2463 = vmul.f32 %v2448, 1.442695
    %v2464 = vpow.pop %v2463
    %v2465 = vadd.f32 %v2450, 1.0
    %v2466 = vadd.f32 %v2452, 1.0
    %v2467 = vadd.f32 %v2454, 1.0
    %v2468 = vadd.f32 %v2456, 1.0
    %v2469 = vadd.f32 %v2458, 1.0
    %v2470 = vadd.f32 %v2460, 1.0
    %v2471 = vadd.f32 %v2462, 1.0
    %v2472 = vadd.f32 %v2464, 1.0
    %v2473 = vrcp.pop %v2465
    %v2474 = vmul.f32 1.0, %v2473
    %v2475 = vrcp.pop %v2466
    %v2476 = vmul.f32 1.0, %v2475
    %v2477 = vrcp.pop %v2467
    %v2478 = vmul.f32 1.0, %v2477
    %v2479 = vrcp.pop %v2468
    %v2480 = vmul.f32 1.0, %v2479
    %v2481 = vrcp.pop %v2469
    %v2482 = vmul.f32 1.0, %v2481
    %v2483 = vrcp.pop %v2470
    %v2484 = vmul.f32 1.0, %v2483
    %v2485 = vrcp.pop %v2471
    %v2486 = vmul.f32 1.0, %v2485
    %v2487 = vrcp.pop %v2472
    %v2488 = vmul.f32 1.0, %v2487
    %2489 = vrot.lane.b32.xlu0 %v2418, 64
    %v2490 = vpop.permute.xlu0 %2489
    %2491 = vrot.lane.b32.xlu0 %v2419, 64
    %v2492 = vpop.permute.xlu0 %2491
    %2493 = vrot.lane.b32.xlu0 %v2414, 64
    %v2494 = vpop.permute.xlu0 %2493
    %2495 = vrot.lane.b32.xlu0 %v2420, 64
    %v2496 = vpop.permute.xlu0 %2495
    %2497 = vrot.lane.b32.xlu0 %v2421, 64
    %v2498 = vpop.permute.xlu0 %2497
    %2499 = vrot.lane.b32.xlu0 %v2422, 64
    %v2500 = vpop.permute.xlu0 %2499
    %2501 = vrot.lane.b32.xlu0 %v2423, 64
    %v2502 = vpop.permute.xlu0 %2501
    %2503 = vrot.lane.b32.xlu0 %v2424, 64
    %v2504 = vpop.permute.xlu0 %2503
    %v2513 = vmul.f32 %v2474, %v2490
    %v2514 = vmul.f32 %v2476, %v2492
    %v2515 = vmul.f32 %v2478, %v2494
    %v2516 = vmul.f32 %v2480, %v2496
    %v2517 = vmul.f32 %v2482, %v2498
    %v2518 = vmul.f32 %v2484, %v2500
    %v2519 = vmul.f32 %v2486, %v2502
    %v2520 = vmul.f32 %v2488, %v2504
    %2529 = vrot.lane.b32.xlu0 %v2513, 64
    %v2530 = vpop.permute.xlu0 %2529
    %2531 = vrot.lane.b32.xlu0 %v2514, 64
    %v2532 = vpop.permute.xlu0 %2531
    %2533 = vrot.lane.b32.xlu0 %v2515, 64
    %v2534 = vpop.permute.xlu0 %2533
    %2535 = vrot.lane.b32.xlu0 %v2516, 64
    %v2536 = vpop.permute.xlu0 %2535
    %2537 = vrot.lane.b32.xlu0 %v2517, 64
    %v2538 = vpop.permute.xlu0 %2537
    %2539 = vrot.lane.b32.xlu0 %v2518, 64
    %v2540 = vpop.permute.xlu0 %2539
    %2541 = vrot.lane.b32.xlu0 %v2519, 64
    %v2542 = vpop.permute.xlu0 %2541
    %2543 = vrot.lane.b32.xlu0 %v2520, 64
    %v2544 = vpop.permute.xlu0 %2543
    %v2553 = vadd.f32 %v1652, %v2530
    %v2554 = vadd.f32 %v1653, %v2532
    %v2555 = vadd.f32 %v1654, %v2534
    %v2556 = vadd.f32 %v1655, %v2536
    %v2557 = vadd.f32 %v1656, %v2538
    %v2558 = vadd.f32 %v1657, %v2540
    %v2559 = vadd.f32 %v1658, %v2542
    %v2560 = vadd.f32 %v1659, %v2544
    %v2561 = vtanh.pop %v2553
    %v2562 = vtanh.pop %v2554
    %v2563 = vtanh.pop %v2555
    %v2564 = vtanh.pop %v2556
    %v2565 = vtanh.pop %v2557
    %v2566 = vtanh.pop %v2558
    %v2567 = vtanh.pop %v2559
    %v2568 = vtanh.pop %v2560
    %v2569 = vsub.f32 1.0, %v2474
    %v2570 = vsub.f32 1.0, %v2476
    %v2571 = vsub.f32 1.0, %v2478
    %v2572 = vsub.f32 1.0, %v2480
    %v2573 = vsub.f32 1.0, %v2482
    %v2574 = vsub.f32 1.0, %v2484
    %v2575 = vsub.f32 1.0, %v2486
    %v2576 = vsub.f32 1.0, %v2488
    %2585 = vrot.lane.b32.xlu0 %v2561, 96
    %v2586 = vpop.permute.xlu0 %2585
    %2587 = vrot.lane.b32.xlu0 %v2562, 96
    %v2588 = vpop.permute.xlu0 %2587
    %2589 = vrot.lane.b32.xlu0 %v2563, 96
    %v2590 = vpop.permute.xlu0 %2589
    %2591 = vrot.lane.b32.xlu0 %v2564, 96
    %v2592 = vpop.permute.xlu0 %2591
    %2593 = vrot.lane.b32.xlu0 %v2565, 96
    %v2594 = vpop.permute.xlu0 %2593
    %2595 = vrot.lane.b32.xlu0 %v2566, 96
    %v2596 = vpop.permute.xlu0 %2595
    %2597 = vrot.lane.b32.xlu0 %v2567, 96
    %v2598 = vpop.permute.xlu0 %2597
    %2599 = vrot.lane.b32.xlu0 %v2568, 96
    %v2600 = vpop.permute.xlu0 %2599
    %v2609 = vmul.f32 %v2569, %v2586
    %v2610 = vmul.f32 %v2570, %v2588
    %v2611 = vmul.f32 %v2571, %v2590
    %v2612 = vmul.f32 %v2572, %v2592
    %v2613 = vmul.f32 %v2573, %v2594
    %v2614 = vmul.f32 %v2574, %v2596
    %v2615 = vmul.f32 %v2575, %v2598
    %v2616 = vmul.f32 %v2576, %v2600
    %v2617 = vrot.slane %v2290, 7
    %v2618 = vrot.slane %v2293, 7
    %v2619 = vrot.slane %v2294, 7
    %v2620 = vrot.slane %v2295, 7
    %v2621 = vrot.slane %v2296, 7
    %v2622 = vrot.slane %v2297, 7
    %v2631 = vmul.f32 %v2474, %v2617
    %v2632 = vmul.f32 %v2476, %v2306
    %v2633 = vmul.f32 %v2478, %v2331
    %v2634 = vmul.f32 %v2480, %v2618
    %v2635 = vmul.f32 %v2482, %v2619
    %v2636 = vmul.f32 %v2484, %v2620
    %v2637 = vmul.f32 %v2486, %v2621
    %v2638 = vmul.f32 %v2488, %v2622
    %v2639 = vadd.f32 %v2609, %v2631
    %v2640 = vadd.f32 %v2610, %v2632
    %v2641 = vadd.f32 %v2611, %v2633
    %v2642 = vadd.f32 %v2612, %v2634
    %v2643 = vadd.f32 %v2613, %v2635
    %v2644 = vadd.f32 %v2614, %v2636
    %v2645 = vadd.f32 %v2615, %v2637
    %v2646 = vadd.f32 %v2616, %v2638
    %v2655 = vrot.slane %v2640, 7
    %v2656 = vsel %vm107, %v2655, %v2639
    %v2657 = vrot.slane %v2641, 6
    %v2658 = vsel %vm110, %v2657, %v2656
    %v2659 = vrot.slane %v2642, 5
    %v2660 = vsel %vm113, %v2659, %v2658
    %v2661 = vrot.slane %v2643, 4
    %v2662 = vsel %vm116, %v2661, %v2660
    %v2663 = vrot.slane %v2644, 3
    %v2664 = vsel %vm118, %v2663, %v2662
    %v2665 = vrot.slane %v2645, 2
    %v2666 = vrot.slane %v2646, 1
    %v2667 = vsel %vm101, %v2666, %v2665
    %2668 = vrot.lane.b32.xlu0 %v2664, 96
    %v2669 = vpop.permute.xlu0 %2668
    %2670 = vrot.lane.b32.xlu0 %v2667, 96
    %v2671 = vpop.permute.xlu0 %2670
    %vm2674 = vcmask 261122
    %2675 = vst.msk [vmem:[#allocation2 + $0xe] sm:$0xfc] %vm2674, %v2669
    %vm2676 = vcmask 254976
    %2677 = vst.msk [vmem:[#allocation2 + $0x16] sm:$0x3] %vm2676, %v2671
    %v2678 = vrot.slane %v2639, 2
    %v2679 = vrot.slane %v2640, 1
    %v2680 = vsel %vm101, %v2679, %v2678
    %v2681 = vsel %vm104, %v2641, %v2680
    %v2682 = vrot.slane %v2642, 7
    %v2683 = vsel %vm107, %v2682, %v2681
    %v2684 = vrot.slane %v2643, 6
    %v2685 = vsel %vm110, %v2684, %v2683
    %v2686 = vrot.slane %v2644, 5
    %v2687 = vsel %vm113, %v2686, %v2685
    %v2688 = vrot.slane %v2645, 4
    %v2689 = vsel %vm116, %v2688, %v2687
    %v2690 = vrot.slane %v2646, 3
    %v2691 = vsel %vm118, %v2690, %v2689
    %2692 = vrot.lane.b32.xlu0 %v2691, 96
    %v2693 = vpop.permute.xlu0 %2692
    %v2694 = vsel %vm120, %v2693, 0
    %2696 = vmatprep.subr.mxu0 0.0
    %2697 = vmatpush1.msra.mxu0 %v61
    %2698 = vmatprep.subr.mxu0 0.0
    %2699 = vmatpush1.msra.mxu0 %v62
    %2700 = vmatprep.subr.mxu0 0.0
    %2701 = vmatpush1.msra.mxu0 %v63
    %2702 = vmatprep.subr.mxu0 0.0
    %2703 = vmatpush1.msra.mxu0 %v64
    %2704 = vmatprep.subr.mxu0 0.0
    %2705 = vmatpush1.msra.mxu0 0.0
    %2706 = vmatprep.subr.mxu0 0.0
    %2707 = vmatpush1.msra.mxu0 0.0
    %2708 = vmatprep.subr.mxu0 0.0
    %2709 = vmatpush1.msra.mxu0 0.0
    %2710 = vmatprep.subr.mxu0 0.0
    %2711 = vmatpush1.msra.mxu0 0.0
    %2712 = vmatprep.subr.mxu0 0.0
    %2713 = vmatpush1.msra.mxu0 0.0
    %2714 = vmatprep.subr.mxu0 0.0
    %2715 = vmatpush1.msra.mxu0 0.0
    %2716 = vmatprep.subr.mxu0 0.0
    %2717 = vmatpush1.msra.mxu0 0.0
    %2718 = vmatprep.subr.mxu0 0.0
    %2719 = vmatpush1.msra.mxu0 0.0
    %2720 = vmatprep.subr.mxu0 0.0
    %2721 = vmatpush1.msra.mxu0 0.0
    %2722 = vmatprep.subr.mxu0 0.0
    %2723 = vmatpush1.msra.mxu0 0.0
    %2724 = vmatprep.subr.mxu0 0.0
    %2725 = vmatpush1.msra.mxu0 0.0
    %2726 = vmatprep.subr.mxu0 0.0
    %2727 = vmatpush1.msra.mxu0 0.0
    %2728 = vmatprep.subr.mxu0 0.0
    %2729 = vmatpush1.msra.mxu0 0.0
    %2730 = vmatprep.subr.mxu0 0.0
    %2731 = vmatpush1.msra.mxu0 0.0
    %2732 = vmatprep.subr.mxu0 0.0
    %2733 = vmatpush1.msra.mxu0 0.0
    %2734 = vmatprep.subr.mxu0 0.0
    %2735 = vmatpush1.msra.mxu0 0.0
    %2736 = vmatprep.subr.mxu0 0.0
    %2737 = vmatpush1.msra.mxu0 0.0
    %2738 = vmatprep.subr.mxu0 0.0
    %2739 = vmatpush1.msra.mxu0 0.0
    %2740 = vmatprep.subr.mxu0 0.0
    %2741 = vmatpush1.msra.mxu0 0.0
    %2742 = vmatprep.subr.mxu0 0.0
    %2743 = vmatpush1.msra.mxu0 0.0
    %2744 = vmatprep.subr.mxu0 0.0
    %2745 = vmatpush1.msra.mxu0 0.0
    %2746 = vmatprep.subr.mxu0 0.0
    %2747 = vmatpush1.msra.mxu0 0.0
    %2748 = vmatprep.subr.mxu0 0.0
    %2749 = vmatpush1.msra.mxu0 0.0
    %2750 = vmatprep.subr.mxu0 0.0
    %2751 = vmatpush1.msra.mxu0 0.0
    %2752 = vmatprep.subr.mxu0 0.0
    %2753 = vmatpush1.msra.mxu0 0.0
    %2754 = vmatprep.subr.mxu0 0.0
    %2755 = vmatpush1.msra.mxu0 0.0
    %2756 = vmatprep.subr.mxu0 0.0
    %2757 = vmatpush1.msra.mxu0 0.0
    %2758 = vmatprep.subr.mxu0 0.0
    %2759 = vmatpush1.msra.mxu0 0.0
    %2760 = vmatprep.mubr.f32.mxu0 0.0
    %2761 = vmatmul.mubr.f32.gmra.mrb[0].mxu0 %v2694
    %v2762 = vpop.f32.mrb[0].mxu0
    %v2763 = vadd.f32 %v1679, %v2762
    %v2764 = vpop.f32.mrb[0].mxu0
    %2765 = vdwg.mxu0
    %v2767 = vrot.slane %v2763, 5
    %v2768 = vrot.slane %v2763, 6
    %v2769 = vrot.slane %v2763, 7
    %v2770 = vrot.slane %v2763, 1
    %v2771 = vrot.slane %v2763, 2
    %v2772 = vrot.slane %v2763, 3
    %v2773 = vrot.slane %v2763, 4
    %v2782 = vadd.f32 %v1660, %v2767
    %v2783 = vadd.f32 %v1661, %v2768
    %v2784 = vadd.f32 %v1662, %v2769
    %v2785 = vadd.f32 %v1663, %v2763
    %v2786 = vadd.f32 %v1664, %v2770
    %v2787 = vadd.f32 %v1665, %v2771
    %v2788 = vadd.f32 %v1666, %v2772
    %v2789 = vadd.f32 %v1667, %v2773
    %v2790 = vxor.u32 %v2782, 2147483648
    %v2791 = vxor.u32 %v2783, 2147483648
    %v2792 = vxor.u32 %v2784, 2147483648
    %v2793 = vxor.u32 %v2785, 2147483648
    %v2794 = vxor.u32 %v2786, 2147483648
    %v2795 = vxor.u32 %v2787, 2147483648
    %v2796 = vxor.u32 %v2788, 2147483648
    %v2797 = vxor.u32 %v2789, 2147483648
    %v2798 = vmul.f32 %v2790, 1.442695
    %v2799 = vpow.pop %v2798
    %v2800 = vmul.f32 %v2791, 1.442695
    %v2801 = vpow.pop %v2800
    %v2802 = vmul.f32 %v2792, 1.442695
    %v2803 = vpow.pop %v2802
    %v2804 = vmul.f32 %v2793, 1.442695
    %v2805 = vpow.pop %v2804
    %v2806 = vmul.f32 %v2794, 1.442695
    %v2807 = vpow.pop %v2806
    %v2808 = vmul.f32 %v2795, 1.442695
    %v2809 = vpow.pop %v2808
    %v2810 = vmul.f32 %v2796, 1.442695
    %v2811 = vpow.pop %v2810
    %v2812 = vmul.f32 %v2797, 1.442695
    %v2813 = vpow.pop %v2812
    %v2814 = vadd.f32 %v2799, 1.0
    %v2815 = vadd.f32 %v2801, 1.0
    %v2816 = vadd.f32 %v2803, 1.0
    %v2817 = vadd.f32 %v2805, 1.0
    %v2818 = vadd.f32 %v2807, 1.0
    %v2819 = vadd.f32 %v2809, 1.0
    %v2820 = vadd.f32 %v2811, 1.0
    %v2821 = vadd.f32 %v2813, 1.0
    %v2822 = vrcp.pop %v2814
    %v2823 = vmul.f32 1.0, %v2822
    %v2824 = vrcp.pop %v2815
    %v2825 = vmul.f32 1.0, %v2824
    %v2826 = vrcp.pop %v2816
    %v2827 = vmul.f32 1.0, %v2826
    %v2828 = vrcp.pop %v2817
    %v2829 = vmul.f32 1.0, %v2828
    %v2830 = vrcp.pop %v2818
    %v2831 = vmul.f32 1.0, %v2830
    %v2832 = vrcp.pop %v2819
    %v2833 = vmul.f32 1.0, %v2832
    %v2834 = vrcp.pop %v2820
    %v2835 = vmul.f32 1.0, %v2834
    %v2836 = vrcp.pop %v2821
    %v2837 = vmul.f32 1.0, %v2836
    %2838 = vrot.lane.b32.xlu0 %v2767, 64
    %v2839 = vpop.permute.xlu0 %2838
    %2840 = vrot.lane.b32.xlu0 %v2768, 64
    %v2841 = vpop.permute.xlu0 %2840
    %2842 = vrot.lane.b32.xlu0 %v2769, 64
    %v2843 = vpop.permute.xlu0 %2842
    %2844 = vrot.lane.b32.xlu0 %v2763, 64
    %v2845 = vpop.permute.xlu0 %2844
    %2846 = vrot.lane.b32.xlu0 %v2770, 64
    %v2847 = vpop.permute.xlu0 %2846
    %2848 = vrot.lane.b32.xlu0 %v2771, 64
    %v2849 = vpop.permute.xlu0 %2848
    %2850 = vrot.lane.b32.xlu0 %v2772, 64
    %v2851 = vpop.permute.xlu0 %2850
    %2852 = vrot.lane.b32.xlu0 %v2773, 64
    %v2853 = vpop.permute.xlu0 %2852
    %v2862 = vmul.f32 %v2823, %v2839
    %v2863 = vmul.f32 %v2825, %v2841
    %v2864 = vmul.f32 %v2827, %v2843
    %v2865 = vmul.f32 %v2829, %v2845
    %v2866 = vmul.f32 %v2831, %v2847
    %v2867 = vmul.f32 %v2833, %v2849
    %v2868 = vmul.f32 %v2835, %v2851
    %v2869 = vmul.f32 %v2837, %v2853
    %2878 = vrot.lane.b32.xlu0 %v2862, 64
    %v2879 = vpop.permute.xlu0 %2878
    %2880 = vrot.lane.b32.xlu0 %v2863, 64
    %v2881 = vpop.permute.xlu0 %2880
    %2882 = vrot.lane.b32.xlu0 %v2864, 64
    %v2883 = vpop.permute.xlu0 %2882
    %2884 = vrot.lane.b32.xlu0 %v2865, 64
    %v2885 = vpop.permute.xlu0 %2884
    %2886 = vrot.lane.b32.xlu0 %v2866, 64
    %v2887 = vpop.permute.xlu0 %2886
    %2888 = vrot.lane.b32.xlu0 %v2867, 64
    %v2889 = vpop.permute.xlu0 %2888
    %2890 = vrot.lane.b32.xlu0 %v2868, 64
    %v2891 = vpop.permute.xlu0 %2890
    %2892 = vrot.lane.b32.xlu0 %v2869, 64
    %v2893 = vpop.permute.xlu0 %2892
    %v2902 = vadd.f32 %v1660, %v2879
    %v2903 = vadd.f32 %v1661, %v2881
    %v2904 = vadd.f32 %v1662, %v2883
    %v2905 = vadd.f32 %v1663, %v2885
    %v2906 = vadd.f32 %v1664, %v2887
    %v2907 = vadd.f32 %v1665, %v2889
    %v2908 = vadd.f32 %v1666, %v2891
    %v2909 = vadd.f32 %v1667, %v2893
    %v2910 = vtanh.pop %v2902
    %v2911 = vtanh.pop %v2903
    %v2912 = vtanh.pop %v2904
    %v2913 = vtanh.pop %v2905
    %v2914 = vtanh.pop %v2906
    %v2915 = vtanh.pop %v2907
    %v2916 = vtanh.pop %v2908
    %v2917 = vtanh.pop %v2909
    %v2918 = vsub.f32 1.0, %v2823
    %v2919 = vsub.f32 1.0, %v2825
    %v2920 = vsub.f32 1.0, %v2827
    %v2921 = vsub.f32 1.0, %v2829
    %v2922 = vsub.f32 1.0, %v2831
    %v2923 = vsub.f32 1.0, %v2833
    %v2924 = vsub.f32 1.0, %v2835
    %v2925 = vsub.f32 1.0, %v2837
    %2934 = vrot.lane.b32.xlu0 %v2910, 96
    %v2935 = vpop.permute.xlu0 %2934
    %2936 = vrot.lane.b32.xlu0 %v2911, 96
    %v2937 = vpop.permute.xlu0 %2936
    %2938 = vrot.lane.b32.xlu0 %v2912, 96
    %v2939 = vpop.permute.xlu0 %2938
    %2940 = vrot.lane.b32.xlu0 %v2913, 96
    %v2941 = vpop.permute.xlu0 %2940
    %2942 = vrot.lane.b32.xlu0 %v2914, 96
    %v2943 = vpop.permute.xlu0 %2942
    %2944 = vrot.lane.b32.xlu0 %v2915, 96
    %v2945 = vpop.permute.xlu0 %2944
    %2946 = vrot.lane.b32.xlu0 %v2916, 96
    %v2947 = vpop.permute.xlu0 %2946
    %2948 = vrot.lane.b32.xlu0 %v2917, 96
    %v2949 = vpop.permute.xlu0 %2948
    %v2958 = vmul.f32 %v2918, %v2935
    %v2959 = vmul.f32 %v2919, %v2937
    %v2960 = vmul.f32 %v2920, %v2939
    %v2961 = vmul.f32 %v2921, %v2941
    %v2962 = vmul.f32 %v2922, %v2943
    %v2963 = vmul.f32 %v2923, %v2945
    %v2964 = vmul.f32 %v2924, %v2947
    %v2965 = vmul.f32 %v2925, %v2949
    %v2966 = vrot.slane %v2639, 7
    %v2967 = vrot.slane %v2641, 7
    %v2968 = vrot.slane %v2643, 7
    %v2969 = vrot.slane %v2644, 7
    %v2970 = vrot.slane %v2645, 7
    %v2971 = vrot.slane %v2646, 7
    %v2980 = vmul.f32 %v2823, %v2966
    %v2981 = vmul.f32 %v2825, %v2655
    %v2982 = vmul.f32 %v2827, %v2967
    %v2983 = vmul.f32 %v2829, %v2682
    %v2984 = vmul.f32 %v2831, %v2968
    %v2985 = vmul.f32 %v2833, %v2969
    %v2986 = vmul.f32 %v2835, %v2970
    %v2987 = vmul.f32 %v2837, %v2971
    %v2988 = vadd.f32 %v2958, %v2980
    %v2989 = vadd.f32 %v2959, %v2981
    %v2990 = vadd.f32 %v2960, %v2982
    %v2991 = vadd.f32 %v2961, %v2983
    %v2992 = vadd.f32 %v2962, %v2984
    %v2993 = vadd.f32 %v2963, %v2985
    %v2994 = vadd.f32 %v2964, %v2986
    %v2995 = vadd.f32 %v2965, %v2987
    %v3004 = vrot.slane %v2989, 7
    %v3005 = vsel %vm110, %v3004, %v2988
    %v3006 = vrot.slane %v2990, 6
    %v3007 = vsel %vm113, %v3006, %v3005
    %v3008 = vrot.slane %v2991, 5
    %v3009 = vsel %vm116, %v3008, %v3007
    %v3010 = vrot.slane %v2992, 4
    %v3011 = vsel %vm118, %v3010, %v3009
    %v3012 = vrot.slane %v2993, 3
    %v3013 = vrot.slane %v2994, 2
    %v3014 = vsel %vm101, %v3013, %v3012
    %v3015 = vrot.slane %v2995, 1
    %v3016 = vsel %vm104, %v3015, %v3014
    %3017 = vrot.lane.b32.xlu0 %v3011, 96
    %v3018 = vpop.permute.xlu0 %3017
    %3019 = vrot.lane.b32.xlu0 %v3016, 96
    %v3020 = vpop.permute.xlu0 %3019
    %vm3023 = vcmask 261123
    %3024 = vst.msk [vmem:[#allocation2 + $0x15] sm:$0xf8] %vm3023, %v3018
    %vm3025 = vcmask 256000
    %3026 = vst.msk [vmem:[#allocation2 + $0x1d] sm:$0x7] %vm3025, %v3020
    %v3027 = vrot.slane %v2988, 3
    %v3028 = vrot.slane %v2989, 2
    %v3029 = vsel %vm101, %v3028, %v3027
    %v3030 = vrot.slane %v2990, 1
    %v3031 = vsel %vm104, %v3030, %v3029
    %v3032 = vsel %vm107, %v2991, %v3031
    %v3033 = vrot.slane %v2992, 7
    %v3034 = vsel %vm110, %v3033, %v3032
    %v3035 = vrot.slane %v2993, 6
    %v3036 = vsel %vm113, %v3035, %v3034
    %v3037 = vrot.slane %v2994, 5
    %v3038 = vsel %vm116, %v3037, %v3036
    %v3039 = vrot.slane %v2995, 4
    %v3040 = vsel %vm118, %v3039, %v3038
    %3041 = vrot.lane.b32.xlu0 %v3040, 96
    %v3042 = vpop.permute.xlu0 %3041
    %v3043 = vsel %vm120, %v3042, 0
    %3045 = vmatprep.subr.mxu0 0.0
    %3046 = vmatpush1.msra.mxu0 %v61
    %3047 = vmatprep.subr.mxu0 0.0
    %3048 = vmatpush1.msra.mxu0 %v62
    %3049 = vmatprep.subr.mxu0 0.0
    %3050 = vmatpush1.msra.mxu0 %v63
    %3051 = vmatprep.subr.mxu0 0.0
    %3052 = vmatpush1.msra.mxu0 %v64
    %3053 = vmatprep.subr.mxu0 0.0
    %3054 = vmatpush1.msra.mxu0 0.0
    %3055 = vmatprep.subr.mxu0 0.0
    %3056 = vmatpush1.msra.mxu0 0.0
    %3057 = vmatprep.subr.mxu0 0.0
    %3058 = vmatpush1.msra.mxu0 0.0
    %3059 = vmatprep.subr.mxu0 0.0
    %3060 = vmatpush1.msra.mxu0 0.0
    %3061 = vmatprep.subr.mxu0 0.0
    %3062 = vmatpush1.msra.mxu0 0.0
    %3063 = vmatprep.subr.mxu0 0.0
    %3064 = vmatpush1.msra.mxu0 0.0
    %3065 = vmatprep.subr.mxu0 0.0
    %3066 = vmatpush1.msra.mxu0 0.0
    %3067 = vmatprep.subr.mxu0 0.0
    %3068 = vmatpush1.msra.mxu0 0.0
    %3069 = vmatprep.subr.mxu0 0.0
    %3070 = vmatpush1.msra.mxu0 0.0
    %3071 = vmatprep.subr.mxu0 0.0
    %3072 = vmatpush1.msra.mxu0 0.0
    %3073 = vmatprep.subr.mxu0 0.0
    %3074 = vmatpush1.msra.mxu0 0.0
    %3075 = vmatprep.subr.mxu0 0.0
    %3076 = vmatpush1.msra.mxu0 0.0
    %3077 = vmatprep.subr.mxu0 0.0
    %3078 = vmatpush1.msra.mxu0 0.0
    %3079 = vmatprep.subr.mxu0 0.0
    %3080 = vmatpush1.msra.mxu0 0.0
    %3081 = vmatprep.subr.mxu0 0.0
    %3082 = vmatpush1.msra.mxu0 0.0
    %3083 = vmatprep.subr.mxu0 0.0
    %3084 = vmatpush1.msra.mxu0 0.0
    %3085 = vmatprep.subr.mxu0 0.0
    %3086 = vmatpush1.msra.mxu0 0.0
    %3087 = vmatprep.subr.mxu0 0.0
    %3088 = vmatpush1.msra.mxu0 0.0
    %3089 = vmatprep.subr.mxu0 0.0
    %3090 = vmatpush1.msra.mxu0 0.0
    %3091 = vmatprep.subr.mxu0 0.0
    %3092 = vmatpush1.msra.mxu0 0.0
    %3093 = vmatprep.subr.mxu0 0.0
    %3094 = vmatpush1.msra.mxu0 0.0
    %3095 = vmatprep.subr.mxu0 0.0
    %3096 = vmatpush1.msra.mxu0 0.0
    %3097 = vmatprep.subr.mxu0 0.0
    %3098 = vmatpush1.msra.mxu0 0.0
    %3099 = vmatprep.subr.mxu0 0.0
    %3100 = vmatpush1.msra.mxu0 0.0
    %3101 = vmatprep.subr.mxu0 0.0
    %3102 = vmatpush1.msra.mxu0 0.0
    %3103 = vmatprep.subr.mxu0 0.0
    %3104 = vmatpush1.msra.mxu0 0.0
    %3105 = vmatprep.subr.mxu0 0.0
    %3106 = vmatpush1.msra.mxu0 0.0
    %3107 = vmatprep.subr.mxu0 0.0
    %3108 = vmatpush1.msra.mxu0 0.0
    %3109 = vmatprep.mubr.f32.mxu0 0.0
    %3110 = vmatmul.mubr.f32.gmra.mrb[0].mxu0 %v3043
    %v3111 = vpop.f32.mrb[0].mxu0
    %v3112 = vadd.f32 %v1679, %v3111
    %v3113 = vpop.f32.mrb[0].mxu0
    %3114 = vdwg.mxu0
    %v3116 = vrot.slane %v3112, 4
    %v3117 = vrot.slane %v3112, 5
    %v3118 = vrot.slane %v3112, 6
    %v3119 = vrot.slane %v3112, 7
    %v3120 = vrot.slane %v3112, 1
    %v3121 = vrot.slane %v3112, 2
    %v3122 = vrot.slane %v3112, 3
    %v3131 = vadd.f32 %v1668, %v3116
    %v3132 = vadd.f32 %v1669, %v3117
    %v3133 = vadd.f32 %v1670, %v3118
    %v3134 = vadd.f32 %v1671, %v3119
    %v3135 = vadd.f32 %v1672, %v3112
    %v3136 = vadd.f32 %v1673, %v3120
    %v3137 = vadd.f32 %v1674, %v3121
    %v3138 = vadd.f32 %v1675, %v3122
    %v3139 = vxor.u32 %v3131, 2147483648
    %v3140 = vxor.u32 %v3132, 2147483648
    %v3141 = vxor.u32 %v3133, 2147483648
    %v3142 = vxor.u32 %v3134, 2147483648
    %v3143 = vxor.u32 %v3135, 2147483648
    %v3144 = vxor.u32 %v3136, 2147483648
    %v3145 = vxor.u32 %v3137, 2147483648
    %v3146 = vxor.u32 %v3138, 2147483648
    %v3147 = vmul.f32 %v3139, 1.442695
    %v3148 = vpow.pop %v3147
    %v3149 = vmul.f32 %v3140, 1.442695
    %v3150 = vpow.pop %v3149
    %v3151 = vmul.f32 %v3141, 1.442695
    %v3152 = vpow.pop %v3151
    %v3153 = vmul.f32 %v3142, 1.442695
    %v3154 = vpow.pop %v3153
    %v3155 = vmul.f32 %v3143, 1.442695
    %v3156 = vpow.pop %v3155
    %v3157 = vmul.f32 %v3144, 1.442695
    %v3158 = vpow.pop %v3157
    %v3159 = vmul.f32 %v3145, 1.442695
    %v3160 = vpow.pop %v3159
    %v3161 = vmul.f32 %v3146, 1.442695
    %v3162 = vpow.pop %v3161
    %v3163 = vadd.f32 %v3148, 1.0
    %v3164 = vadd.f32 %v3150, 1.0
    %v3165 = vadd.f32 %v3152, 1.0
    %v3166 = vadd.f32 %v3154, 1.0
    %v3167 = vadd.f32 %v3156, 1.0
    %v3168 = vadd.f32 %v3158, 1.0
    %v3169 = vadd.f32 %v3160, 1.0
    %v3170 = vadd.f32 %v3162, 1.0
    %v3171 = vrcp.pop %v3163
    %v3172 = vmul.f32 1.0, %v3171
    %v3173 = vrcp.pop %v3164
    %v3174 = vmul.f32 1.0, %v3173
    %v3175 = vrcp.pop %v3165
    %v3176 = vmul.f32 1.0, %v3175
    %v3177 = vrcp.pop %v3166
    %v3178 = vmul.f32 1.0, %v3177
    %v3179 = vrcp.pop %v3167
    %v3180 = vmul.f32 1.0, %v3179
    %v3181 = vrcp.pop %v3168
    %v3182 = vmul.f32 1.0, %v3181
    %v3183 = vrcp.pop %v3169
    %v3184 = vmul.f32 1.0, %v3183
    %v3185 = vrcp.pop %v3170
    %v3186 = vmul.f32 1.0, %v3185
    %3187 = vrot.lane.b32.xlu0 %v3116, 64
    %v3188 = vpop.permute.xlu0 %3187
    %3189 = vrot.lane.b32.xlu0 %v3117, 64
    %v3190 = vpop.permute.xlu0 %3189
    %3191 = vrot.lane.b32.xlu0 %v3118, 64
    %v3192 = vpop.permute.xlu0 %3191
    %3193 = vrot.lane.b32.xlu0 %v3119, 64
    %v3194 = vpop.permute.xlu0 %3193
    %3195 = vrot.lane.b32.xlu0 %v3112, 64
    %v3196 = vpop.permute.xlu0 %3195
    %3197 = vrot.lane.b32.xlu0 %v3120, 64
    %v3198 = vpop.permute.xlu0 %3197
    %3199 = vrot.lane.b32.xlu0 %v3121, 64
    %v3200 = vpop.permute.xlu0 %3199
    %3201 = vrot.lane.b32.xlu0 %v3122, 64
    %v3202 = vpop.permute.xlu0 %3201
    %v3211 = vmul.f32 %v3172, %v3188
    %v3212 = vmul.f32 %v3174, %v3190
    %v3213 = vmul.f32 %v3176, %v3192
    %v3214 = vmul.f32 %v3178, %v3194
    %v3215 = vmul.f32 %v3180, %v3196
    %v3216 = vmul.f32 %v3182, %v3198
    %v3217 = vmul.f32 %v3184, %v3200
    %v3218 = vmul.f32 %v3186, %v3202
    %3227 = vrot.lane.b32.xlu0 %v3211, 64
    %v3228 = vpop.permute.xlu0 %3227
    %3229 = vrot.lane.b32.xlu0 %v3212, 64
    %v3230 = vpop.permute.xlu0 %3229
    %3231 = vrot.lane.b32.xlu0 %v3213, 64
    %v3232 = vpop.permute.xlu0 %3231
    %3233 = vrot.lane.b32.xlu0 %v3214, 64
    %v3234 = vpop.permute.xlu0 %3233
    %3235 = vrot.lane.b32.xlu0 %v3215, 64
    %v3236 = vpop.permute.xlu0 %3235
    %3237 = vrot.lane.b32.xlu0 %v3216, 64
    %v3238 = vpop.permute.xlu0 %3237
    %3239 = vrot.lane.b32.xlu0 %v3217, 64
    %v3240 = vpop.permute.xlu0 %3239
    %3241 = vrot.lane.b32.xlu0 %v3218, 64
    %v3242 = vpop.permute.xlu0 %3241
    %v3251 = vadd.f32 %v1668, %v3228
    %v3252 = vadd.f32 %v1669, %v3230
    %v3253 = vadd.f32 %v1670, %v3232
    %v3254 = vadd.f32 %v1671, %v3234
    %v3255 = vadd.f32 %v1672, %v3236
    %v3256 = vadd.f32 %v1673, %v3238
    %v3257 = vadd.f32 %v1674, %v3240
    %v3258 = vadd.f32 %v1675, %v3242
    %v3259 = vtanh.pop %v3251
    %v3260 = vtanh.pop %v3252
    %v3261 = vtanh.pop %v3253
    %v3262 = vtanh.pop %v3254
    %v3263 = vtanh.pop %v3255
    %v3264 = vtanh.pop %v3256
    %v3265 = vtanh.pop %v3257
    %v3266 = vtanh.pop %v3258
    %v3267 = vsub.f32 1.0, %v3172
    %v3268 = vsub.f32 1.0, %v3174
    %v3269 = vsub.f32 1.0, %v3176
    %v3270 = vsub.f32 1.0, %v3178
    %v3271 = vsub.f32 1.0, %v3180
    %v3272 = vsub.f32 1.0, %v3182
    %v3273 = vsub.f32 1.0, %v3184
    %v3274 = vsub.f32 1.0, %v3186
    %3283 = vrot.lane.b32.xlu0 %v3259, 96
    %v3284 = vpop.permute.xlu0 %3283
    %3285 = vrot.lane.b32.xlu0 %v3260, 96
    %v3286 = vpop.permute.xlu0 %3285
    %3287 = vrot.lane.b32.xlu0 %v3261, 96
    %v3288 = vpop.permute.xlu0 %3287
    %3289 = vrot.lane.b32.xlu0 %v3262, 96
    %v3290 = vpop.permute.xlu0 %3289
    %3291 = vrot.lane.b32.xlu0 %v3263, 96
    %v3292 = vpop.permute.xlu0 %3291
    %3293 = vrot.lane.b32.xlu0 %v3264, 96
    %v3294 = vpop.permute.xlu0 %3293
    %3295 = vrot.lane.b32.xlu0 %v3265, 96
    %v3296 = vpop.permute.xlu0 %3295
    %3297 = vrot.lane.b32.xlu0 %v3266, 96
    %v3298 = vpop.permute.xlu0 %3297
    %v3307 = vmul.f32 %v3267, %v3284
    %v3308 = vmul.f32 %v3268, %v3286
    %v3309 = vmul.f32 %v3269, %v3288
    %v3310 = vmul.f32 %v3270, %v3290
    %v3311 = vmul.f32 %v3271, %v3292
    %v3312 = vmul.f32 %v3272, %v3294
    %v3313 = vmul.f32 %v3273, %v3296
    %v3314 = vmul.f32 %v3274, %v3298
    %v3315 = vrot.slane %v2988, 7
    %v3316 = vrot.slane %v2990, 7
    %v3317 = vrot.slane %v2991, 7
    %v3318 = vrot.slane %v2993, 7
    %v3319 = vrot.slane %v2994, 7
    %v3320 = vrot.slane %v2995, 7
    %v3329 = vmul.f32 %v3172, %v3315
    %v3330 = vmul.f32 %v3174, %v3004
    %v3331 = vmul.f32 %v3176, %v3316
    %v3332 = vmul.f32 %v3178, %v3317
    %v3333 = vmul.f32 %v3180, %v3033
    %v3334 = vmul.f32 %v3182, %v3318
    %v3335 = vmul.f32 %v3184, %v3319
    %v3336 = vmul.f32 %v3186, %v3320
    %v3337 = vadd.f32 %v3307, %v3329
    %v3338 = vadd.f32 %v3308, %v3330
    %v3339 = vadd.f32 %v3309, %v3331
    %v3340 = vadd.f32 %v3310, %v3332
    %v3341 = vadd.f32 %v3311, %v3333
    %v3342 = vadd.f32 %v3312, %v3334
    %v3343 = vadd.f32 %v3313, %v3335
    %v3344 = vadd.f32 %v3314, %v3336
    %v3353 = vrot.slane %v3338, 7
    %v3354 = vsel %vm113, %v3353, %v3337
    %v3355 = vrot.slane %v3339, 6
    %v3356 = vsel %vm116, %v3355, %v3354
    %v3357 = vrot.slane %v3340, 5
    %v3358 = vsel %vm118, %v3357, %v3356
    %v3359 = vrot.slane %v3341, 4
    %v3360 = vrot.slane %v3342, 3
    %v3361 = vsel %vm101, %v3360, %v3359
    %v3362 = vrot.slane %v3343, 2
    %v3363 = vsel %vm104, %v3362, %v3361
    %v3364 = vrot.slane %v3344, 1
    %v3365 = vsel %vm107, %v3364, %v3363
    %3366 = vrot.lane.b32.xlu0 %v3358, 96
    %v3367 = vpop.permute.xlu0 %3366
    %3368 = vrot.lane.b32.xlu0 %v3365, 96
    %v3369 = vpop.permute.xlu0 %3368
    %vm3372 = vcmask 261124
    %3373 = vst.msk [vmem:[#allocation2 + $0x1c] sm:$0xf0] %vm3372, %v3367
    %vm3374 = vcmask 257024
    %3375 = vst.msk [vmem:[#allocation2 + $0x24] sm:$0xf] %vm3374, %v3369
    %v3376 = vld [vmem:[#allocation2] sm:$0xff]
    %v3377 = vld [vmem:[#allocation2 + $0x8] sm:$0xff]
    %v3378 = vld [vmem:[#allocation2 + $0x10] sm:$0xff]
    %v3379 = vld [vmem:[#allocation2 + $0x18] sm:$0xff]
    %v3380 = vld [vmem:[#allocation2 + $0x20] sm:$0xff]
    %v3381 = vlaneseq
    %v3382 = vshrl.u32 %v3381, 7
    %v3383 = vsub.s32 0, %v3382
    %v3384 = vrot.slane %v77, %v3383
    %v3386 = vsel %vm120, %v3376, 0
    %v3389 = vsel %vm120, %v3377, 0
    %v3392 = vsel %vm120, %v3378, 0
    %v3395 = vsel %vm120, %v3379, 0
    %v3398 = vsel %vm120, %v3380, 0
    %3400 = vmatprep.subr.mxu0 0.0
    %3401 = vmatpush1.msra.mxu0 %v66
    %3402 = vmatprep.subr.mxu0 0.0
    %3403 = vmatpush1.msra.mxu0 %v67
    %3404 = vmatprep.subr.mxu0 0.0
    %3405 = vmatpush1.msra.mxu0 %v68
    %3406 = vmatprep.subr.mxu0 0.0
    %3407 = vmatpush1.msra.mxu0 %v69
    %3408 = vmatprep.subr.mxu0 0.0
    %3409 = vmatpush1.msra.mxu0 0.0
    %3410 = vmatprep.subr.mxu0 0.0
    %3411 = vmatpush1.msra.mxu0 0.0
    %3412 = vmatprep.subr.mxu0 0.0
    %3413 = vmatpush1.msra.mxu0 0.0
    %3414 = vmatprep.subr.mxu0 0.0
    %3415 = vmatpush1.msra.mxu0 0.0
    %3416 = vmatprep.subr.mxu0 0.0
    %3417 = vmatpush1.msra.mxu0 0.0
    %3418 = vmatprep.subr.mxu0 0.0
    %3419 = vmatpush1.msra.mxu0 0.0
    %3420 = vmatprep.subr.mxu0 0.0
    %3421 = vmatpush1.msra.mxu0 0.0
    %3422 = vmatprep.subr.mxu0 0.0
    %3423 = vmatpush1.msra.mxu0 0.0
    %3424 = vmatprep.subr.mxu0 0.0
    %3425 = vmatpush1.msra.mxu0 0.0
    %3426 = vmatprep.subr.mxu0 0.0
    %3427 = vmatpush1.msra.mxu0 0.0
    %3428 = vmatprep.subr.mxu0 0.0
    %3429 = vmatpush1.msra.mxu0 0.0
    %3430 = vmatprep.subr.mxu0 0.0
    %3431 = vmatpush1.msra.mxu0 0.0
    %3432 = vmatprep.subr.mxu0 0.0
    %3433 = vmatpush1.msra.mxu0 0.0
    %3434 = vmatprep.subr.mxu0 0.0
    %3435 = vmatpush1.msra.mxu0 0.0
    %3436 = vmatprep.subr.mxu0 0.0
    %3437 = vmatpush1.msra.mxu0 0.0
    %3438 = vmatprep.subr.mxu0 0.0
    %3439 = vmatpush1.msra.mxu0 0.0
    %3440 = vmatprep.subr.mxu0 0.0
    %3441 = vmatpush1.msra.mxu0 0.0
    %3442 = vmatprep.subr.mxu0 0.0
    %3443 = vmatpush1.msra.mxu0 0.0
    %3444 = vmatprep.subr.mxu0 0.0
    %3445 = vmatpush1.msra.mxu0 0.0
    %3446 = vmatprep.subr.mxu0 0.0
    %3447 = vmatpush1.msra.mxu0 0.0
    %3448 = vmatprep.subr.mxu0 0.0
    %3449 = vmatpush1.msra.mxu0 0.0
    %3450 = vmatprep.subr.mxu0 0.0
    %3451 = vmatpush1.msra.mxu0 0.0
    %3452 = vmatprep.subr.mxu0 0.0
    %3453 = vmatpush1.msra.mxu0 0.0
    %3454 = vmatprep.subr.mxu0 0.0
    %3455 = vmatpush1.msra.mxu0 0.0
    %3456 = vmatprep.subr.mxu0 0.0
    %3457 = vmatpush1.msra.mxu0 0.0
    %3458 = vmatprep.subr.mxu0 0.0
    %3459 = vmatpush1.msra.mxu0 0.0
    %3460 = vmatprep.subr.mxu0 0.0
    %3461 = vmatpush1.msra.mxu0 0.0
    %3462 = vmatprep.subr.mxu0 0.0
    %3463 = vmatpush1.msra.mxu0 0.0
    %3464 = vmatprep.mubr.f32.mxu0 0.0
    %3465 = vmatmul.mubr.f32.gmra.mrb[0].mxu0 %v3386
    %v3466 = vpop.f32.mrb[0].mxu0
    %v3467 = vadd.f32 %v3384, %v3466
    %v3468 = vpop.f32.mrb[0].mxu0
    %3469 = vmatprep.mubr.f32.mxu0 0.0
    %3470 = vmatmul.mubr.f32.gmra.mrb[0].mxu0 %v3389
    %v3471 = vpop.f32.mrb[0].mxu0
    %v3472 = vadd.f32 %v3384, %v3471
    %v3473 = vpop.f32.mrb[0].mxu0
    %3474 = vmatprep.mubr.f32.mxu0 0.0
    %3475 = vmatmul.mubr.f32.gmra.mrb[0].mxu0 %v3392
    %v3476 = vpop.f32.mrb[0].mxu0
    %v3477 = vadd.f32 %v3384, %v3476
    %v3478 = vpop.f32.mrb[0].mxu0
    %3479 = vmatprep.mubr.f32.mxu0 0.0
    %3480 = vmatmul.mubr.f32.gmra.mrb[0].mxu0 %v3395
    %v3481 = vpop.f32.mrb[0].mxu0
    %v3482 = vadd.f32 %v3384, %v3481
    %v3483 = vpop.f32.mrb[0].mxu0
    %3484 = vmatprep.mubr.f32.mxu0 0.0
    %3485 = vmatmul.mubr.f32.gmra.mrb[0].mxu0 %v3398
    %v3486 = vpop.f32.mrb[0].mxu0
    %v3487 = vadd.f32 %v3384, %v3486
    %v3488 = vpop.f32.mrb[0].mxu0
    %3489 = vdwg.mxu0
    %vm3490 = vcmp.lt.s32.totalorder %v405, 2
    %vm3491 = vcmp.lt.s32.totalorder %v405, 4
    %v3492 = vmul.f32 %v3467, 1.442695
    %v3493 = vpow.pop %v3492
    %v3494 = vmul.f32 %v3472, 1.442695
    %v3495 = vpow.pop %v3494
    %v3496 = vmul.f32 %v3477, 1.442695
    %v3497 = vpow.pop %v3496
    %v3498 = vmul.f32 %v3482, 1.442695
    %v3499 = vpow.pop %v3498
    %v3500 = vmul.f32 %v3487, 1.442695
    %v3501 = vpow.pop %v3500
    %v3502 = vtanh.pop %v3467
    %v3503 = vtanh.pop %v3472
    %v3504 = vtanh.pop %v3477
    %v3505 = vtanh.pop %v3482
    %v3506 = vtanh.pop %v3487
    %v3507 = vsel %vm3491, %v3493, %v3502
    %v3508 = vsel %vm3491, %v3495, %v3503
    %v3509 = vsel %vm3491, %v3497, %v3504
    %v3510 = vsel %vm3491, %v3499, %v3505
    %v3511 = vsel %vm3491, %v3501, %v3506
    %v3512 = vsel %vm3490, %v3467, %v3507
    %v3513 = vsel %vm3490, %v3472, %v3508
    %v3514 = vsel %vm3490, %v3477, %v3509
    %v3515 = vsel %vm3490, %v3482, %v3510
    %v3516 = vsel %vm3490, %v3487, %v3511
    %3517 = vst [vmem:[%s4] sm:$0xff] %v3512
    %3518 = vst [vmem:[%s4 + $0x8] sm:$0xff] %v3513
    %3519 = vst [vmem:[%s4 + $0x10] sm:$0xff] %v3514
    %3520 = vst [vmem:[%s4 + $0x18] sm:$0xff] %v3515
    %3521 = vst [vmem:[%s4 + $0x20] sm:$0xff] %v3516
    %v3522 = vsel %vm375, %v386, %v403
    %v3523 = vsel %vm526, %v3522, 0.0
    %3524 = vst [vmem:[%s4 + $0x28] sm:$0xff] %v3523
    // Predicated region
    $region26: #{generator_stu_forward.1} parent=1 // pred_check
      _
    $region27: #{generator_stu_forward.1} parent=1 // pred_check_branch
      %3526 = sbr.rel (0) target = $region29
    $region28: #{generator_stu_forward.1} parent=1 // pred_region
      _
    $region29: #{generator_stu_forward.1} parent=1 // pred_fallthru
      _
    // Predicated region
    $region30: #{generator_stu_forward.1} parent=1 // pred_check
      _
    $region31: #{generator_stu_forward.1} parent=1 // pred_check_branch
      %3528 = sbr.rel (0) target = $region33
    $region32: #{generator_stu_forward.1} parent=1 // pred_region
      _
    $region33: #{generator_stu_forward.1} parent=1 // pred_fallthru
      _
    %3529 = vsyncpa [#allocation4], 1
    %3530 = vsyncpa [#allocation6], 1

</llo_original>
